<compile_context>
chip_gen: v6e
topology: v6e:2x2x1
jax: 0.10.0
libtpu: 0.0.40
codegen_flags: <defaults>
</compile_context>

<pallas_src>
import functools
import math

import jax
import jax.numpy as jnp
from jax import lax
from jax.experimental import pallas as pl
from jax.experimental.pallas import tpu as pltpu


# ----------------------------------------------------------------------------
# Fused Pallas kernel: (C,K)x(K,TILE_M) GEMM + folded bias/BN + optional residual
# + optional raw-output + activation.  Specialized on (act, emit_raw, has_res).
# ----------------------------------------------------------------------------
def _gemm_fused_kernel(*refs, act, emit_raw, has_res, leaky_rows):
    idx = 0
    w_ref = refs[idx]; idx += 1          # (C, K)        bf16, resident
    p_ref = refs[idx]; idx += 1          # (K, TILE_M)   bf16, tiled over M
    scale_ref = refs[idx]; idx += 1      # (C, 1)        f32, resident
    shift_ref = refs[idx]; idx += 1      # (C, 1)        f32, resident (bias folded in)
    bias_ref = None
    res_ref = None
    if emit_raw:
        bias_ref = refs[idx]; idx += 1   # (C, 1)        f32
    if has_res:
        res_ref = refs[idx]; idx += 1    # (C, TILE_M)   f32, tiled over M
    out_ref = refs[idx]; idx += 1        # (C, TILE_M)   out dtype (bf16 or f32)
    raw_ref = refs[idx] if emit_raw else None   # (C, TILE_M) f32

    acc = jnp.dot(w_ref[...], p_ref[...], preferred_element_type=jnp.float32)

    if emit_raw:
        # Raw conv output (dot + bias), pre-residual / pre-BN: residual source for ConvBlock1.
        raw_ref[...] = acc + bias_ref[...]

    y = acc
    if has_res:
        # Residual is added BEFORE the BN affine (matches `x1 += x; x1 = bn2(x1)`).
        # Folding bias into shift stays exact: (acc + res)*s + (bias*s + beta - mean*s)
        #   == BN(acc + bias + res).
        y = y + res_ref[...]
    y = y * scale_ref[...] + shift_ref[...]

    if act == "leaky":
        y = jnp.where(y > 0, y, 0.01 * y)          # nn.LeakyReLU default slope
    elif act == "leaky_rows":
        # Apply LeakyReLU only to the first `leaky_rows` output channels (dual GEMM of
        # ConvBlock2: conv1 branch gets the activation, conv3/bn3 branch does not).
        row = lax.broadcasted_iota(jnp.int32, y.shape, 0)
        y = jnp.where((row < leaky_rows) & (y < 0), 0.01 * y, y)
    elif act == "relu":
        y = jnp.maximum(y, 0.0)
    out_ref[...] = y.astype(out_ref.dtype)


def _round_up(x, m):
    return ((x + m - 1) // m) * m


def _run_gemm(w_mat, patches_bf16, scale, shift, bias, res_cm, act, emit_raw,
              out_dtype=jnp.bfloat16, leaky_rows=0):
    """w_mat: (C, K) f32, patches_bf16: (K, M) bf16, res_cm: (C, M) f32 or None.

    Returns (out_cm, raw_cm) in channel-major (C, M) layout.
    """
    C, K = w_mat.shape
    M = patches_bf16.shape[1]

    # Pad contraction dim (bf16 sublane packing) and the lane dim M.
    K_pad = _round_up(K, 16)
    M_pad = _round_up(M, 128)
    tile_m = 512 if M_pad % 512 == 0 else math.gcd(M_pad, 512)   # 128 / 256 / 512
    grid = (M_pad // tile_m,)

    p_bf = jnp.pad(patches_bf16, ((0, K_pad - K), (0, M_pad - M)))
    w_bf = jnp.pad(w_mat, ((0, 0), (0, K_pad - K))).astype(jnp.bfloat16)

    has_res = res_cm is not None

    inputs = [w_bf, p_bf,
              scale.reshape(C, 1).astype(jnp.float32),
              shift.reshape(C, 1).astype(jnp.float32)]
    in_specs = [
        pl.BlockSpec((C, K_pad), lambda i: (0, 0)),        # weights resident
        pl.BlockSpec((K_pad, tile_m), lambda i: (0, i)),   # patch tile, pipelined
        pl.BlockSpec((C, 1), lambda i: (0, 0)),
        pl.BlockSpec((C, 1), lambda i: (0, 0)),
    ]
    if emit_raw:
        inputs.append(bias.reshape(C, 1).astype(jnp.float32))
        in_specs.append(pl.BlockSpec((C, 1), lambda i: (0, 0)))
    if has_res:
        res_p = jnp.pad(res_cm.astype(jnp.float32), ((0, 0), (0, M_pad - M)))
        inputs.append(res_p)
        in_specs.append(pl.BlockSpec((C, tile_m), lambda i: (0, i)))

    out_shape = [jax.ShapeDtypeStruct((C, M_pad), out_dtype)]
    out_specs = [pl.BlockSpec((C, tile_m), lambda i: (0, i))]
    if emit_raw:
        out_shape.append(jax.ShapeDtypeStruct((C, M_pad), jnp.float32))
        out_specs.append(pl.BlockSpec((C, tile_m), lambda i: (0, i)))

    out_bytes = C * M_pad * (jnp.dtype(out_dtype).itemsize + 4 * int(emit_raw)
                             + 4 * int(has_res))
    cost = pl.CostEstimate(flops=2 * C * K_pad * M_pad, transcendentals=0,
                           bytes_accessed=int(w_bf.size * 2 + p_bf.size * 2 + out_bytes))

    kernel = functools.partial(_gemm_fused_kernel, act=act, emit_raw=emit_raw,
                               has_res=has_res, leaky_rows=leaky_rows)
    outs = pl.pallas_call(
        kernel,
        grid=grid,
        in_specs=in_specs,
        out_specs=tuple(out_specs) if emit_raw else out_specs[0],
        out_shape=tuple(out_shape) if emit_raw else out_shape[0],
        compiler_params=pltpu.CompilerParams(dimension_semantics=("parallel",)),
        cost_estimate=cost,
    )(*inputs)

    if emit_raw:
        out, raw = outs
        return out[:, :M], raw[:, :M]
    return outs[:, :M], None


# ----------------------------------------------------------------------------
# Glue: channel-major im2col (no transposes), BN folding
# ----------------------------------------------------------------------------
def _im2col_cm(x_cnhw, k, stride, pad):
    # x: (C, N, H, W) -> patches (C*k*k, N*Ho*Wo), row order (cin, di, dj)
    C, N, H, W = x_cnhw.shape
    xp = jnp.pad(x_cnhw, ((0, 0), (0, 0), (pad, pad), (pad, pad)))
    Ho = (H + 2 * pad - k) // stride + 1
    Wo = (W + 2 * pad - k) // stride + 1
    cols = [xp[:, :, di:di + stride * Ho:stride, dj:dj + stride * Wo:stride]
            for di in range(k) for dj in range(k)]
    pat = jnp.stack(cols, axis=1)                        # (C, k*k, N, Ho, Wo)
    return pat.reshape(C * k * k, N * Ho * Wo), (N, Ho, Wo)


def _fold_bn(bias, bn):
    # Returns (scale, shift_with_bias_folded, bias) as f32 per-channel vectors.
    bias = bias.astype(jnp.float32)
    if bn is None:
        return jnp.ones_like(bias), bias, bias
    gamma, beta, mean, var, eps = bn
    s = gamma / jnp.sqrt(var + eps)
    return s.astype(jnp.float32), (bias * s + beta - mean * s).astype(jnp.float32), bias


def conv3x3(x_cnhw, W, b, bn, *, stride=1, act="none", residual_cm=None, emit_raw=False):
    """x: (Cin, N, H, W).  Returns (out (Cout,N,Ho,Wo) bf16, raw_cm (Cout,M) f32 or None)."""
    k = W.shape[-1]
    patches, (N, Ho, Wo) = _im2col_cm(x_cnhw.astype(jnp.bfloat16), k, stride, 1)
    Cout = W.shape[0]
    w_mat = W.reshape(Cout, -1).astype(jnp.float32)
    scale, shift, bias = _fold_bn(b, bn)
    out_cm, raw_cm = _run_gemm(w_mat, patches, scale, shift,
                               bias if emit_raw else None, residual_cm, act, emit_raw,
                               out_dtype=jnp.bfloat16)
    return out_cm.reshape(Cout, N, Ho, Wo), raw_cm


def conv3x3_dual_stride2(x_cnhw, W1, b1, bn1, W3, b3, bn3):
    """ConvBlock2: conv1 and conv3 consume the same stride-2 patches -> one fused GEMM.

    Returns (a = leaky(bn1(conv1(x))) as (Cout,N,Ho,Wo),  tmp_cm = bn3(conv3(x)) as (Cout,M) f32).
    """
    patches, (N, Ho, Wo) = _im2col_cm(x_cnhw.astype(jnp.bfloat16), 3, 2, 1)
    Cout = W1.shape[0]
    w_mat = jnp.concatenate([W1.reshape(Cout, -1), W3.reshape(Cout, -1)],
                            axis=0).astype(jnp.float32)
    s1, sh1, _ = _fold_bn(b1, bn1)
    s3, sh3, _ = _fold_bn(b3, bn3)
    scale = jnp.concatenate([s1, s3])
    shift = jnp.concatenate([sh1, sh3])
    # f32 output: the lower half is a residual source that is re-added in f32.
    out_cm, _ = _run_gemm(w_mat, patches, scale, shift, None, None,
                          act="leaky_rows", emit_raw=False,
                          out_dtype=jnp.float32, leaky_rows=Cout)
    a = out_cm[:Cout].reshape(Cout, N, Ho, Wo)      # leaky(bn1(conv1(x)))
    tmp_cm = out_cm[Cout:]                          # bn3(conv3(x))
    return a, tmp_cm


# ----------------------------------------------------------------------------
# 1x1 convs (+ BN) and out_conv: bandwidth-trivial (Cout=1) -> plain XLA
# ----------------------------------------------------------------------------
def conv1x1_bn(x, W, b, bn, *, layout="cnhw"):
    Cout, Cin = W.shape[0], W.shape[1]
    eq = "cnhw,oc->nohw" if layout == "cnhw" else "nchw,oc->nohw"
    y = jnp.einsum(eq, x.astype(jnp.float32), W.reshape(Cout, Cin)) + b.reshape(1, Cout, 1, 1)
    if bn is None:
        return y
    gamma, beta, mean, var, eps = bn
    s = gamma / jnp.sqrt(var + eps)
    return y * s.reshape(1, Cout, 1, 1) + (beta - mean * s).reshape(1, Cout, 1, 1)


# ----------------------------------------------------------------------------
# Bilinear upsample, align_corners=True (matches nn.Upsample semantics); NCHW
# ----------------------------------------------------------------------------
def upsample_bilinear_ac(x, scale):
    N, C, H, W = x.shape
    Ho, Wo = H * scale, W * scale

    def coords(n_in, n_out):
        if n_in == 1:
            z = jnp.zeros((n_out,), jnp.int32)
            return z, z, jnp.zeros((n_out,), jnp.float32)
        src = jnp.arange(n_out, dtype=jnp.float32) * (n_in - 1) / (n_out - 1)
        i0 = jnp.clip(jnp.floor(src).astype(jnp.int32), 0, n_in - 2)
        return i0, i0 + 1, src - i0.astype(jnp.float32)

    h0, h1, fh = coords(H, Ho)
    w0, w1, fw = coords(W, Wo)
    top = x[:, :, h0, :] * (1 - fh)[None, None, :, None] + x[:, :, h1, :] * fh[None, None, :, None]
    out = top[:, :, :, w0] * (1 - fw)[None, None, None, :] + top[:, :, :, w1] * fw[None, None, None, :]
    return out


# ----------------------------------------------------------------------------
# Parameter construction (deterministic, synthetic)
# ----------------------------------------------------------------------------
def _make_conv(key, cin, cout, k):
    k1, k2 = jax.random.split(key)
    fan_in = cin * k * k
    W = jax.random.normal(k1, (cout, cin, k, k), jnp.float32) / math.sqrt(fan_in)
    b = 0.01 * jax.random.normal(k2, (cout,), jnp.float32)
    return W, b


def _make_bn(key, c):
    k1, k2, k3, k4 = jax.random.split(key, 4)
    gamma = 1.0 + 0.1 * jax.random.normal(k1, (c,), jnp.float32)
    beta = 0.1 * jax.random.normal(k2, (c,), jnp.float32)
    mean = 0.1 * jax.random.normal(k3, (c,), jnp.float32)
    var = 1.0 + 0.1 * jnp.abs(jax.random.normal(k4, (c,), jnp.float32))
    return (gamma, beta, mean, var, 1e-5)


def _make_block1(key, cin, cout):
    ks = jax.random.split(key, 4)
    w1, b1 = _make_conv(ks[0], cin, cout, 3)
    w2, b2 = _make_conv(ks[1], cout, cout, 3)
    return dict(w1=w1, b1=b1, bn1=_make_bn(ks[2], cout),
                w2=w2, b2=b2, bn2=_make_bn(ks[3], cout))


def _make_block2(key, cin, cout):
    ks = jax.random.split(key, 6)
    w1, b1 = _make_conv(ks[0], cin, cout, 3)
    w2, b2 = _make_conv(ks[1], cout, cout, 3)
    w3, b3 = _make_conv(ks[2], cin, cout, 3)
    return dict(w1=w1, b1=b1, bn1=_make_bn(ks[3], cout),
                w2=w2, b2=b2, bn2=_make_bn(ks[4], cout),
                w3=w3, b3=b3, bn3=_make_bn(ks[5], cout))


def make_params(key, in_channels, out_channels, middle_channels=(16, 32, 64)):
    m = middle_channels
    ks = jax.random.split(key, 16)
    p = {}
    p["d1_1"] = _make_block1(ks[0], in_channels, m[0])
    p["d1_2"] = _make_block1(ks[1], m[0], m[0])
    p["d2_1"] = _make_block2(ks[2], m[0], m[1])
    p["d2_2"] = _make_block1(ks[3], m[1], m[1])
    p["d2_3"] = _make_block1(ks[4], m[1], m[1])
    p["d3_1"] = _make_block2(ks[5], m[1], m[2])
    p["d3_2"] = _make_block1(ks[6], m[2], m[2])
    p["d3_3"] = _make_block1(ks[7], m[2], m[2])
    p["w11"], p["b11"] = _make_conv(ks[8], m[0], out_channels, 1)
    p["bn11"] = _make_bn(ks[9], out_channels)
    p["w12"], p["b12"] = _make_conv(ks[10], m[1], out_channels, 1)
    p["bn12"] = _make_bn(ks[11], out_channels)
    p["w13"], p["b13"] = _make_conv(ks[12], m[2], out_channels, 1)
    p["bn13"] = _make_bn(ks[13], out_channels)
    p["w_out"], p["b_out"] = _make_conv(ks[14], 3, out_channels, 1)
    # out_bn exists in __init__ but is unused in forward(); omitted intentionally.
    return p


# ----------------------------------------------------------------------------
# Forward pass (activations kept in channel-major (C, N, H, W) between convs)
# ----------------------------------------------------------------------------
def conv_block1(x_cnhw, p):
    # x = conv1(x); x1 = leaky(bn1(x)); x1 = conv2(x1); x1 += x; out = leaky(bn2(x1))
    y, raw_cm = conv3x3(x_cnhw, p["w1"], p["b1"], p["bn1"], act="leaky", emit_raw=True)
    out, _ = conv3x3(y, p["w2"], p["b2"], p["bn2"], act="leaky", residual_cm=raw_cm)
    return out


def conv_block2(x_cnhw, p):
    # tmp = bn3(conv3(x)); x = leaky(bn1(conv1(x))); x = conv2(x); x += tmp; out = leaky(bn2(x))
    a, tmp_cm = conv3x3_dual_stride2(x_cnhw, p["w1"], p["b1"], p["bn1"],
                                     p["w3"], p["b3"], p["bn3"])
    out, _ = conv3x3(a, p["w2"], p["b2"], p["bn2"], act="leaky", residual_cm=tmp_cm)
    return out


def breast_cnn_forward(x_nchw, p):
    x = jnp.transpose(x_nchw, (1, 0, 2, 3))              # NCHW -> CNHW once at entry

    x = conv_block1(x, p["d1_1"])
    x = conv_block1(x, p["d1_2"])
    x1 = conv1x1_bn(x, p["w11"], p["b11"], p["bn11"])     # -> NCHW

    x = conv_block2(x, p["d2_1"])
    x = conv_block1(x, p["d2_2"])
    x = conv_block1(x, p["d2_3"])
    x2 = conv1x1_bn(x, p["w12"], p["b12"], p["bn12"])
    x2 = upsample_bilinear_ac(x2, 2)

    x = conv_block2(x, p["d3_1"])
    x = conv_block1(x, p["d3_2"])
    x = conv_block1(x, p["d3_3"])
    x3 = conv1x1_bn(x, p["w13"], p["b13"], p["bn13"])
    x3 = upsample_bilinear_ac(x3, 4)

    cat = jnp.concatenate([x3, x1, x2], axis=1)                            # torch.cat([x, x1, x2], 1)
    out = conv1x1_bn(cat, p["w_out"], p["b_out"], None, layout="nchw")     # out_conv (no BN in forward)
    return jnp.maximum(out, 0.0)                                           # out_relu


# ----------------------------------------------------------------------------
if __name__ == "__main__":
    key = jax.random.PRNGKey(0)
    kx, kp = jax.random.split(key)

    in_channels, out_channels = 1, 1   # out_channels=1 so cat([x3,x1,x2]) has 3 ch for out_conv
    x = jax.random.normal(kx, (2, in_channels, 16, 16), jnp.float32)
    params = make_params(kp, in_channels, out_channels)

    fwd = jax.jit(breast_cnn_forward)
    out = fwd(x, params)
    out = jax.block_until_ready(out)
    assert out.shape == (2, out_channels, 16, 16), out.shape
    print("KERNEL_OK")
</pallas_src>

<mosaic_0001>
module attributes {stable_mosaic.version = 11 : i64} {
  func.func @_gemm_fused_kernel(%arg0: i32, %arg1: memref<16x16xbf16, #tpu.memory_space<vmem>>, %arg2: memref<16x512xbf16, #tpu.memory_space<vmem>>, %arg3: memref<16x1xf32, #tpu.memory_space<vmem>>, %arg4: memref<16x1xf32, #tpu.memory_space<vmem>>, %arg5: memref<16x1xf32, #tpu.memory_space<vmem>>, %arg6: memref<16x512xbf16, #tpu.memory_space<vmem>>, %arg7: memref<16x512xf32, #tpu.memory_space<vmem>>) attributes {dimension_semantics = [#tpu.dimension_semantics<parallel>], iteration_bounds = array<i64: 1>, scalar_prefetch = 0 : i64, scratch_operands = 0 : i64, tpu.core_type = #tpu.core_type<tc>, window_params = [{pipeline_mode = #tpu.pipeline_mode<synchronous>, transform_indices = @transform_0, window_bounds = array<i64: 16, 16>}, {transform_indices = @transform_1, window_bounds = array<i64: 16, 512>}, {pipeline_mode = #tpu.pipeline_mode<synchronous>, transform_indices = @transform_2, window_bounds = array<i64: 16, 1>}, {pipeline_mode = #tpu.pipeline_mode<synchronous>, transform_indices = @transform_3, window_bounds = array<i64: 16, 1>}, {pipeline_mode = #tpu.pipeline_mode<synchronous>, transform_indices = @transform_4, window_bounds = array<i64: 16, 1>}, {transform_indices = @transform_5, window_bounds = array<i64: 16, 512>}, {transform_indices = @transform_6, window_bounds = array<i64: 16, 512>}]} {
    %c0 = arith.constant 0 : index
    %c0_0 = arith.constant 0 : index
    %0 = vector.load %arg1[%c0, %c0_0] : memref<16x16xbf16, #tpu.memory_space<vmem>>, vector<16x16xbf16>
    %c0_1 = arith.constant 0 : index
    %c0_2 = arith.constant 0 : index
    %1 = vector.load %arg2[%c0_1, %c0_2] : memref<16x512xbf16, #tpu.memory_space<vmem>>, vector<16x512xbf16>
    %cst = arith.constant dense<0.000000e+00> : vector<16x512xf32>
    %2 = tpu.matmul %0, %1, %cst {dimension_numbers = #tpu.dot_dimension_numbers<[1], [0], [0], [1], [0, 0, 1, 1], [], []>} : vector<16x16xbf16>, vector<16x512xbf16>, vector<16x512xf32> -> vector<16x512xf32>
    %c0_3 = arith.constant 0 : index
    %c0_4 = arith.constant 0 : index
    %3 = vector.load %arg5[%c0_3, %c0_4] : memref<16x1xf32, #tpu.memory_space<vmem>>, vector<16x1xf32>
    %4 = vector.broadcast %3 : vector<16x1xf32> to vector<16x512xf32>
    %5 = arith.addf %2, %4 : vector<16x512xf32>
    %c0_5 = arith.constant 0 : index
    %c0_6 = arith.constant 0 : index
    %6 = vector.load %arg7[%c0_5, %c0_6] : memref<16x512xf32, #tpu.memory_space<vmem>>, vector<16x512xf32>
    tpu.vector_store %arg7[%c0_5, %c0_6], %5 {strides = array<i32>} : memref<16x512xf32, #tpu.memory_space<vmem>>, vector<16x512xf32>,
    %c0_7 = arith.constant 0 : index
    %c0_8 = arith.constant 0 : index
    %7 = vector.load %arg3[%c0_7, %c0_8] : memref<16x1xf32, #tpu.memory_space<vmem>>, vector<16x1xf32>
    %8 = vector.broadcast %7 : vector<16x1xf32> to vector<16x512xf32>
    %9 = arith.mulf %2, %8 : vector<16x512xf32>
    %c0_9 = arith.constant 0 : index
    %c0_10 = arith.constant 0 : index
    %10 = vector.load %arg4[%c0_9, %c0_10] : memref<16x1xf32, #tpu.memory_space<vmem>>, vector<16x1xf32>
    %11 = vector.broadcast %10 : vector<16x1xf32> to vector<16x512xf32>
    %12 = arith.addf %9, %11 : vector<16x512xf32>
    %cst_11 = arith.constant 0.000000e+00 : f32
    %13 = vector.broadcast %cst_11 : f32 to vector<16x512xf32>
    %14 = arith.cmpf ogt, %12, %13 : vector<16x512xf32>
    %cst_12 = arith.constant 0.00999999977 : f32
    %15 = vector.broadcast %cst_12 : f32 to vector<16x512xf32>
    %16 = arith.mulf %15, %12 : vector<16x512xf32>
    %17 = arith.select %14, %12, %16 : vector<16x512xi1>, vector<16x512xf32>
    %18 = arith.truncf %17 : vector<16x512xf32> to vector<16x512xbf16>
    %c0_13 = arith.constant 0 : index
    %c0_14 = arith.constant 0 : index
    %19 = vector.load %arg6[%c0_13, %c0_14] : memref<16x512xbf16, #tpu.memory_space<vmem>>, vector<16x512xbf16>
    tpu.vector_store %arg6[%c0_13, %c0_14], %18 {strides = array<i32>} : memref<16x512xbf16, #tpu.memory_space<vmem>>, vector<16x512xbf16>,
    return
  }
  func.func @transform_0(%arg0: i32) -> (i32, i32) {
    %c0_i32 = arith.constant 0 : i32
    %c0_i32_0 = arith.constant 0 : i32
    %c0_i32_1 = arith.constant 0 : i32
    return %c0_i32, %c0_i32_0 : i32, i32
  }
  func.func @transform_1(%arg0: i32) -> (i32, i32) {
    %c0_i32 = arith.constant 0 : i32
    %c0_i32_0 = arith.constant 0 : i32
    return %c0_i32, %arg0 : i32, i32
  }
  func.func @transform_2(%arg0: i32) -> (i32, i32) {
    %c0_i32 = arith.constant 0 : i32
    %c0_i32_0 = arith.constant 0 : i32
    %c0_i32_1 = arith.constant 0 : i32
    return %c0_i32, %c0_i32_0 : i32, i32
  }
  func.func @transform_3(%arg0: i32) -> (i32, i32) {
    %c0_i32 = arith.constant 0 : i32
    %c0_i32_0 = arith.constant 0 : i32
    %c0_i32_1 = arith.constant 0 : i32
    return %c0_i32, %c0_i32_0 : i32, i32
  }
  func.func @transform_4(%arg0: i32) -> (i32, i32) {
    %c0_i32 = arith.constant 0 : i32
    %c0_i32_0 = arith.constant 0 : i32
    %c0_i32_1 = arith.constant 0 : i32
    return %c0_i32, %c0_i32_0 : i32, i32
  }
  func.func @transform_5(%arg0: i32) -> (i32, i32) {
    %c0_i32 = arith.constant 0 : i32
    %c0_i32_0 = arith.constant 0 : i32
    return %c0_i32, %arg0 : i32, i32
  }
  func.func @transform_6(%arg0: i32) -> (i32, i32) {
    %c0_i32 = arith.constant 0 : i32
    %c0_i32_0 = arith.constant 0 : i32
    return %c0_i32, %arg0 : i32, i32
  }
}

module attributes {stable_mosaic.version = 11 : i64} {
  func.func @_gemm_fused_kernel(%arg0: i32, %arg1: memref<16x144xbf16, #tpu.memory_space<vmem>>, %arg2: memref<144x512xbf16, #tpu.memory_space<vmem>>, %arg3: memref<16x1xf32, #tpu.memory_space<vmem>>, %arg4: memref<16x1xf32, #tpu.memory_space<vmem>>, %arg5: memref<16x512xf32, #tpu.memory_space<vmem>>, %arg6: memref<16x512xbf16, #tpu.memory_space<vmem>>) attributes {dimension_semantics = [#tpu.dimension_semantics<parallel>], iteration_bounds = array<i64: 1>, scalar_prefetch = 0 : i64, scratch_operands = 0 : i64, tpu.core_type = #tpu.core_type<tc>, window_params = [{pipeline_mode = #tpu.pipeline_mode<synchronous>, transform_indices = @transform_0, window_bounds = array<i64: 16, 144>}, {transform_indices = @transform_1, window_bounds = array<i64: 144, 512>}, {pipeline_mode = #tpu.pipeline_mode<synchronous>, transform_indices = @transform_2, window_bounds = array<i64: 16, 1>}, {pipeline_mode = #tpu.pipeline_mode<synchronous>, transform_indices = @transform_3, window_bounds = array<i64: 16, 1>}, {transform_indices = @transform_4, window_bounds = array<i64: 16, 512>}, {transform_indices = @transform_5, window_bounds = array<i64: 16, 512>}]} {
    %c0 = arith.constant 0 : index
    %c0_0 = arith.constant 0 : index
    %0 = vector.load %arg1[%c0, %c0_0] : memref<16x144xbf16, #tpu.memory_space<vmem>>, vector<16x144xbf16>
    %c0_1 = arith.constant 0 : index
    %c0_2 = arith.constant 0 : index
    %1 = vector.load %arg2[%c0_1, %c0_2] : memref<144x512xbf16, #tpu.memory_space<vmem>>, vector<144x512xbf16>
    %cst = arith.constant dense<0.000000e+00> : vector<16x512xf32>
    %2 = tpu.matmul %0, %1, %cst {dimension_numbers = #tpu.dot_dimension_numbers<[1], [0], [0], [1], [0, 0, 1, 1], [], []>} : vector<16x144xbf16>, vector<144x512xbf16>, vector<16x512xf32> -> vector<16x512xf32>
    %c0_3 = arith.constant 0 : index
    %c0_4 = arith.constant 0 : index
    %3 = vector.load %arg5[%c0_3, %c0_4] : memref<16x512xf32, #tpu.memory_space<vmem>>, vector<16x512xf32>
    %4 = arith.addf %2, %3 : vector<16x512xf32>
    %c0_5 = arith.constant 0 : index
    %c0_6 = arith.constant 0 : index
    %5 = vector.load %arg3[%c0_5, %c0_6] : memref<16x1xf32, #tpu.memory_space<vmem>>, vector<16x1xf32>
    %6 = vector.broadcast %5 : vector<16x1xf32> to vector<16x512xf32>
    %7 = arith.mulf %4, %6 : vector<16x512xf32>
    %c0_7 = arith.constant 0 : index
    %c0_8 = arith.constant 0 : index
    %8 = vector.load %arg4[%c0_7, %c0_8] : memref<16x1xf32, #tpu.memory_space<vmem>>, vector<16x1xf32>
    %9 = vector.broadcast %8 : vector<16x1xf32> to vector<16x512xf32>
    %10 = arith.addf %7, %9 : vector<16x512xf32>
    %cst_9 = arith.constant 0.000000e+00 : f32
    %11 = vector.broadcast %cst_9 : f32 to vector<16x512xf32>
    %12 = arith.cmpf ogt, %10, %11 : vector<16x512xf32>
    %cst_10 = arith.constant 0.00999999977 : f32
    %13 = vector.broadcast %cst_10 : f32 to vector<16x512xf32>
    %14 = arith.mulf %13, %10 : vector<16x512xf32>
    %15 = arith.select %12, %10, %14 : vector<16x512xi1>, vector<16x512xf32>
    %16 = arith.truncf %15 : vector<16x512xf32> to vector<16x512xbf16>
    %c0_11 = arith.constant 0 : index
    %c0_12 = arith.constant 0 : index
    %17 = vector.load %arg6[%c0_11, %c0_12] : memref<16x512xbf16, #tpu.memory_space<vmem>>, vector<16x512xbf16>
    tpu.vector_store %arg6[%c0_11, %c0_12], %16 {strides = array<i32>} : memref<16x512xbf16, #tpu.memory_space<vmem>>, vector<16x512xbf16>,
    return
  }
  func.func @transform_0(%arg0: i32) -> (i32, i32) {
    %c0_i32 = arith.constant 0 : i32
    %c0_i32_0 = arith.constant 0 : i32
    %c0_i32_1 = arith.constant 0 : i32
    return %c0_i32, %c0_i32_0 : i32, i32
  }
  func.func @transform_1(%arg0: i32) -> (i32, i32) {
    %c0_i32 = arith.constant 0 : i32
    %c0_i32_0 = arith.constant 0 : i32
    return %c0_i32, %arg0 : i32, i32
  }
  func.func @transform_2(%arg0: i32) -> (i32, i32) {
    %c0_i32 = arith.constant 0 : i32
    %c0_i32_0 = arith.constant 0 : i32
    %c0_i32_1 = arith.constant 0 : i32
    return %c0_i32, %c0_i32_0 : i32, i32
  }
  func.func @transform_3(%arg0: i32) -> (i32, i32) {
    %c0_i32 = arith.constant 0 : i32
    %c0_i32_0 = arith.constant 0 : i32
    %c0_i32_1 = arith.constant 0 : i32
    return %c0_i32, %c0_i32_0 : i32, i32
  }
  func.func @transform_4(%arg0: i32) -> (i32, i32) {
    %c0_i32 = arith.constant 0 : i32
    %c0_i32_0 = arith.constant 0 : i32
    return %c0_i32, %arg0 : i32, i32
  }
  func.func @transform_5(%arg0: i32) -> (i32, i32) {
    %c0_i32 = arith.constant 0 : i32
    %c0_i32_0 = arith.constant 0 : i32
    return %c0_i32, %arg0 : i32, i32
  }
}

module attributes {stable_mosaic.version = 11 : i64} {
  func.func @_gemm_fused_kernel(%arg0: i32, %arg1: memref<16x144xbf16, #tpu.memory_space<vmem>>, %arg2: memref<144x512xbf16, #tpu.memory_space<vmem>>, %arg3: memref<16x1xf32, #tpu.memory_space<vmem>>, %arg4: memref<16x1xf32, #tpu.memory_space<vmem>>, %arg5: memref<16x1xf32, #tpu.memory_space<vmem>>, %arg6: memref<16x512xbf16, #tpu.memory_space<vmem>>, %arg7: memref<16x512xf32, #tpu.memory_space<vmem>>) attributes {dimension_semantics = [#tpu.dimension_semantics<parallel>], iteration_bounds = array<i64: 1>, scalar_prefetch = 0 : i64, scratch_operands = 0 : i64, tpu.core_type = #tpu.core_type<tc>, window_params = [{pipeline_mode = #tpu.pipeline_mode<synchronous>, transform_indices = @transform_0, window_bounds = array<i64: 16, 144>}, {transform_indices = @transform_1, window_bounds = array<i64: 144, 512>}, {pipeline_mode = #tpu.pipeline_mode<synchronous>, transform_indices = @transform_2, window_bounds = array<i64: 16, 1>}, {pipeline_mode = #tpu.pipeline_mode<synchronous>, transform_indices = @transform_3, window_bounds = array<i64: 16, 1>}, {pipeline_mode = #tpu.pipeline_mode<synchronous>, transform_indices = @transform_4, window_bounds = array<i64: 16, 1>}, {transform_indices = @transform_5, window_bounds = array<i64: 16, 512>}, {transform_indices = @transform_6, window_bounds = array<i64: 16, 512>}]} {
    %c0 = arith.constant 0 : index
    %c0_0 = arith.constant 0 : index
    %0 = vector.load %arg1[%c0, %c0_0] : memref<16x144xbf16, #tpu.memory_space<vmem>>, vector<16x144xbf16>
    %c0_1 = arith.constant 0 : index
    %c0_2 = arith.constant 0 : index
    %1 = vector.load %arg2[%c0_1, %c0_2] : memref<144x512xbf16, #tpu.memory_space<vmem>>, vector<144x512xbf16>
    %cst = arith.constant dense<0.000000e+00> : vector<16x512xf32>
    %2 = tpu.matmul %0, %1, %cst {dimension_numbers = #tpu.dot_dimension_numbers<[1], [0], [0], [1], [0, 0, 1, 1], [], []>} : vector<16x144xbf16>, vector<144x512xbf16>, vector<16x512xf32> -> vector<16x512xf32>
    %c0_3 = arith.constant 0 : index
    %c0_4 = arith.constant 0 : index
    %3 = vector.load %arg5[%c0_3, %c0_4] : memref<16x1xf32, #tpu.memory_space<vmem>>, vector<16x1xf32>
    %4 = vector.broadcast %3 : vector<16x1xf32> to vector<16x512xf32>
    %5 = arith.addf %2, %4 : vector<16x512xf32>
    %c0_5 = arith.constant 0 : index
    %c0_6 = arith.constant 0 : index
    %6 = vector.load %arg7[%c0_5, %c0_6] : memref<16x512xf32, #tpu.memory_space<vmem>>, vector<16x512xf32>
    tpu.vector_store %arg7[%c0_5, %c0_6], %5 {strides = array<i32>} : memref<16x512xf32, #tpu.memory_space<vmem>>, vector<16x512xf32>,
    %c0_7 = arith.constant 0 : index
    %c0_8 = arith.constant 0 : index
    %7 = vector.load %arg3[%c0_7, %c0_8] : memref<16x1xf32, #tpu.memory_space<vmem>>, vector<16x1xf32>
    %8 = vector.broadcast %7 : vector<16x1xf32> to vector<16x512xf32>
    %9 = arith.mulf %2, %8 : vector<16x512xf32>
    %c0_9 = arith.constant 0 : index
    %c0_10 = arith.constant 0 : index
    %10 = vector.load %arg4[%c0_9, %c0_10] : memref<16x1xf32, #tpu.memory_space<vmem>>, vector<16x1xf32>
    %11 = vector.broadcast %10 : vector<16x1xf32> to vector<16x512xf32>
    %12 = arith.addf %9, %11 : vector<16x512xf32>
    %cst_11 = arith.constant 0.000000e+00 : f32
    %13 = vector.broadcast %cst_11 : f32 to vector<16x512xf32>
    %14 = arith.cmpf ogt, %12, %13 : vector<16x512xf32>
    %cst_12 = arith.constant 0.00999999977 : f32
    %15 = vector.broadcast %cst_12 : f32 to vector<16x512xf32>
    %16 = arith.mulf %15, %12 : vector<16x512xf32>
    %17 = arith.select %14, %12, %16 : vector<16x512xi1>, vector<16x512xf32>
    %18 = arith.truncf %17 : vector<16x512xf32> to vector<16x512xbf16>
    %c0_13 = arith.constant 0 : index
    %c0_14 = arith.constant 0 : index
    %19 = vector.load %arg6[%c0_13, %c0_14] : memref<16x512xbf16, #tpu.memory_space<vmem>>, vector<16x512xbf16>
    tpu.vector_store %arg6[%c0_13, %c0_14], %18 {strides = array<i32>} : memref<16x512xbf16, #tpu.memory_space<vmem>>, vector<16x512xbf16>,
    return
  }
  func.func @transform_0(%arg0: i32) -> (i32, i32) {
    %c0_i32 = arith.constant 0 : i32
    %c0_i32_0 = arith.constant 0 : i32
    %c0_i32_1 = arith.constant 0 : i32
    return %c0_i32, %c0_i32_0 : i32, i32
  }
  func.func @transform_1(%arg0: i32) -> (i32, i32) {
    %c0_i32 = arith.constant 0 : i32
    %c0_i32_0 = arith.constant 0 : i32
    return %c0_i32, %arg0 : i32, i32
  }
  func.func @transform_2(%arg0: i32) -> (i32, i32) {
    %c0_i32 = arith.constant 0 : i32
    %c0_i32_0 = arith.constant 0 : i32
    %c0_i32_1 = arith.constant 0 : i32
    return %c0_i32, %c0_i32_0 : i32, i32
  }
  func.func @transform_3(%arg0: i32) -> (i32, i32) {
    %c0_i32 = arith.constant 0 : i32
    %c0_i32_0 = arith.constant 0 : i32
    %c0_i32_1 = arith.constant 0 : i32
    return %c0_i32, %c0_i32_0 : i32, i32
  }
  func.func @transform_4(%arg0: i32) -> (i32, i32) {
    %c0_i32 = arith.constant 0 : i32
    %c0_i32_0 = arith.constant 0 : i32
    %c0_i32_1 = arith.constant 0 : i32
    return %c0_i32, %c0_i32_0 : i32, i32
  }
  func.func @transform_5(%arg0: i32) -> (i32, i32) {
    %c0_i32 = arith.constant 0 : i32
    %c0_i32_0 = arith.constant 0 : i32
    return %c0_i32, %arg0 : i32, i32
  }
  func.func @transform_6(%arg0: i32) -> (i32, i32) {
    %c0_i32 = arith.constant 0 : i32
    %c0_i32_0 = arith.constant 0 : i32
    return %c0_i32, %arg0 : i32, i32
  }
}

module attributes {stable_mosaic.version = 11 : i64} {
  func.func @_gemm_fused_kernel(%arg0: i32, %arg1: memref<64x144xbf16, #tpu.memory_space<vmem>>, %arg2: memref<144x128xbf16, #tpu.memory_space<vmem>>, %arg3: memref<64x1xf32, #tpu.memory_space<vmem>>, %arg4: memref<64x1xf32, #tpu.memory_space<vmem>>, %arg5: memref<64x128xf32, #tpu.memory_space<vmem>>) attributes {dimension_semantics = [#tpu.dimension_semantics<parallel>], iteration_bounds = array<i64: 1>, scalar_prefetch = 0 : i64, scratch_operands = 0 : i64, tpu.core_type = #tpu.core_type<tc>, window_params = [{pipeline_mode = #tpu.pipeline_mode<synchronous>, transform_indices = @transform_0, window_bounds = array<i64: 64, 144>}, {transform_indices = @transform_1, window_bounds = array<i64: 144, 128>}, {pipeline_mode = #tpu.pipeline_mode<synchronous>, transform_indices = @transform_2, window_bounds = array<i64: 64, 1>}, {pipeline_mode = #tpu.pipeline_mode<synchronous>, transform_indices = @transform_3, window_bounds = array<i64: 64, 1>}, {transform_indices = @transform_4, window_bounds = array<i64: 64, 128>}]} {
    %c0 = arith.constant 0 : index
    %c0_0 = arith.constant 0 : index
    %0 = vector.load %arg1[%c0, %c0_0] : memref<64x144xbf16, #tpu.memory_space<vmem>>, vector<64x144xbf16>
    %c0_1 = arith.constant 0 : index
    %c0_2 = arith.constant 0 : index
    %1 = vector.load %arg2[%c0_1, %c0_2] : memref<144x128xbf16, #tpu.memory_space<vmem>>, vector<144x128xbf16>
    %cst = arith.constant dense<0.000000e+00> : vector<64x128xf32>
    %2 = tpu.matmul %0, %1, %cst {dimension_numbers = #tpu.dot_dimension_numbers<[1], [0], [0], [1], [0, 0, 1, 1], [], []>} : vector<64x144xbf16>, vector<144x128xbf16>, vector<64x128xf32> -> vector<64x128xf32>
    %c0_3 = arith.constant 0 : index
    %c0_4 = arith.constant 0 : index
    %3 = vector.load %arg3[%c0_3, %c0_4] : memref<64x1xf32, #tpu.memory_space<vmem>>, vector<64x1xf32>
    %4 = vector.broadcast %3 : vector<64x1xf32> to vector<64x128xf32>
    %5 = arith.mulf %2, %4 : vector<64x128xf32>
    %c0_5 = arith.constant 0 : index
    %c0_6 = arith.constant 0 : index
    %6 = vector.load %arg4[%c0_5, %c0_6] : memref<64x1xf32, #tpu.memory_space<vmem>>, vector<64x1xf32>
    %7 = vector.broadcast %6 : vector<64x1xf32> to vector<64x128xf32>
    %8 = arith.addf %5, %7 : vector<64x128xf32>
    %9 = tpu.iota {dimensions = array<i32: 0>} : vector<64x128xi32>
    %c32_i32 = arith.constant 32 : i32
    %10 = vector.broadcast %c32_i32 : i32 to vector<64x128xi32>
    %11 = arith.cmpi slt, %9, %10 : vector<64x128xi32>
    %cst_7 = arith.constant 0.000000e+00 : f32
    %12 = vector.broadcast %cst_7 : f32 to vector<64x128xf32>
    %13 = arith.cmpf olt, %8, %12 : vector<64x128xf32>
    %14 = arith.andi %11, %13 : vector<64x128xi1>
    %cst_8 = arith.constant 0.00999999977 : f32
    %15 = vector.broadcast %cst_8 : f32 to vector<64x128xf32>
    %16 = arith.mulf %15, %8 : vector<64x128xf32>
    %17 = arith.select %14, %16, %8 : vector<64x128xi1>, vector<64x128xf32>
    %c0_9 = arith.constant 0 : index
    %c0_10 = arith.constant 0 : index
    %18 = vector.load %arg5[%c0_9, %c0_10] : memref<64x128xf32, #tpu.memory_space<vmem>>, vector<64x128xf32>
    tpu.vector_store %arg5[%c0_9, %c0_10], %17 {strides = array<i32>} : memref<64x128xf32, #tpu.memory_space<vmem>>, vector<64x128xf32>,
    return
  }
  func.func @transform_0(%arg0: i32) -> (i32, i32) {
    %c0_i32 = arith.constant 0 : i32
    %c0_i32_0 = arith.constant 0 : i32
    %c0_i32_1 = arith.constant 0 : i32
    return %c0_i32, %c0_i32_0 : i32, i32
  }
  func.func @transform_1(%arg0: i32) -> (i32, i32) {
    %c0_i32 = arith.constant 0 : i32
    %c0_i32_0 = arith.constant 0 : i32
    return %c0_i32, %arg0 : i32, i32
  }
  func.func @transform_2(%arg0: i32) -> (i32, i32) {
    %c0_i32 = arith.constant 0 : i32
    %c0_i32_0 = arith.constant 0 : i32
    %c0_i32_1 = arith.constant 0 : i32
    return %c0_i32, %c0_i32_0 : i32, i32
  }
  func.func @transform_3(%arg0: i32) -> (i32, i32) {
    %c0_i32 = arith.constant 0 : i32
    %c0_i32_0 = arith.constant 0 : i32
    %c0_i32_1 = arith.constant 0 : i32
    return %c0_i32, %c0_i32_0 : i32, i32
  }
  func.func @transform_4(%arg0: i32) -> (i32, i32) {
    %c0_i32 = arith.constant 0 : i32
    %c0_i32_0 = arith.constant 0 : i32
    return %c0_i32, %arg0 : i32, i32
  }
}

module attributes {stable_mosaic.version = 11 : i64} {
  func.func @_gemm_fused_kernel(%arg0: i32, %arg1: memref<32x288xbf16, #tpu.memory_space<vmem>>, %arg2: memref<288x128xbf16, #tpu.memory_space<vmem>>, %arg3: memref<32x1xf32, #tpu.memory_space<vmem>>, %arg4: memref<32x1xf32, #tpu.memory_space<vmem>>, %arg5: memref<32x128xf32, #tpu.memory_space<vmem>>, %arg6: memref<32x128xbf16, #tpu.memory_space<vmem>>) attributes {dimension_semantics = [#tpu.dimension_semantics<parallel>], iteration_bounds = array<i64: 1>, scalar_prefetch = 0 : i64, scratch_operands = 0 : i64, tpu.core_type = #tpu.core_type<tc>, window_params = [{pipeline_mode = #tpu.pipeline_mode<synchronous>, transform_indices = @transform_0, window_bounds = array<i64: 32, 288>}, {transform_indices = @transform_1, window_bounds = array<i64: 288, 128>}, {pipeline_mode = #tpu.pipeline_mode<synchronous>, transform_indices = @transform_2, window_bounds = array<i64: 32, 1>}, {pipeline_mode = #tpu.pipeline_mode<synchronous>, transform_indices = @transform_3, window_bounds = array<i64: 32, 1>}, {transform_indices = @transform_4, window_bounds = array<i64: 32, 128>}, {transform_indices = @transform_5, window_bounds = array<i64: 32, 128>}]} {
    %c0 = arith.constant 0 : index
    %c0_0 = arith.constant 0 : index
    %0 = vector.load %arg1[%c0, %c0_0] : memref<32x288xbf16, #tpu.memory_space<vmem>>, vector<32x288xbf16>
    %c0_1 = arith.constant 0 : index
    %c0_2 = arith.constant 0 : index
    %1 = vector.load %arg2[%c0_1, %c0_2] : memref<288x128xbf16, #tpu.memory_space<vmem>>, vector<288x128xbf16>
    %cst = arith.constant dense<0.000000e+00> : vector<32x128xf32>
    %2 = tpu.matmul %0, %1, %cst {dimension_numbers = #tpu.dot_dimension_numbers<[1], [0], [0], [1], [0, 0, 1, 1], [], []>} : vector<32x288xbf16>, vector<288x128xbf16>, vector<32x128xf32> -> vector<32x128xf32>
    %c0_3 = arith.constant 0 : index
    %c0_4 = arith.constant 0 : index
    %3 = vector.load %arg5[%c0_3, %c0_4] : memref<32x128xf32, #tpu.memory_space<vmem>>, vector<32x128xf32>
    %4 = arith.addf %2, %3 : vector<32x128xf32>
    %c0_5 = arith.constant 0 : index
    %c0_6 = arith.constant 0 : index
    %5 = vector.load %arg3[%c0_5, %c0_6] : memref<32x1xf32, #tpu.memory_space<vmem>>, vector<32x1xf32>
    %6 = vector.broadcast %5 : vector<32x1xf32> to vector<32x128xf32>
    %7 = arith.mulf %4, %6 : vector<32x128xf32>
    %c0_7 = arith.constant 0 : index
    %c0_8 = arith.constant 0 : index
    %8 = vector.load %arg4[%c0_7, %c0_8] : memref<32x1xf32, #tpu.memory_space<vmem>>, vector<32x1xf32>
    %9 = vector.broadcast %8 : vector<32x1xf32> to vector<32x128xf32>
    %10 = arith.addf %7, %9 : vector<32x128xf32>
    %cst_9 = arith.constant 0.000000e+00 : f32
    %11 = vector.broadcast %cst_9 : f32 to vector<32x128xf32>
    %12 = arith.cmpf ogt, %10, %11 : vector<32x128xf32>
    %cst_10 = arith.constant 0.00999999977 : f32
    %13 = vector.broadcast %cst_10 : f32 to vector<32x128xf32>
    %14 = arith.mulf %13, %10 : vector<32x128xf32>
    %15 = arith.select %12, %10, %14 : vector<32x128xi1>, vector<32x128xf32>
    %16 = arith.truncf %15 : vector<32x128xf32> to vector<32x128xbf16>
    %c0_11 = arith.constant 0 : index
    %c0_12 = arith.constant 0 : index
    %17 = vector.load %arg6[%c0_11, %c0_12] : memref<32x128xbf16, #tpu.memory_space<vmem>>, vector<32x128xbf16>
    tpu.vector_store %arg6[%c0_11, %c0_12], %16 {strides = array<i32>} : memref<32x128xbf16, #tpu.memory_space<vmem>>, vector<32x128xbf16>,
    return
  }
  func.func @transform_0(%arg0: i32) -> (i32, i32) {
    %c0_i32 = arith.constant 0 : i32
    %c0_i32_0 = arith.constant 0 : i32
    %c0_i32_1 = arith.constant 0 : i32
    return %c0_i32, %c0_i32_0 : i32, i32
  }
  func.func @transform_1(%arg0: i32) -> (i32, i32) {
    %c0_i32 = arith.constant 0 : i32
    %c0_i32_0 = arith.constant 0 : i32
    return %c0_i32, %arg0 : i32, i32
  }
  func.func @transform_2(%arg0: i32) -> (i32, i32) {
    %c0_i32 = arith.constant 0 : i32
    %c0_i32_0 = arith.constant 0 : i32
    %c0_i32_1 = arith.constant 0 : i32
    return %c0_i32, %c0_i32_0 : i32, i32
  }
  func.func @transform_3(%arg0: i32) -> (i32, i32) {
    %c0_i32 = arith.constant 0 : i32
    %c0_i32_0 = arith.constant 0 : i32
    %c0_i32_1 = arith.constant 0 : i32
    return %c0_i32, %c0_i32_0 : i32, i32
  }
  func.func @transform_4(%arg0: i32) -> (i32, i32) {
    %c0_i32 = arith.constant 0 : i32
    %c0_i32_0 = arith.constant 0 : i32
    return %c0_i32, %arg0 : i32, i32
  }
  func.func @transform_5(%arg0: i32) -> (i32, i32) {
    %c0_i32 = arith.constant 0 : i32
    %c0_i32_0 = arith.constant 0 : i32
    return %c0_i32, %arg0 : i32, i32
  }
}

module attributes {stable_mosaic.version = 11 : i64} {
  func.func @_gemm_fused_kernel(%arg0: i32, %arg1: memref<32x288xbf16, #tpu.memory_space<vmem>>, %arg2: memref<288x128xbf16, #tpu.memory_space<vmem>>, %arg3: memref<32x1xf32, #tpu.memory_space<vmem>>, %arg4: memref<32x1xf32, #tpu.memory_space<vmem>>, %arg5: memref<32x1xf32, #tpu.memory_space<vmem>>, %arg6: memref<32x128xbf16, #tpu.memory_space<vmem>>, %arg7: memref<32x128xf32, #tpu.memory_space<vmem>>) attributes {dimension_semantics = [#tpu.dimension_semantics<parallel>], iteration_bounds = array<i64: 1>, scalar_prefetch = 0 : i64, scratch_operands = 0 : i64, tpu.core_type = #tpu.core_type<tc>, window_params = [{pipeline_mode = #tpu.pipeline_mode<synchronous>, transform_indices = @transform_0, window_bounds = array<i64: 32, 288>}, {transform_indices = @transform_1, window_bounds = array<i64: 288, 128>}, {pipeline_mode = #tpu.pipeline_mode<synchronous>, transform_indices = @transform_2, window_bounds = array<i64: 32, 1>}, {pipeline_mode = #tpu.pipeline_mode<synchronous>, transform_indices = @transform_3, window_bounds = array<i64: 32, 1>}, {pipeline_mode = #tpu.pipeline_mode<synchronous>, transform_indices = @transform_4, window_bounds = array<i64: 32, 1>}, {transform_indices = @transform_5, window_bounds = array<i64: 32, 128>}, {transform_indices = @transform_6, window_bounds = array<i64: 32, 128>}]} {
    %c0 = arith.constant 0 : index
    %c0_0 = arith.constant 0 : index
    %0 = vector.load %arg1[%c0, %c0_0] : memref<32x288xbf16, #tpu.memory_space<vmem>>, vector<32x288xbf16>
    %c0_1 = arith.constant 0 : index
    %c0_2 = arith.constant 0 : index
    %1 = vector.load %arg2[%c0_1, %c0_2] : memref<288x128xbf16, #tpu.memory_space<vmem>>, vector<288x128xbf16>
    %cst = arith.constant dense<0.000000e+00> : vector<32x128xf32>
    %2 = tpu.matmul %0, %1, %cst {dimension_numbers = #tpu.dot_dimension_numbers<[1], [0], [0], [1], [0, 0, 1, 1], [], []>} : vector<32x288xbf16>, vector<288x128xbf16>, vector<32x128xf32> -> vector<32x128xf32>
    %c0_3 = arith.constant 0 : index
    %c0_4 = arith.constant 0 : index
    %3 = vector.load %arg5[%c0_3, %c0_4] : memref<32x1xf32, #tpu.memory_space<vmem>>, vector<32x1xf32>
    %4 = vector.broadcast %3 : vector<32x1xf32> to vector<32x128xf32>
    %5 = arith.addf %2, %4 : vector<32x128xf32>
    %c0_5 = arith.constant 0 : index
    %c0_6 = arith.constant 0 : index
    %6 = vector.load %arg7[%c0_5, %c0_6] : memref<32x128xf32, #tpu.memory_space<vmem>>, vector<32x128xf32>
    tpu.vector_store %arg7[%c0_5, %c0_6], %5 {strides = array<i32>} : memref<32x128xf32, #tpu.memory_space<vmem>>, vector<32x128xf32>,
    %c0_7 = arith.constant 0 : index
    %c0_8 = arith.constant 0 : index
    %7 = vector.load %arg3[%c0_7, %c0_8] : memref<32x1xf32, #tpu.memory_space<vmem>>, vector<32x1xf32>
    %8 = vector.broadcast %7 : vector<32x1xf32> to vector<32x128xf32>
    %9 = arith.mulf %2, %8 : vector<32x128xf32>
    %c0_9 = arith.constant 0 : index
    %c0_10 = arith.constant 0 : index
    %10 = vector.load %arg4[%c0_9, %c0_10] : memref<32x1xf32, #tpu.memory_space<vmem>>, vector<32x1xf32>
    %11 = vector.broadcast %10 : vector<32x1xf32> to vector<32x128xf32>
    %12 = arith.addf %9, %11 : vector<32x128xf32>
    %cst_11 = arith.constant 0.000000e+00 : f32
    %13 = vector.broadcast %cst_11 : f32 to vector<32x128xf32>
    %14 = arith.cmpf ogt, %12, %13 : vector<32x128xf32>
    %cst_12 = arith.constant 0.00999999977 : f32
    %15 = vector.broadcast %cst_12 : f32 to vector<32x128xf32>
    %16 = arith.mulf %15, %12 : vector<32x128xf32>
    %17 = arith.select %14, %12, %16 : vector<32x128xi1>, vector<32x128xf32>
    %18 = arith.truncf %17 : vector<32x128xf32> to vector<32x128xbf16>
    %c0_13 = arith.constant 0 : index
    %c0_14 = arith.constant 0 : index
    %19 = vector.load %arg6[%c0_13, %c0_14] : memref<32x128xbf16, #tpu.memory_space<vmem>>, vector<32x128xbf16>
    tpu.vector_store %arg6[%c0_13, %c0_14], %18 {strides = array<i32>} : memref<32x128xbf16, #tpu.memory_space<vmem>>, vector<32x128xbf16>,
    return
  }
  func.func @transform_0(%arg0: i32) -> (i32, i32) {
    %c0_i32 = arith.constant 0 : i32
    %c0_i32_0 = arith.constant 0 : i32
    %c0_i32_1 = arith.constant 0 : i32
    return %c0_i32, %c0_i32_0 : i32, i32
  }
  func.func @transform_1(%arg0: i32) -> (i32, i32) {
    %c0_i32 = arith.constant 0 : i32
    %c0_i32_0 = arith.constant 0 : i32
    return %c0_i32, %arg0 : i32, i32
  }
  func.func @transform_2(%arg0: i32) -> (i32, i32) {
    %c0_i32 = arith.constant 0 : i32
    %c0_i32_0 = arith.constant 0 : i32
    %c0_i32_1 = arith.constant 0 : i32
    return %c0_i32, %c0_i32_0 : i32, i32
  }
  func.func @transform_3(%arg0: i32) -> (i32, i32) {
    %c0_i32 = arith.constant 0 : i32
    %c0_i32_0 = arith.constant 0 : i32
    %c0_i32_1 = arith.constant 0 : i32
    return %c0_i32, %c0_i32_0 : i32, i32
  }
  func.func @transform_4(%arg0: i32) -> (i32, i32) {
    %c0_i32 = arith.constant 0 : i32
    %c0_i32_0 = arith.constant 0 : i32
    %c0_i32_1 = arith.constant 0 : i32
    return %c0_i32, %c0_i32_0 : i32, i32
  }
  func.func @transform_5(%arg0: i32) -> (i32, i32) {
    %c0_i32 = arith.constant 0 : i32
    %c0_i32_0 = arith.constant 0 : i32
    return %c0_i32, %arg0 : i32, i32
  }
  func.func @transform_6(%arg0: i32) -> (i32, i32) {
    %c0_i32 = arith.constant 0 : i32
    %c0_i32_0 = arith.constant 0 : i32
    return %c0_i32, %arg0 : i32, i32
  }
}

module attributes {stable_mosaic.version = 11 : i64} {
  func.func @_gemm_fused_kernel(%arg0: i32, %arg1: memref<128x288xbf16, #tpu.memory_space<vmem>>, %arg2: memref<288x128xbf16, #tpu.memory_space<vmem>>, %arg3: memref<128x1xf32, #tpu.memory_space<vmem>>, %arg4: memref<128x1xf32, #tpu.memory_space<vmem>>, %arg5: memref<128x128xf32, #tpu.memory_space<vmem>>) attributes {dimension_semantics = [#tpu.dimension_semantics<parallel>], iteration_bounds = array<i64: 1>, scalar_prefetch = 0 : i64, scratch_operands = 0 : i64, tpu.core_type = #tpu.core_type<tc>, window_params = [{pipeline_mode = #tpu.pipeline_mode<synchronous>, transform_indices = @transform_0, window_bounds = array<i64: 128, 288>}, {transform_indices = @transform_1, window_bounds = array<i64: 288, 128>}, {pipeline_mode = #tpu.pipeline_mode<synchronous>, transform_indices = @transform_2, window_bounds = array<i64: 128, 1>}, {pipeline_mode = #tpu.pipeline_mode<synchronous>, transform_indices = @transform_3, window_bounds = array<i64: 128, 1>}, {transform_indices = @transform_4, window_bounds = array<i64: 128, 128>}]} {
    %c0 = arith.constant 0 : index
    %c0_0 = arith.constant 0 : index
    %0 = vector.load %arg1[%c0, %c0_0] : memref<128x288xbf16, #tpu.memory_space<vmem>>, vector<128x288xbf16>
    %c0_1 = arith.constant 0 : index
    %c0_2 = arith.constant 0 : index
    %1 = vector.load %arg2[%c0_1, %c0_2] : memref<288x128xbf16, #tpu.memory_space<vmem>>, vector<288x128xbf16>
    %cst = arith.constant dense<0.000000e+00> : vector<128x128xf32>
    %2 = tpu.matmul %0, %1, %cst {dimension_numbers = #tpu.dot_dimension_numbers<[1], [0], [0], [1], [0, 0, 1, 1], [], []>} : vector<128x288xbf16>, vector<288x128xbf16>, vector<128x128xf32> -> vector<128x128xf32>
    %c0_3 = arith.constant 0 : index
    %c0_4 = arith.constant 0 : index
    %3 = vector.load %arg3[%c0_3, %c0_4] : memref<128x1xf32, #tpu.memory_space<vmem>>, vector<128x1xf32>
    %4 = vector.broadcast %3 : vector<128x1xf32> to vector<128x128xf32>
    %5 = arith.mulf %2, %4 : vector<128x128xf32>
    %c0_5 = arith.constant 0 : index
    %c0_6 = arith.constant 0 : index
    %6 = vector.load %arg4[%c0_5, %c0_6] : memref<128x1xf32, #tpu.memory_space<vmem>>, vector<128x1xf32>
    %7 = vector.broadcast %6 : vector<128x1xf32> to vector<128x128xf32>
    %8 = arith.addf %5, %7 : vector<128x128xf32>
    %9 = tpu.iota {dimensions = array<i32: 0>} : vector<128x128xi32>
    %c64_i32 = arith.constant 64 : i32
    %10 = vector.broadcast %c64_i32 : i32 to vector<128x128xi32>
    %11 = arith.cmpi slt, %9, %10 : vector<128x128xi32>
    %cst_7 = arith.constant 0.000000e+00 : f32
    %12 = vector.broadcast %cst_7 : f32 to vector<128x128xf32>
    %13 = arith.cmpf olt, %8, %12 : vector<128x128xf32>
    %14 = arith.andi %11, %13 : vector<128x128xi1>
    %cst_8 = arith.constant 0.00999999977 : f32
    %15 = vector.broadcast %cst_8 : f32 to vector<128x128xf32>
    %16 = arith.mulf %15, %8 : vector<128x128xf32>
    %17 = arith.select %14, %16, %8 : vector<128x128xi1>, vector<128x128xf32>
    %c0_9 = arith.constant 0 : index
    %c0_10 = arith.constant 0 : index
    %18 = vector.load %arg5[%c0_9, %c0_10] : memref<128x128xf32, #tpu.memory_space<vmem>>, vector<128x128xf32>
    tpu.vector_store %arg5[%c0_9, %c0_10], %17 {strides = array<i32>} : memref<128x128xf32, #tpu.memory_space<vmem>>, vector<128x128xf32>,
    return
  }
  func.func @transform_0(%arg0: i32) -> (i32, i32) {
    %c0_i32 = arith.constant 0 : i32
    %c0_i32_0 = arith.constant 0 : i32
    %c0_i32_1 = arith.constant 0 : i32
    return %c0_i32, %c0_i32_0 : i32, i32
  }
  func.func @transform_1(%arg0: i32) -> (i32, i32) {
    %c0_i32 = arith.constant 0 : i32
    %c0_i32_0 = arith.constant 0 : i32
    return %c0_i32, %arg0 : i32, i32
  }
  func.func @transform_2(%arg0: i32) -> (i32, i32) {
    %c0_i32 = arith.constant 0 : i32
    %c0_i32_0 = arith.constant 0 : i32
    %c0_i32_1 = arith.constant 0 : i32
    return %c0_i32, %c0_i32_0 : i32, i32
  }
  func.func @transform_3(%arg0: i32) -> (i32, i32) {
    %c0_i32 = arith.constant 0 : i32
    %c0_i32_0 = arith.constant 0 : i32
    %c0_i32_1 = arith.constant 0 : i32
    return %c0_i32, %c0_i32_0 : i32, i32
  }
  func.func @transform_4(%arg0: i32) -> (i32, i32) {
    %c0_i32 = arith.constant 0 : i32
    %c0_i32_0 = arith.constant 0 : i32
    return %c0_i32, %arg0 : i32, i32
  }
}

module attributes {stable_mosaic.version = 11 : i64} {
  func.func @_gemm_fused_kernel(%arg0: i32, %arg1: memref<64x576xbf16, #tpu.memory_space<vmem>>, %arg2: memref<576x128xbf16, #tpu.memory_space<vmem>>, %arg3: memref<64x1xf32, #tpu.memory_space<vmem>>, %arg4: memref<64x1xf32, #tpu.memory_space<vmem>>, %arg5: memref<64x128xf32, #tpu.memory_space<vmem>>, %arg6: memref<64x128xbf16, #tpu.memory_space<vmem>>) attributes {dimension_semantics = [#tpu.dimension_semantics<parallel>], iteration_bounds = array<i64: 1>, scalar_prefetch = 0 : i64, scratch_operands = 0 : i64, tpu.core_type = #tpu.core_type<tc>, window_params = [{pipeline_mode = #tpu.pipeline_mode<synchronous>, transform_indices = @transform_0, window_bounds = array<i64: 64, 576>}, {transform_indices = @transform_1, window_bounds = array<i64: 576, 128>}, {pipeline_mode = #tpu.pipeline_mode<synchronous>, transform_indices = @transform_2, window_bounds = array<i64: 64, 1>}, {pipeline_mode = #tpu.pipeline_mode<synchronous>, transform_indices = @transform_3, window_bounds = array<i64: 64, 1>}, {transform_indices = @transform_4, window_bounds = array<i64: 64, 128>}, {transform_indices = @transform_5, window_bounds = array<i64: 64, 128>}]} {
    %c0 = arith.constant 0 : index
    %c0_0 = arith.constant 0 : index
    %0 = vector.load %arg1[%c0, %c0_0] : memref<64x576xbf16, #tpu.memory_space<vmem>>, vector<64x576xbf16>
    %c0_1 = arith.constant 0 : index
    %c0_2 = arith.constant 0 : index
    %1 = vector.load %arg2[%c0_1, %c0_2] : memref<576x128xbf16, #tpu.memory_space<vmem>>, vector<576x128xbf16>
    %cst = arith.constant dense<0.000000e+00> : vector<64x128xf32>
    %2 = tpu.matmul %0, %1, %cst {dimension_numbers = #tpu.dot_dimension_numbers<[1], [0], [0], [1], [0, 0, 1, 1], [], []>} : vector<64x576xbf16>, vector<576x128xbf16>, vector<64x128xf32> -> vector<64x128xf32>
    %c0_3 = arith.constant 0 : index
    %c0_4 = arith.constant 0 : index
    %3 = vector.load %arg5[%c0_3, %c0_4] : memref<64x128xf32, #tpu.memory_space<vmem>>, vector<64x128xf32>
    %4 = arith.addf %2, %3 : vector<64x128xf32>
    %c0_5 = arith.constant 0 : index
    %c0_6 = arith.constant 0 : index
    %5 = vector.load %arg3[%c0_5, %c0_6] : memref<64x1xf32, #tpu.memory_space<vmem>>, vector<64x1xf32>
    %6 = vector.broadcast %5 : vector<64x1xf32> to vector<64x128xf32>
    %7 = arith.mulf %4, %6 : vector<64x128xf32>
    %c0_7 = arith.constant 0 : index
    %c0_8 = arith.constant 0 : index
    %8 = vector.load %arg4[%c0_7, %c0_8] : memref<64x1xf32, #tpu.memory_space<vmem>>, vector<64x1xf32>
    %9 = vector.broadcast %8 : vector<64x1xf32> to vector<64x128xf32>
    %10 = arith.addf %7, %9 : vector<64x128xf32>
    %cst_9 = arith.constant 0.000000e+00 : f32
    %11 = vector.broadcast %cst_9 : f32 to vector<64x128xf32>
    %12 = arith.cmpf ogt, %10, %11 : vector<64x128xf32>
    %cst_10 = arith.constant 0.00999999977 : f32
    %13 = vector.broadcast %cst_10 : f32 to vector<64x128xf32>
    %14 = arith.mulf %13, %10 : vector<64x128xf32>
    %15 = arith.select %12, %10, %14 : vector<64x128xi1>, vector<64x128xf32>
    %16 = arith.truncf %15 : vector<64x128xf32> to vector<64x128xbf16>
    %c0_11 = arith.constant 0 : index
    %c0_12 = arith.constant 0 : index
    %17 = vector.load %arg6[%c0_11, %c0_12] : memref<64x128xbf16, #tpu.memory_space<vmem>>, vector<64x128xbf16>
    tpu.vector_store %arg6[%c0_11, %c0_12], %16 {strides = array<i32>} : memref<64x128xbf16, #tpu.memory_space<vmem>>, vector<64x128xbf16>,
    return
  }
  func.func @transform_0(%arg0: i32) -> (i32, i32) {
    %c0_i32 = arith.constant 0 : i32
    %c0_i32_0 = arith.constant 0 : i32
    %c0_i32_1 = arith.constant 0 : i32
    return %c0_i32, %c0_i32_0 : i32, i32
  }
  func.func @transform_1(%arg0: i32) -> (i32, i32) {
    %c0_i32 = arith.constant 0 : i32
    %c0_i32_0 = arith.constant 0 : i32
    return %c0_i32, %arg0 : i32, i32
  }
  func.func @transform_2(%arg0: i32) -> (i32, i32) {
    %c0_i32 = arith.constant 0 : i32
    %c0_i32_0 = arith.constant 0 : i32
    %c0_i32_1 = arith.constant 0 : i32
    return %c0_i32, %c0_i32_0 : i32, i32
  }
  func.func @transform_3(%arg0: i32) -> (i32, i32) {
    %c0_i32 = arith.constant 0 : i32
    %c0_i32_0 = arith.constant 0 : i32
    %c0_i32_1 = arith.constant 0 : i32
    return %c0_i32, %c0_i32_0 : i32, i32
  }
  func.func @transform_4(%arg0: i32) -> (i32, i32) {
    %c0_i32 = arith.constant 0 : i32
    %c0_i32_0 = arith.constant 0 : i32
    return %c0_i32, %arg0 : i32, i32
  }
  func.func @transform_5(%arg0: i32) -> (i32, i32) {
    %c0_i32 = arith.constant 0 : i32
    %c0_i32_0 = arith.constant 0 : i32
    return %c0_i32, %arg0 : i32, i32
  }
}

module attributes {stable_mosaic.version = 11 : i64} {
  func.func @_gemm_fused_kernel(%arg0: i32, %arg1: memref<64x576xbf16, #tpu.memory_space<vmem>>, %arg2: memref<576x128xbf16, #tpu.memory_space<vmem>>, %arg3: memref<64x1xf32, #tpu.memory_space<vmem>>, %arg4: memref<64x1xf32, #tpu.memory_space<vmem>>, %arg5: memref<64x1xf32, #tpu.memory_space<vmem>>, %arg6: memref<64x128xbf16, #tpu.memory_space<vmem>>, %arg7: memref<64x128xf32, #tpu.memory_space<vmem>>) attributes {dimension_semantics = [#tpu.dimension_semantics<parallel>], iteration_bounds = array<i64: 1>, scalar_prefetch = 0 : i64, scratch_operands = 0 : i64, tpu.core_type = #tpu.core_type<tc>, window_params = [{pipeline_mode = #tpu.pipeline_mode<synchronous>, transform_indices = @transform_0, window_bounds = array<i64: 64, 576>}, {transform_indices = @transform_1, window_bounds = array<i64: 576, 128>}, {pipeline_mode = #tpu.pipeline_mode<synchronous>, transform_indices = @transform_2, window_bounds = array<i64: 64, 1>}, {pipeline_mode = #tpu.pipeline_mode<synchronous>, transform_indices = @transform_3, window_bounds = array<i64: 64, 1>}, {pipeline_mode = #tpu.pipeline_mode<synchronous>, transform_indices = @transform_4, window_bounds = array<i64: 64, 1>}, {transform_indices = @transform_5, window_bounds = array<i64: 64, 128>}, {transform_indices = @transform_6, window_bounds = array<i64: 64, 128>}]} {
    %c0 = arith.constant 0 : index
    %c0_0 = arith.constant 0 : index
    %0 = vector.load %arg1[%c0, %c0_0] : memref<64x576xbf16, #tpu.memory_space<vmem>>, vector<64x576xbf16>
    %c0_1 = arith.constant 0 : index
    %c0_2 = arith.constant 0 : index
    %1 = vector.load %arg2[%c0_1, %c0_2] : memref<576x128xbf16, #tpu.memory_space<vmem>>, vector<576x128xbf16>
    %cst = arith.constant dense<0.000000e+00> : vector<64x128xf32>
    %2 = tpu.matmul %0, %1, %cst {dimension_numbers = #tpu.dot_dimension_numbers<[1], [0], [0], [1], [0, 0, 1, 1], [], []>} : vector<64x576xbf16>, vector<576x128xbf16>, vector<64x128xf32> -> vector<64x128xf32>
    %c0_3 = arith.constant 0 : index
    %c0_4 = arith.constant 0 : index
    %3 = vector.load %arg5[%c0_3, %c0_4] : memref<64x1xf32, #tpu.memory_space<vmem>>, vector<64x1xf32>
    %4 = vector.broadcast %3 : vector<64x1xf32> to vector<64x128xf32>
    %5 = arith.addf %2, %4 : vector<64x128xf32>
    %c0_5 = arith.constant 0 : index
    %c0_6 = arith.constant 0 : index
    %6 = vector.load %arg7[%c0_5, %c0_6] : memref<64x128xf32, #tpu.memory_space<vmem>>, vector<64x128xf32>
    tpu.vector_store %arg7[%c0_5, %c0_6], %5 {strides = array<i32>} : memref<64x128xf32, #tpu.memory_space<vmem>>, vector<64x128xf32>,
    %c0_7 = arith.constant 0 : index
    %c0_8 = arith.constant 0 : index
    %7 = vector.load %arg3[%c0_7, %c0_8] : memref<64x1xf32, #tpu.memory_space<vmem>>, vector<64x1xf32>
    %8 = vector.broadcast %7 : vector<64x1xf32> to vector<64x128xf32>
    %9 = arith.mulf %2, %8 : vector<64x128xf32>
    %c0_9 = arith.constant 0 : index
    %c0_10 = arith.constant 0 : index
    %10 = vector.load %arg4[%c0_9, %c0_10] : memref<64x1xf32, #tpu.memory_space<vmem>>, vector<64x1xf32>
    %11 = vector.broadcast %10 : vector<64x1xf32> to vector<64x128xf32>
    %12 = arith.addf %9, %11 : vector<64x128xf32>
    %cst_11 = arith.constant 0.000000e+00 : f32
    %13 = vector.broadcast %cst_11 : f32 to vector<64x128xf32>
    %14 = arith.cmpf ogt, %12, %13 : vector<64x128xf32>
    %cst_12 = arith.constant 0.00999999977 : f32
    %15 = vector.broadcast %cst_12 : f32 to vector<64x128xf32>
    %16 = arith.mulf %15, %12 : vector<64x128xf32>
    %17 = arith.select %14, %12, %16 : vector<64x128xi1>, vector<64x128xf32>
    %18 = arith.truncf %17 : vector<64x128xf32> to vector<64x128xbf16>
    %c0_13 = arith.constant 0 : index
    %c0_14 = arith.constant 0 : index
    %19 = vector.load %arg6[%c0_13, %c0_14] : memref<64x128xbf16, #tpu.memory_space<vmem>>, vector<64x128xbf16>
    tpu.vector_store %arg6[%c0_13, %c0_14], %18 {strides = array<i32>} : memref<64x128xbf16, #tpu.memory_space<vmem>>, vector<64x128xbf16>,
    return
  }
  func.func @transform_0(%arg0: i32) -> (i32, i32) {
    %c0_i32 = arith.constant 0 : i32
    %c0_i32_0 = arith.constant 0 : i32
    %c0_i32_1 = arith.constant 0 : i32
    return %c0_i32, %c0_i32_0 : i32, i32
  }
  func.func @transform_1(%arg0: i32) -> (i32, i32) {
    %c0_i32 = arith.constant 0 : i32
    %c0_i32_0 = arith.constant 0 : i32
    return %c0_i32, %arg0 : i32, i32
  }
  func.func @transform_2(%arg0: i32) -> (i32, i32) {
    %c0_i32 = arith.constant 0 : i32
    %c0_i32_0 = arith.constant 0 : i32
    %c0_i32_1 = arith.constant 0 : i32
    return %c0_i32, %c0_i32_0 : i32, i32
  }
  func.func @transform_3(%arg0: i32) -> (i32, i32) {
    %c0_i32 = arith.constant 0 : i32
    %c0_i32_0 = arith.constant 0 : i32
    %c0_i32_1 = arith.constant 0 : i32
    return %c0_i32, %c0_i32_0 : i32, i32
  }
  func.func @transform_4(%arg0: i32) -> (i32, i32) {
    %c0_i32 = arith.constant 0 : i32
    %c0_i32_0 = arith.constant 0 : i32
    %c0_i32_1 = arith.constant 0 : i32
    return %c0_i32, %c0_i32_0 : i32, i32
  }
  func.func @transform_5(%arg0: i32) -> (i32, i32) {
    %c0_i32 = arith.constant 0 : i32
    %c0_i32_0 = arith.constant 0 : i32
    return %c0_i32, %arg0 : i32, i32
  }
  func.func @transform_6(%arg0: i32) -> (i32, i32) {
    %c0_i32 = arith.constant 0 : i32
    %c0_i32_0 = arith.constant 0 : i32
    return %c0_i32, %arg0 : i32, i32
  }
}

</mosaic_0001>

<llo_original>
// kernel: breast_cnn_forward.16
$region0: #{breast_cnn_forward.16}
  #allocation0 [shape = 'u32[]', space=smem, size = 0x4, offset = 0x4, fixed_abs, tag = 'smem constant byte address 0x4 - core index']
  #allocation1 [shape = 'u32[144,128]{1,0:T(1,128)}', space=vmem, size = 0x12000, scoped, tag = 'internal scratch']
  %s0 = inlined_call_operand.vmem [shape: bf16[16,16], index: 0, kind: input, shape index: {}]
  %s1 = inlined_call_operand.vmem [shape: bf16[16,512], index: 1, kind: input, shape index: {}]
  %s2 = inlined_call_operand.vmem [shape: f32[16,1], index: 2, kind: input, shape index: {}]
  %s3 = inlined_call_operand.vmem [shape: f32[16,1], index: 3, kind: input, shape index: {}]
  %s4 = inlined_call_operand.vmem [shape: f32[16,1], index: 4, kind: input, shape index: {}]
  %s5 = inlined_call_operand.vmem [shape: bf16[16,512], index: 5, kind: output, shape index: {0}]
  %s6 = inlined_call_operand.vmem [shape: f32[16,512], index: 6, kind: output, shape index: {1}]
  %7 = xla_tuple %s5, %s6
  %s8 = sld [smem:[#allocation0]]
  $region38: #{breast_cnn_forward.16} parent=0
    _
  %s10 = ssub.s32 1, %s8
  %s11 = scalar_select 0, %s10, %s8
  // Predicated region
  $region2: #{breast_cnn_forward.16} parent=0 // pred_check
    _
  $region3: #{breast_cnn_forward.16} parent=0 // pred_check_branch
    %13 = sbr.rel (0) target = $region5
  $region4: #{breast_cnn_forward.16} parent=0 // pred_region
    _
  $region5: #{breast_cnn_forward.16} parent=0 // pred_fallthru
    _
  // Predicated region
  $region6: #{breast_cnn_forward.16} parent=0 // pred_check
    _
  $region7: #{breast_cnn_forward.16} parent=0 // pred_check_branch
    %15 = sbr.rel (0) target = $region9
  $region8: #{breast_cnn_forward.16} parent=0 // pred_region
    _
  $region9: #{breast_cnn_forward.16} parent=0 // pred_fallthru
    _
  // Predicated region
  $region10: #{breast_cnn_forward.16} parent=0 // pred_check
    _
  $region11: #{breast_cnn_forward.16} parent=0 // pred_check_branch
    %17 = sbr.rel (0) target = $region13
  $region12: #{breast_cnn_forward.16} parent=0 // pred_region
    _
  $region13: #{breast_cnn_forward.16} parent=0 // pred_fallthru
    _
  // Predicated region
  $region14: #{breast_cnn_forward.16} parent=0 // pred_check
    _
  $region15: #{breast_cnn_forward.16} parent=0 // pred_check_branch
    %19 = sbr.rel (0) target = $region17
  $region16: #{breast_cnn_forward.16} parent=0 // pred_region
    _
  $region17: #{breast_cnn_forward.16} parent=0 // pred_fallthru
    _
  // Predicated region
  $region18: #{breast_cnn_forward.16} parent=0 // pred_check
    _
  $region19: #{breast_cnn_forward.16} parent=0 // pred_check_branch
    %21 = sbr.rel (0) target = $region21
  $region20: #{breast_cnn_forward.16} parent=0 // pred_region
    _
  $region21: #{breast_cnn_forward.16} parent=0 // pred_fallthru
    _
  %v23 = vld [vmem:[%s0] sm:$0xf]
  %v24 = vld [vmem:[%s0 + $0x4] sm:$0xf]
  %v25 = vld [vmem:[%s1] sm:$0xff]
  %v26 = vld [vmem:[%s1 + $0x8] sm:$0xff]
  %v27 = vld [vmem:[%s1 + $0x10] sm:$0xff]
  %v28 = vld [vmem:[%s1 + $0x18] sm:$0xff]
  %v31 = vunpack.c.l.b16 %v23
  %v32 = vunpack.c.l.b16 %v24
  %v33 = vpack.c.b16 %v32, %v31
  %v38 = vunpack.c.l.b16 %v25
  %v39 = vunpack.c.h.b16 %v25
  %v40 = vunpack.c.l.b16 %v26
  %v41 = vunpack.c.h.b16 %v26
  %v42 = vunpack.c.l.b16 %v27
  %v43 = vunpack.c.h.b16 %v27
  %v44 = vunpack.c.l.b16 %v28
  %v45 = vunpack.c.h.b16 %v28
  %v46 = vpack.c.b16 %v42, %v38
  %v47 = vpack.c.b16 %v43, %v39
  %v48 = vpack.c.b16 %v44, %v40
  %v49 = vpack.c.b16 %v45, %v41
  %vm54 = vcmask 130048
  %v56 = vsel %vm54, %v33, 0
  %58 = vmatprep.subr.bf16.mxu0 0
  %59 = vmatpush1.bf16.msra.mxu0 0
  %60 = vmatprep.subr.bf16.mxu0 0
  %61 = vmatpush1.bf16.msra.mxu0 0
  %62 = vmatprep.subr.bf16.mxu0 0
  %63 = vmatpush1.bf16.msra.mxu0 0
  %64 = vmatprep.subr.bf16.mxu0 0
  %65 = vmatpush1.bf16.msra.mxu0 0
  %66 = vmatprep.subr.bf16.mxu0 0
  %67 = vmatpush1.bf16.msra.mxu0 0
  %68 = vmatprep.subr.bf16.mxu0 0
  %69 = vmatpush1.bf16.msra.mxu0 0
  %70 = vmatprep.subr.bf16.mxu0 0
  %71 = vmatpush1.bf16.msra.mxu0 0
  %72 = vmatprep.subr.bf16.mxu0 %v47
  %73 = vmatpush1.bf16.msra.mxu0 %v46
  %74 = vmatprep.subr.bf16.mxu0 0
  %75 = vmatpush2.bf16.msra.mxu0 0
  %76 = vmatprep.subr.bf16.mxu0 0
  %77 = vmatpush2.bf16.msra.mxu0 0
  %78 = vmatprep.subr.bf16.mxu0 0
  %79 = vmatpush2.bf16.msra.mxu0 0
  %80 = vmatprep.subr.bf16.mxu0 0
  %81 = vmatpush2.bf16.msra.mxu0 0
  %82 = vmatprep.subr.bf16.mxu0 0
  %83 = vmatpush2.bf16.msra.mxu0 0
  %84 = vmatprep.subr.bf16.mxu0 0
  %85 = vmatpush2.bf16.msra.mxu0 0
  %86 = vmatprep.subr.bf16.mxu0 0
  %87 = vmatpush2.bf16.msra.mxu0 0
  %88 = vmatprep.subr.bf16.mxu0 0
  %89 = vmatpush2.bf16.msra.mxu0 0
  %90 = vmatprep.mubr.bf16.mxu0 0
  %91 = vmatmul.mubr.bf16.gmra.mxu0 %v56
  %v92 = vpop.f32.mrf.mxu0
  %v93 = vadd.f32 0.0, %v92
  %v94 = vpop.f32.mrf.mxu0
  %v95 = vadd.f32 0.0, %v94
  %v96 = vpop.f32.mrf.mxu0
  %v97 = vadd.f32 0.0, %v96
  %v98 = vpop.f32.mrf.mxu0
  %v99 = vadd.f32 0.0, %v98
  %100 = vdwg.mxu0
  %101 = vmatprep.subr.bf16.mxu0 0
  %102 = vmatpush1.bf16.msra.mxu0 0
  %103 = vmatprep.subr.bf16.mxu0 0
  %104 = vmatpush1.bf16.msra.mxu0 0
  %105 = vmatprep.subr.bf16.mxu0 0
  %106 = vmatpush1.bf16.msra.mxu0 0
  %107 = vmatprep.subr.bf16.mxu0 0
  %108 = vmatpush1.bf16.msra.mxu0 0
  %109 = vmatprep.subr.bf16.mxu0 0
  %110 = vmatpush1.bf16.msra.mxu0 0
  %111 = vmatprep.subr.bf16.mxu0 0
  %112 = vmatpush1.bf16.msra.mxu0 0
  %113 = vmatprep.subr.bf16.mxu0 0
  %114 = vmatpush1.bf16.msra.mxu0 0
  %115 = vmatprep.subr.bf16.mxu0 %v49
  %116 = vmatpush1.bf16.msra.mxu0 %v48
  %117 = vmatprep.subr.bf16.mxu0 0
  %118 = vmatpush2.bf16.msra.mxu0 0
  %119 = vmatprep.subr.bf16.mxu0 0
  %120 = vmatpush2.bf16.msra.mxu0 0
  %121 = vmatprep.subr.bf16.mxu0 0
  %122 = vmatpush2.bf16.msra.mxu0 0
  %123 = vmatprep.subr.bf16.mxu0 0
  %124 = vmatpush2.bf16.msra.mxu0 0
  %125 = vmatprep.subr.bf16.mxu0 0
  %126 = vmatpush2.bf16.msra.mxu0 0
  %127 = vmatprep.subr.bf16.mxu0 0
  %128 = vmatpush2.bf16.msra.mxu0 0
  %129 = vmatprep.subr.bf16.mxu0 0
  %130 = vmatpush2.bf16.msra.mxu0 0
  %131 = vmatprep.subr.bf16.mxu0 0
  %132 = vmatpush2.bf16.msra.mxu0 0
  %133 = vmatprep.mubr.bf16.mxu0 0
  %134 = vmatmul.mubr.bf16.gmra.mxu0 %v56
  %v135 = vpop.f32.mrf.mxu0
  %v136 = vadd.f32 0.0, %v135
  %v137 = vpop.f32.mrf.mxu0
  %v138 = vadd.f32 0.0, %v137
  %v139 = vpop.f32.mrf.mxu0
  %v140 = vadd.f32 0.0, %v139
  %v141 = vpop.f32.mrf.mxu0
  %v142 = vadd.f32 0.0, %v141
  %143 = vdwg.mxu0
  %v144 = vld [vmem:[%s4] sm:$0xff]
  %v145 = vld [vmem:[%s4 + $0x8] sm:$0xff]
  %147 = vset.pattern.permute.xlu0 0
  %148 = vperm.xlu0 %147, %v144
  %v149 = vpop.permute.xlu0 %148
  %152 = vset.pattern.permute.xlu0 0
  %153 = vperm.xlu0 %152, %v145
  %v154 = vpop.permute.xlu0 %153
  %v156 = vadd.f32 %v93, %v149
  %v157 = vadd.f32 %v95, %v149
  %v158 = vadd.f32 %v136, %v149
  %v159 = vadd.f32 %v138, %v149
  %v160 = vadd.f32 %v97, %v154
  %v161 = vadd.f32 %v99, %v154
  %v162 = vadd.f32 %v140, %v154
  %v163 = vadd.f32 %v142, %v154
  %164 = vst [vmem:[%s6] sm:$0xff] %v156
  %165 = vst [vmem:[%s6 + $0x8] sm:$0xff] %v157
  %166 = vst [vmem:[%s6 + $0x10] sm:$0xff] %v158
  %167 = vst [vmem:[%s6 + $0x18] sm:$0xff] %v159
  %168 = vst [vmem:[%s6 + $0x20] sm:$0xff] %v160
  %169 = vst [vmem:[%s6 + $0x28] sm:$0xff] %v161
  %170 = vst [vmem:[%s6 + $0x30] sm:$0xff] %v162
  %171 = vst [vmem:[%s6 + $0x38] sm:$0xff] %v163
  %v172 = vld [vmem:[%s2] sm:$0xff]
  %v173 = vld [vmem:[%s2 + $0x8] sm:$0xff]
  %175 = vset.pattern.permute.xlu0 0
  %176 = vperm.xlu0 %175, %v172
  %v177 = vpop.permute.xlu0 %176
  %180 = vset.pattern.permute.xlu0 0
  %181 = vperm.xlu0 %180, %v173
  %v182 = vpop.permute.xlu0 %181
  %v184 = vmul.f32 %v93, %v177
  %v185 = vmul.f32 %v95, %v177
  %v186 = vmul.f32 %v136, %v177
  %v187 = vmul.f32 %v138, %v177
  %v188 = vmul.f32 %v97, %v182
  %v189 = vmul.f32 %v99, %v182
  %v190 = vmul.f32 %v140, %v182
  %v191 = vmul.f32 %v142, %v182
  %v192 = vld [vmem:[%s3] sm:$0xff]
  %v193 = vld [vmem:[%s3 + $0x8] sm:$0xff]
  %195 = vset.pattern.permute.xlu0 0
  %196 = vperm.xlu0 %195, %v192
  %v197 = vpop.permute.xlu0 %196
  %200 = vset.pattern.permute.xlu0 0
  %201 = vperm.xlu0 %200, %v193
  %v202 = vpop.permute.xlu0 %201
  %v204 = vadd.f32 %v184, %v197
  %v205 = vadd.f32 %v185, %v197
  %v206 = vadd.f32 %v186, %v197
  %v207 = vadd.f32 %v187, %v197
  %v208 = vadd.f32 %v188, %v202
  %v209 = vadd.f32 %v189, %v202
  %v210 = vadd.f32 %v190, %v202
  %v211 = vadd.f32 %v191, %v202
  %vm212 = vcmp.gt.f32.partialorder %v204, 0.0
  %vm213 = vcmp.gt.f32.partialorder %v205, 0.0
  %vm214 = vcmp.gt.f32.partialorder %v206, 0.0
  %vm215 = vcmp.gt.f32.partialorder %v207, 0.0
  %vm216 = vcmp.gt.f32.partialorder %v208, 0.0
  %vm217 = vcmp.gt.f32.partialorder %v209, 0.0
  %vm218 = vcmp.gt.f32.partialorder %v210, 0.0
  %vm219 = vcmp.gt.f32.partialorder %v211, 0.0
  %v220 = vmul.f32 %v204, 0.01
  %v221 = vmul.f32 %v205, 0.01
  %v222 = vmul.f32 %v206, 0.01
  %v223 = vmul.f32 %v207, 0.01
  %v224 = vmul.f32 %v208, 0.01
  %v225 = vmul.f32 %v209, 0.01
  %v226 = vmul.f32 %v210, 0.01
  %v227 = vmul.f32 %v211, 0.01
  %v228 = vsel %vm212, %v204, %v220
  %v229 = vsel %vm213, %v205, %v221
  %v230 = vsel %vm214, %v206, %v222
  %v231 = vsel %vm215, %v207, %v223
  %v232 = vsel %vm216, %v208, %v224
  %v233 = vsel %vm217, %v209, %v225
  %v234 = vsel %vm218, %v210, %v226
  %v235 = vsel %vm219, %v211, %v227
  %v236 = vpack.c.bf16 %v232, %v228
  %v237 = vpack.c.bf16 %v233, %v229
  %v238 = vpack.c.bf16 %v234, %v230
  %v239 = vpack.c.bf16 %v235, %v231
  %v244 = vunpack.c.l.b16 %v236
  %v245 = vunpack.c.l.b16 %v237
  %v246 = vunpack.c.l.b16 %v238
  %v247 = vunpack.c.l.b16 %v239
  %v248 = vunpack.c.h.b16 %v236
  %v249 = vunpack.c.h.b16 %v237
  %v250 = vunpack.c.h.b16 %v238
  %v251 = vunpack.c.h.b16 %v239
  %v252 = vpack.c.b16 %v245, %v244
  %v253 = vpack.c.b16 %v247, %v246
  %v254 = vpack.c.b16 %v249, %v248
  %v255 = vpack.c.b16 %v251, %v250
  %260 = vst [vmem:[%s5] sm:$0xff] %v252
  %261 = vst [vmem:[%s5 + $0x8] sm:$0xff] %v253
  %262 = vst [vmem:[%s5 + $0x10] sm:$0xff] %v254
  %263 = vst [vmem:[%s5 + $0x18] sm:$0xff] %v255
  // Predicated region
  $region22: #{breast_cnn_forward.16} parent=0 // pred_check
    _
  $region23: #{breast_cnn_forward.16} parent=0 // pred_check_branch
    %265 = sbr.rel (0) target = $region25
  $region24: #{breast_cnn_forward.16} parent=0 // pred_region
    _
  $region25: #{breast_cnn_forward.16} parent=0 // pred_fallthru
    _
  // Predicated region
  $region26: #{breast_cnn_forward.16} parent=0 // pred_check
    _
  $region27: #{breast_cnn_forward.16} parent=0 // pred_check_branch
    %267 = sbr.rel (0) target = $region29
  $region28: #{breast_cnn_forward.16} parent=0 // pred_region
    _
  $region29: #{breast_cnn_forward.16} parent=0 // pred_fallthru
    _
  // Predicated region
  $region30: #{breast_cnn_forward.16} parent=0 // pred_check
    _
  $region31: #{breast_cnn_forward.16} parent=0 // pred_check_branch
    %269 = sbr.rel (0) target = $region33
  $region32: #{breast_cnn_forward.16} parent=0 // pred_region
    _
  $region33: #{breast_cnn_forward.16} parent=0 // pred_fallthru
    _
  // Predicated region
  $region34: #{breast_cnn_forward.16} parent=0 // pred_check
    _
  $region35: #{breast_cnn_forward.16} parent=0 // pred_check_branch
    %271 = sbr.rel (0) target = $region37
  $region36: #{breast_cnn_forward.16} parent=0 // pred_region
    _
  $region37: #{breast_cnn_forward.16} parent=0 // pred_fallthru
    _

// kernel: breast_cnn_forward.17
$region0: #{breast_cnn_forward.17}
  #allocation0 [shape = 'u32[]', space=smem, size = 0x4, offset = 0x4, fixed_abs, tag = 'smem constant byte address 0x4 - core index']
  #allocation1 [shape = 'u32[144,128]{1,0:T(1,128)}', space=vmem, size = 0x12000, scoped, tag = 'internal scratch']
  %s0 = inlined_call_operand.vmem [shape: bf16[16,144], index: 0, kind: input, shape index: {}]
  %s1 = inlined_call_operand.vmem [shape: bf16[144,512], index: 1, kind: input, shape index: {}]
  %s2 = inlined_call_operand.vmem [shape: f32[16,1], index: 2, kind: input, shape index: {}]
  %s3 = inlined_call_operand.vmem [shape: f32[16,1], index: 3, kind: input, shape index: {}]
  %s4 = inlined_call_operand.vmem [shape: f32[16,512], index: 4, kind: input, shape index: {}]
  %s5 = inlined_call_operand.vmem [shape: bf16[16,512], index: 5, kind: output, shape index: {}]
  %s6 = sld [smem:[#allocation0]]
  $region30: #{breast_cnn_forward.17} parent=0
    _
  %s8 = ssub.s32 1, %s6
  %s9 = scalar_select 0, %s8, %s6
  // Predicated region
  $region2: #{breast_cnn_forward.17} parent=0 // pred_check
    _
  $region3: #{breast_cnn_forward.17} parent=0 // pred_check_branch
    %11 = sbr.rel (0) target = $region5
  $region4: #{breast_cnn_forward.17} parent=0 // pred_region
    _
  $region5: #{breast_cnn_forward.17} parent=0 // pred_fallthru
    _
  // Predicated region
  $region6: #{breast_cnn_forward.17} parent=0 // pred_check
    _
  $region7: #{breast_cnn_forward.17} parent=0 // pred_check_branch
    %13 = sbr.rel (0) target = $region9
  $region8: #{breast_cnn_forward.17} parent=0 // pred_region
    _
  $region9: #{breast_cnn_forward.17} parent=0 // pred_fallthru
    _
  // Predicated region
  $region10: #{breast_cnn_forward.17} parent=0 // pred_check
    _
  $region11: #{breast_cnn_forward.17} parent=0 // pred_check_branch
    %15 = sbr.rel (0) target = $region13
  $region12: #{breast_cnn_forward.17} parent=0 // pred_region
    _
  $region13: #{breast_cnn_forward.17} parent=0 // pred_fallthru
    _
  // Predicated region
  $region14: #{breast_cnn_forward.17} parent=0 // pred_check
    _
  $region15: #{breast_cnn_forward.17} parent=0 // pred_check_branch
    %17 = sbr.rel (0) target = $region17
  $region16: #{breast_cnn_forward.17} parent=0 // pred_region
    _
  $region17: #{breast_cnn_forward.17} parent=0 // pred_fallthru
    _
  // Predicated region
  $region18: #{breast_cnn_forward.17} parent=0 // pred_check
    _
  $region19: #{breast_cnn_forward.17} parent=0 // pred_check_branch
    %19 = sbr.rel (0) target = $region21
  $region20: #{breast_cnn_forward.17} parent=0 // pred_region
    _
  $region21: #{breast_cnn_forward.17} parent=0 // pred_fallthru
    _
  %v21 = vld [vmem:[%s0] sm:$0xff]
  %v22 = vld [vmem:[%s0 + $0x8] sm:$0xff]
  %v23 = vld [vmem:[%s1] sm:$0xff]
  %v24 = vld [vmem:[%s1 + $0x8] sm:$0xff]
  %v25 = vld [vmem:[%s1 + $0x10] sm:$0xff]
  %v26 = vld [vmem:[%s1 + $0x18] sm:$0xff]
  %v27 = vld [vmem:[%s1 + $0x20] sm:$0xff]
  %v28 = vld [vmem:[%s1 + $0x28] sm:$0xff]
  %v29 = vld [vmem:[%s1 + $0x30] sm:$0xff]
  %v30 = vld [vmem:[%s1 + $0x38] sm:$0xff]
  %v31 = vld [vmem:[%s1 + $0x40] sm:$0xff]
  %v32 = vld [vmem:[%s1 + $0x48] sm:$0xff]
  %v33 = vld [vmem:[%s1 + $0x50] sm:$0xff]
  %v34 = vld [vmem:[%s1 + $0x58] sm:$0xff]
  %v35 = vld [vmem:[%s1 + $0x60] sm:$0xff]
  %v36 = vld [vmem:[%s1 + $0x68] sm:$0xff]
  %v37 = vld [vmem:[%s1 + $0x70] sm:$0xff]
  %v38 = vld [vmem:[%s1 + $0x78] sm:$0xff]
  %v39 = vld [vmem:[%s1 + $0x80] sm:$0xff]
  %v40 = vld [vmem:[%s1 + $0x88] sm:$0xff]
  %v41 = vld [vmem:[%s1 + $0x90] sm:$0xff]
  %v42 = vld [vmem:[%s1 + $0x98] sm:$0xff]
  %v43 = vld [vmem:[%s1 + $0xa0] sm:$0xff]
  %v44 = vld [vmem:[%s1 + $0xa8] sm:$0xff]
  %v45 = vld [vmem:[%s1 + $0xb0] sm:$0xff]
  %v46 = vld [vmem:[%s1 + $0xb8] sm:$0xff]
  %v47 = vld [vmem:[%s1 + $0xc0] sm:$0xff]
  %v48 = vld [vmem:[%s1 + $0xc8] sm:$0xff]
  %v49 = vld [vmem:[%s1 + $0xd0] sm:$0xff]
  %v50 = vld [vmem:[%s1 + $0xd8] sm:$0xff]
  %v51 = vld [vmem:[%s1 + $0xe0] sm:$0xff]
  %v52 = vld [vmem:[%s1 + $0xe8] sm:$0xff]
  %v53 = vld [vmem:[%s1 + $0xf0] sm:$0xff]
  %v54 = vld [vmem:[%s1 + $0xf8] sm:$0xff]
  %v55 = vld [vmem:[%s1 + $0x100] sm:$0xff]
  %v56 = vld [vmem:[%s1 + $0x108] sm:$0xff]
  %v57 = vld [vmem:[%s1 + $0x110] sm:$0xff]
  %v58 = vld [vmem:[%s1 + $0x118] sm:$0xff]
  %v59 = vld [vmem:[%s4] sm:$0xff]
  %v60 = vld [vmem:[%s4 + $0x8] sm:$0xff]
  %v61 = vld [vmem:[%s4 + $0x10] sm:$0xff]
  %v62 = vld [vmem:[%s4 + $0x18] sm:$0xff]
  %v63 = vld [vmem:[%s4 + $0x20] sm:$0xff]
  %v64 = vld [vmem:[%s4 + $0x28] sm:$0xff]
  %v65 = vld [vmem:[%s4 + $0x30] sm:$0xff]
  %v66 = vld [vmem:[%s4 + $0x38] sm:$0xff]
  %v69 = vunpack.c.l.b16 %v21
  %v70 = vunpack.c.h.b16 %v21
  %v71 = vunpack.c.l.b16 %v22
  %v72 = vunpack.c.h.b16 %v22
  %v73 = vpack.c.b16 %v71, %v69
  %v74 = vpack.c.b16 %v72, %v70
  %v112 = vunpack.c.l.b16 %v23
  %v113 = vunpack.c.h.b16 %v23
  %v114 = vunpack.c.l.b16 %v24
  %v115 = vunpack.c.h.b16 %v24
  %v116 = vunpack.c.l.b16 %v25
  %v117 = vunpack.c.h.b16 %v25
  %v118 = vunpack.c.l.b16 %v26
  %v119 = vunpack.c.h.b16 %v26
  %v120 = vunpack.c.l.b16 %v27
  %v121 = vunpack.c.h.b16 %v27
  %v122 = vunpack.c.l.b16 %v28
  %v123 = vunpack.c.h.b16 %v28
  %v124 = vunpack.c.l.b16 %v29
  %v125 = vunpack.c.h.b16 %v29
  %v126 = vunpack.c.l.b16 %v30
  %v127 = vunpack.c.h.b16 %v30
  %v128 = vunpack.c.l.b16 %v31
  %v129 = vunpack.c.h.b16 %v31
  %v130 = vunpack.c.l.b16 %v32
  %v131 = vunpack.c.h.b16 %v32
  %v132 = vunpack.c.l.b16 %v33
  %v133 = vunpack.c.h.b16 %v33
  %v134 = vunpack.c.l.b16 %v34
  %v135 = vunpack.c.h.b16 %v34
  %v136 = vunpack.c.l.b16 %v35
  %v137 = vunpack.c.h.b16 %v35
  %v138 = vunpack.c.l.b16 %v36
  %v139 = vunpack.c.h.b16 %v36
  %v140 = vunpack.c.l.b16 %v37
  %v141 = vunpack.c.h.b16 %v37
  %v142 = vunpack.c.l.b16 %v38
  %v143 = vunpack.c.h.b16 %v38
  %v144 = vunpack.c.l.b16 %v39
  %v145 = vunpack.c.h.b16 %v39
  %v146 = vunpack.c.l.b16 %v40
  %v147 = vunpack.c.h.b16 %v40
  %v148 = vunpack.c.l.b16 %v41
  %v149 = vunpack.c.h.b16 %v41
  %v150 = vunpack.c.l.b16 %v42
  %v151 = vunpack.c.h.b16 %v42
  %v152 = vunpack.c.l.b16 %v43
  %v153 = vunpack.c.h.b16 %v43
  %v154 = vunpack.c.l.b16 %v44
  %v155 = vunpack.c.h.b16 %v44
  %v156 = vunpack.c.l.b16 %v45
  %v157 = vunpack.c.h.b16 %v45
  %v158 = vunpack.c.l.b16 %v46
  %v159 = vunpack.c.h.b16 %v46
  %v160 = vunpack.c.l.b16 %v47
  %v161 = vunpack.c.h.b16 %v47
  %v162 = vunpack.c.l.b16 %v48
  %v163 = vunpack.c.h.b16 %v48
  %v164 = vunpack.c.l.b16 %v49
  %v165 = vunpack.c.h.b16 %v49
  %v166 = vunpack.c.l.b16 %v50
  %v167 = vunpack.c.h.b16 %v50
  %v168 = vunpack.c.l.b16 %v51
  %v169 = vunpack.c.h.b16 %v51
  %v170 = vunpack.c.l.b16 %v52
  %v171 = vunpack.c.h.b16 %v52
  %v172 = vunpack.c.l.b16 %v53
  %v173 = vunpack.c.h.b16 %v53
  %v174 = vunpack.c.l.b16 %v54
  %v175 = vunpack.c.h.b16 %v54
  %v176 = vunpack.c.l.b16 %v55
  %v177 = vunpack.c.h.b16 %v55
  %v178 = vunpack.c.l.b16 %v56
  %v179 = vunpack.c.h.b16 %v56
  %v180 = vunpack.c.l.b16 %v57
  %v181 = vunpack.c.h.b16 %v57
  %v182 = vunpack.c.l.b16 %v58
  %v183 = vunpack.c.h.b16 %v58
  %v184 = vpack.c.b16 %v116, %v112
  %v185 = vpack.c.b16 %v117, %v113
  %v186 = vpack.c.b16 %v118, %v114
  %v187 = vpack.c.b16 %v119, %v115
  %v188 = vpack.c.b16 %v124, %v120
  %v189 = vpack.c.b16 %v125, %v121
  %v190 = vpack.c.b16 %v126, %v122
  %v191 = vpack.c.b16 %v127, %v123
  %v192 = vpack.c.b16 %v132, %v128
  %v193 = vpack.c.b16 %v133, %v129
  %v194 = vpack.c.b16 %v134, %v130
  %v195 = vpack.c.b16 %v135, %v131
  %v196 = vpack.c.b16 %v140, %v136
  %v197 = vpack.c.b16 %v141, %v137
  %v198 = vpack.c.b16 %v142, %v138
  %v199 = vpack.c.b16 %v143, %v139
  %v200 = vpack.c.b16 %v148, %v144
  %v201 = vpack.c.b16 %v149, %v145
  %v202 = vpack.c.b16 %v150, %v146
  %v203 = vpack.c.b16 %v151, %v147
  %v204 = vpack.c.b16 %v156, %v152
  %v205 = vpack.c.b16 %v157, %v153
  %v206 = vpack.c.b16 %v158, %v154
  %v207 = vpack.c.b16 %v159, %v155
  %v208 = vpack.c.b16 %v164, %v160
  %v209 = vpack.c.b16 %v165, %v161
  %v210 = vpack.c.b16 %v166, %v162
  %v211 = vpack.c.b16 %v167, %v163
  %v212 = vpack.c.b16 %v172, %v168
  %v213 = vpack.c.b16 %v173, %v169
  %v214 = vpack.c.b16 %v174, %v170
  %v215 = vpack.c.b16 %v175, %v171
  %v216 = vpack.c.b16 %v180, %v176
  %v217 = vpack.c.b16 %v181, %v177
  %v218 = vpack.c.b16 %v182, %v178
  %v219 = vpack.c.b16 %v183, %v179
  %vm256 = vcmask 130048
  %v258 = vsel %vm256, %v74, 0
  %260 = vmatprep.subr.bf16.mxu0 %v213
  %261 = vmatpush1.bf16.msra.mxu0 %v212
  %262 = vmatprep.subr.bf16.mxu0 %v209
  %263 = vmatpush1.bf16.msra.mxu0 %v208
  %264 = vmatprep.subr.bf16.mxu0 %v205
  %265 = vmatpush1.bf16.msra.mxu0 %v204
  %266 = vmatprep.subr.bf16.mxu0 %v201
  %267 = vmatpush1.bf16.msra.mxu0 %v200
  %268 = vmatprep.subr.bf16.mxu0 %v197
  %269 = vmatpush1.bf16.msra.mxu0 %v196
  %270 = vmatprep.subr.bf16.mxu0 %v193
  %271 = vmatpush1.bf16.msra.mxu0 %v192
  %272 = vmatprep.subr.bf16.mxu0 %v189
  %273 = vmatpush1.bf16.msra.mxu0 %v188
  %274 = vmatprep.subr.bf16.mxu0 %v185
  %275 = vmatpush1.bf16.msra.mxu0 %v184
  %276 = vmatprep.subr.bf16.mxu0 0
  %277 = vmatpush2.bf16.msra.mxu0 0
  %278 = vmatprep.subr.bf16.mxu0 0
  %279 = vmatpush2.bf16.msra.mxu0 0
  %280 = vmatprep.subr.bf16.mxu0 0
  %281 = vmatpush2.bf16.msra.mxu0 0
  %282 = vmatprep.subr.bf16.mxu0 0
  %283 = vmatpush2.bf16.msra.mxu0 0
  %284 = vmatprep.subr.bf16.mxu0 0
  %285 = vmatpush2.bf16.msra.mxu0 0
  %286 = vmatprep.subr.bf16.mxu0 0
  %287 = vmatpush2.bf16.msra.mxu0 0
  %288 = vmatprep.subr.bf16.mxu0 0
  %289 = vmatpush2.bf16.msra.mxu0 0
  %290 = vmatprep.subr.bf16.mxu0 %v217
  %291 = vmatpush2.bf16.msra.mxu0 %v216
  %292 = vmatprep.mubr.bf16.mxu0 %v258
  %293 = vmatmul.mubr.bf16.gmra.mxu0 %v73
  %v294 = vpop.f32.mrf.mxu0
  %v295 = vadd.f32 %v59, %v294
  %v296 = vpop.f32.mrf.mxu0
  %v297 = vadd.f32 %v60, %v296
  %v298 = vpop.f32.mrf.mxu0
  %v299 = vadd.f32 %v63, %v298
  %v300 = vpop.f32.mrf.mxu0
  %v301 = vadd.f32 %v64, %v300
  %302 = vdwg.mxu0
  %303 = vmatprep.subr.bf16.mxu0 %v215
  %304 = vmatpush1.bf16.msra.mxu0 %v214
  %305 = vmatprep.subr.bf16.mxu0 %v211
  %306 = vmatpush1.bf16.msra.mxu0 %v210
  %307 = vmatprep.subr.bf16.mxu0 %v207
  %308 = vmatpush1.bf16.msra.mxu0 %v206
  %309 = vmatprep.subr.bf16.mxu0 %v203
  %310 = vmatpush1.bf16.msra.mxu0 %v202
  %311 = vmatprep.subr.bf16.mxu0 %v199
  %312 = vmatpush1.bf16.msra.mxu0 %v198
  %313 = vmatprep.subr.bf16.mxu0 %v195
  %314 = vmatpush1.bf16.msra.mxu0 %v194
  %315 = vmatprep.subr.bf16.mxu0 %v191
  %316 = vmatpush1.bf16.msra.mxu0 %v190
  %317 = vmatprep.subr.bf16.mxu0 %v187
  %318 = vmatpush1.bf16.msra.mxu0 %v186
  %319 = vmatprep.subr.bf16.mxu0 0
  %320 = vmatpush2.bf16.msra.mxu0 0
  %321 = vmatprep.subr.bf16.mxu0 0
  %322 = vmatpush2.bf16.msra.mxu0 0
  %323 = vmatprep.subr.bf16.mxu0 0
  %324 = vmatpush2.bf16.msra.mxu0 0
  %325 = vmatprep.subr.bf16.mxu0 0
  %326 = vmatpush2.bf16.msra.mxu0 0
  %327 = vmatprep.subr.bf16.mxu0 0
  %328 = vmatpush2.bf16.msra.mxu0 0
  %329 = vmatprep.subr.bf16.mxu0 0
  %330 = vmatpush2.bf16.msra.mxu0 0
  %331 = vmatprep.subr.bf16.mxu0 0
  %332 = vmatpush2.bf16.msra.mxu0 0
  %333 = vmatprep.subr.bf16.mxu0 %v219
  %334 = vmatpush2.bf16.msra.mxu0 %v218
  %335 = vmatprep.mubr.bf16.mxu0 %v258
  %336 = vmatmul.mubr.bf16.gmra.mxu0 %v73
  %v337 = vpop.f32.mrf.mxu0
  %v338 = vadd.f32 %v61, %v337
  %v339 = vpop.f32.mrf.mxu0
  %v340 = vadd.f32 %v62, %v339
  %v341 = vpop.f32.mrf.mxu0
  %v342 = vadd.f32 %v65, %v341
  %v343 = vpop.f32.mrf.mxu0
  %v344 = vadd.f32 %v66, %v343
  %345 = vdwg.mxu0
  %v346 = vld [vmem:[%s2] sm:$0xff]
  %v347 = vld [vmem:[%s2 + $0x8] sm:$0xff]
  %349 = vset.pattern.permute.xlu0 0
  %350 = vperm.xlu0 %349, %v346
  %v351 = vpop.permute.xlu0 %350
  %354 = vset.pattern.permute.xlu0 0
  %355 = vperm.xlu0 %354, %v347
  %v356 = vpop.permute.xlu0 %355
  %v358 = vmul.f32 %v295, %v351
  %v359 = vmul.f32 %v297, %v351
  %v360 = vmul.f32 %v338, %v351
  %v361 = vmul.f32 %v340, %v351
  %v362 = vmul.f32 %v299, %v356
  %v363 = vmul.f32 %v301, %v356
  %v364 = vmul.f32 %v342, %v356
  %v365 = vmul.f32 %v344, %v356
  %v366 = vld [vmem:[%s3] sm:$0xff]
  %v367 = vld [vmem:[%s3 + $0x8] sm:$0xff]
  %369 = vset.pattern.permute.xlu0 0
  %370 = vperm.xlu0 %369, %v366
  %v371 = vpop.permute.xlu0 %370
  %374 = vset.pattern.permute.xlu0 0
  %375 = vperm.xlu0 %374, %v367
  %v376 = vpop.permute.xlu0 %375
  %v378 = vadd.f32 %v358, %v371
  %v379 = vadd.f32 %v359, %v371
  %v380 = vadd.f32 %v360, %v371
  %v381 = vadd.f32 %v361, %v371
  %v382 = vadd.f32 %v362, %v376
  %v383 = vadd.f32 %v363, %v376
  %v384 = vadd.f32 %v364, %v376
  %v385 = vadd.f32 %v365, %v376
  %vm386 = vcmp.gt.f32.partialorder %v378, 0.0
  %vm387 = vcmp.gt.f32.partialorder %v379, 0.0
  %vm388 = vcmp.gt.f32.partialorder %v380, 0.0
  %vm389 = vcmp.gt.f32.partialorder %v381, 0.0
  %vm390 = vcmp.gt.f32.partialorder %v382, 0.0
  %vm391 = vcmp.gt.f32.partialorder %v383, 0.0
  %vm392 = vcmp.gt.f32.partialorder %v384, 0.0
  %vm393 = vcmp.gt.f32.partialorder %v385, 0.0
  %v394 = vmul.f32 %v378, 0.01
  %v395 = vmul.f32 %v379, 0.01
  %v396 = vmul.f32 %v380, 0.01
  %v397 = vmul.f32 %v381, 0.01
  %v398 = vmul.f32 %v382, 0.01
  %v399 = vmul.f32 %v383, 0.01
  %v400 = vmul.f32 %v384, 0.01
  %v401 = vmul.f32 %v385, 0.01
  %v402 = vsel %vm386, %v378, %v394
  %v403 = vsel %vm387, %v379, %v395
  %v404 = vsel %vm388, %v380, %v396
  %v405 = vsel %vm389, %v381, %v397
  %v406 = vsel %vm390, %v382, %v398
  %v407 = vsel %vm391, %v383, %v399
  %v408 = vsel %vm392, %v384, %v400
  %v409 = vsel %vm393, %v385, %v401
  %v410 = vpack.c.bf16 %v406, %v402
  %v411 = vpack.c.bf16 %v407, %v403
  %v412 = vpack.c.bf16 %v408, %v404
  %v413 = vpack.c.bf16 %v409, %v405
  %v418 = vunpack.c.l.b16 %v410
  %v419 = vunpack.c.l.b16 %v411
  %v420 = vunpack.c.l.b16 %v412
  %v421 = vunpack.c.l.b16 %v413
  %v422 = vunpack.c.h.b16 %v410
  %v423 = vunpack.c.h.b16 %v411
  %v424 = vunpack.c.h.b16 %v412
  %v425 = vunpack.c.h.b16 %v413
  %v426 = vpack.c.b16 %v419, %v418
  %v427 = vpack.c.b16 %v421, %v420
  %v428 = vpack.c.b16 %v423, %v422
  %v429 = vpack.c.b16 %v425, %v424
  %434 = vst [vmem:[%s5] sm:$0xff] %v426
  %435 = vst [vmem:[%s5 + $0x8] sm:$0xff] %v427
  %436 = vst [vmem:[%s5 + $0x10] sm:$0xff] %v428
  %437 = vst [vmem:[%s5 + $0x18] sm:$0xff] %v429
  // Predicated region
  $region22: #{breast_cnn_forward.17} parent=0 // pred_check
    _
  $region23: #{breast_cnn_forward.17} parent=0 // pred_check_branch
    %439 = sbr.rel (0) target = $region25
  $region24: #{breast_cnn_forward.17} parent=0 // pred_region
    _
  $region25: #{breast_cnn_forward.17} parent=0 // pred_fallthru
    _
  // Predicated region
  $region26: #{breast_cnn_forward.17} parent=0 // pred_check
    _
  $region27: #{breast_cnn_forward.17} parent=0 // pred_check_branch
    %441 = sbr.rel (0) target = $region29
  $region28: #{breast_cnn_forward.17} parent=0 // pred_region
    _
  $region29: #{breast_cnn_forward.17} parent=0 // pred_fallthru
    _

// kernel: breast_cnn_forward.18
$region0: #{breast_cnn_forward.18}
  #allocation0 [shape = 'u32[]', space=smem, size = 0x4, offset = 0x4, fixed_abs, tag = 'smem constant byte address 0x4 - core index']
  #allocation1 [shape = 'u32[144,128]{1,0:T(1,128)}', space=vmem, size = 0x12000, scoped, tag = 'internal scratch']
  %s0 = inlined_call_operand.vmem [shape: bf16[16,144], index: 0, kind: input, shape index: {}]
  %s1 = inlined_call_operand.vmem [shape: bf16[144,512], index: 1, kind: input, shape index: {}]
  %s2 = inlined_call_operand.vmem [shape: f32[16,1], index: 2, kind: input, shape index: {}]
  %s3 = inlined_call_operand.vmem [shape: f32[16,1], index: 3, kind: input, shape index: {}]
  %s4 = inlined_call_operand.vmem [shape: f32[16,1], index: 4, kind: input, shape index: {}]
  %s5 = inlined_call_operand.vmem [shape: bf16[16,512], index: 5, kind: output, shape index: {0}]
  %s6 = inlined_call_operand.vmem [shape: f32[16,512], index: 6, kind: output, shape index: {1}]
  %7 = xla_tuple %s5, %s6
  %s8 = sld [smem:[#allocation0]]
  $region38: #{breast_cnn_forward.18} parent=0
    _
  %s10 = ssub.s32 1, %s8
  %s11 = scalar_select 0, %s10, %s8
  // Predicated region
  $region2: #{breast_cnn_forward.18} parent=0 // pred_check
    _
  $region3: #{breast_cnn_forward.18} parent=0 // pred_check_branch
    %13 = sbr.rel (0) target = $region5
  $region4: #{breast_cnn_forward.18} parent=0 // pred_region
    _
  $region5: #{breast_cnn_forward.18} parent=0 // pred_fallthru
    _
  // Predicated region
  $region6: #{breast_cnn_forward.18} parent=0 // pred_check
    _
  $region7: #{breast_cnn_forward.18} parent=0 // pred_check_branch
    %15 = sbr.rel (0) target = $region9
  $region8: #{breast_cnn_forward.18} parent=0 // pred_region
    _
  $region9: #{breast_cnn_forward.18} parent=0 // pred_fallthru
    _
  // Predicated region
  $region10: #{breast_cnn_forward.18} parent=0 // pred_check
    _
  $region11: #{breast_cnn_forward.18} parent=0 // pred_check_branch
    %17 = sbr.rel (0) target = $region13
  $region12: #{breast_cnn_forward.18} parent=0 // pred_region
    _
  $region13: #{breast_cnn_forward.18} parent=0 // pred_fallthru
    _
  // Predicated region
  $region14: #{breast_cnn_forward.18} parent=0 // pred_check
    _
  $region15: #{breast_cnn_forward.18} parent=0 // pred_check_branch
    %19 = sbr.rel (0) target = $region17
  $region16: #{breast_cnn_forward.18} parent=0 // pred_region
    _
  $region17: #{breast_cnn_forward.18} parent=0 // pred_fallthru
    _
  // Predicated region
  $region18: #{breast_cnn_forward.18} parent=0 // pred_check
    _
  $region19: #{breast_cnn_forward.18} parent=0 // pred_check_branch
    %21 = sbr.rel (0) target = $region21
  $region20: #{breast_cnn_forward.18} parent=0 // pred_region
    _
  $region21: #{breast_cnn_forward.18} parent=0 // pred_fallthru
    _
  %v23 = vld [vmem:[%s0] sm:$0xff]
  %v24 = vld [vmem:[%s0 + $0x8] sm:$0xff]
  %v25 = vld [vmem:[%s1] sm:$0xff]
  %v26 = vld [vmem:[%s1 + $0x8] sm:$0xff]
  %v27 = vld [vmem:[%s1 + $0x10] sm:$0xff]
  %v28 = vld [vmem:[%s1 + $0x18] sm:$0xff]
  %v29 = vld [vmem:[%s1 + $0x20] sm:$0xff]
  %v30 = vld [vmem:[%s1 + $0x28] sm:$0xff]
  %v31 = vld [vmem:[%s1 + $0x30] sm:$0xff]
  %v32 = vld [vmem:[%s1 + $0x38] sm:$0xff]
  %v33 = vld [vmem:[%s1 + $0x40] sm:$0xff]
  %v34 = vld [vmem:[%s1 + $0x48] sm:$0xff]
  %v35 = vld [vmem:[%s1 + $0x50] sm:$0xff]
  %v36 = vld [vmem:[%s1 + $0x58] sm:$0xff]
  %v37 = vld [vmem:[%s1 + $0x60] sm:$0xff]
  %v38 = vld [vmem:[%s1 + $0x68] sm:$0xff]
  %v39 = vld [vmem:[%s1 + $0x70] sm:$0xff]
  %v40 = vld [vmem:[%s1 + $0x78] sm:$0xff]
  %v41 = vld [vmem:[%s1 + $0x80] sm:$0xff]
  %v42 = vld [vmem:[%s1 + $0x88] sm:$0xff]
  %v43 = vld [vmem:[%s1 + $0x90] sm:$0xff]
  %v44 = vld [vmem:[%s1 + $0x98] sm:$0xff]
  %v45 = vld [vmem:[%s1 + $0xa0] sm:$0xff]
  %v46 = vld [vmem:[%s1 + $0xa8] sm:$0xff]
  %v47 = vld [vmem:[%s1 + $0xb0] sm:$0xff]
  %v48 = vld [vmem:[%s1 + $0xb8] sm:$0xff]
  %v49 = vld [vmem:[%s1 + $0xc0] sm:$0xff]
  %v50 = vld [vmem:[%s1 + $0xc8] sm:$0xff]
  %v51 = vld [vmem:[%s1 + $0xd0] sm:$0xff]
  %v52 = vld [vmem:[%s1 + $0xd8] sm:$0xff]
  %v53 = vld [vmem:[%s1 + $0xe0] sm:$0xff]
  %v54 = vld [vmem:[%s1 + $0xe8] sm:$0xff]
  %v55 = vld [vmem:[%s1 + $0xf0] sm:$0xff]
  %v56 = vld [vmem:[%s1 + $0xf8] sm:$0xff]
  %v57 = vld [vmem:[%s1 + $0x100] sm:$0xff]
  %v58 = vld [vmem:[%s1 + $0x108] sm:$0xff]
  %v59 = vld [vmem:[%s1 + $0x110] sm:$0xff]
  %v60 = vld [vmem:[%s1 + $0x118] sm:$0xff]
  %v63 = vunpack.c.l.b16 %v23
  %v64 = vunpack.c.h.b16 %v23
  %v65 = vunpack.c.l.b16 %v24
  %v66 = vunpack.c.h.b16 %v24
  %v67 = vpack.c.b16 %v65, %v63
  %v68 = vpack.c.b16 %v66, %v64
  %v106 = vunpack.c.l.b16 %v25
  %v107 = vunpack.c.h.b16 %v25
  %v108 = vunpack.c.l.b16 %v26
  %v109 = vunpack.c.h.b16 %v26
  %v110 = vunpack.c.l.b16 %v27
  %v111 = vunpack.c.h.b16 %v27
  %v112 = vunpack.c.l.b16 %v28
  %v113 = vunpack.c.h.b16 %v28
  %v114 = vunpack.c.l.b16 %v29
  %v115 = vunpack.c.h.b16 %v29
  %v116 = vunpack.c.l.b16 %v30
  %v117 = vunpack.c.h.b16 %v30
  %v118 = vunpack.c.l.b16 %v31
  %v119 = vunpack.c.h.b16 %v31
  %v120 = vunpack.c.l.b16 %v32
  %v121 = vunpack.c.h.b16 %v32
  %v122 = vunpack.c.l.b16 %v33
  %v123 = vunpack.c.h.b16 %v33
  %v124 = vunpack.c.l.b16 %v34
  %v125 = vunpack.c.h.b16 %v34
  %v126 = vunpack.c.l.b16 %v35
  %v127 = vunpack.c.h.b16 %v35
  %v128 = vunpack.c.l.b16 %v36
  %v129 = vunpack.c.h.b16 %v36
  %v130 = vunpack.c.l.b16 %v37
  %v131 = vunpack.c.h.b16 %v37
  %v132 = vunpack.c.l.b16 %v38
  %v133 = vunpack.c.h.b16 %v38
  %v134 = vunpack.c.l.b16 %v39
  %v135 = vunpack.c.h.b16 %v39
  %v136 = vunpack.c.l.b16 %v40
  %v137 = vunpack.c.h.b16 %v40
  %v138 = vunpack.c.l.b16 %v41
  %v139 = vunpack.c.h.b16 %v41
  %v140 = vunpack.c.l.b16 %v42
  %v141 = vunpack.c.h.b16 %v42
  %v142 = vunpack.c.l.b16 %v43
  %v143 = vunpack.c.h.b16 %v43
  %v144 = vunpack.c.l.b16 %v44
  %v145 = vunpack.c.h.b16 %v44
  %v146 = vunpack.c.l.b16 %v45
  %v147 = vunpack.c.h.b16 %v45
  %v148 = vunpack.c.l.b16 %v46
  %v149 = vunpack.c.h.b16 %v46
  %v150 = vunpack.c.l.b16 %v47
  %v151 = vunpack.c.h.b16 %v47
  %v152 = vunpack.c.l.b16 %v48
  %v153 = vunpack.c.h.b16 %v48
  %v154 = vunpack.c.l.b16 %v49
  %v155 = vunpack.c.h.b16 %v49
  %v156 = vunpack.c.l.b16 %v50
  %v157 = vunpack.c.h.b16 %v50
  %v158 = vunpack.c.l.b16 %v51
  %v159 = vunpack.c.h.b16 %v51
  %v160 = vunpack.c.l.b16 %v52
  %v161 = vunpack.c.h.b16 %v52
  %v162 = vunpack.c.l.b16 %v53
  %v163 = vunpack.c.h.b16 %v53
  %v164 = vunpack.c.l.b16 %v54
  %v165 = vunpack.c.h.b16 %v54
  %v166 = vunpack.c.l.b16 %v55
  %v167 = vunpack.c.h.b16 %v55
  %v168 = vunpack.c.l.b16 %v56
  %v169 = vunpack.c.h.b16 %v56
  %v170 = vunpack.c.l.b16 %v57
  %v171 = vunpack.c.h.b16 %v57
  %v172 = vunpack.c.l.b16 %v58
  %v173 = vunpack.c.h.b16 %v58
  %v174 = vunpack.c.l.b16 %v59
  %v175 = vunpack.c.h.b16 %v59
  %v176 = vunpack.c.l.b16 %v60
  %v177 = vunpack.c.h.b16 %v60
  %v178 = vpack.c.b16 %v110, %v106
  %v179 = vpack.c.b16 %v111, %v107
  %v180 = vpack.c.b16 %v112, %v108
  %v181 = vpack.c.b16 %v113, %v109
  %v182 = vpack.c.b16 %v118, %v114
  %v183 = vpack.c.b16 %v119, %v115
  %v184 = vpack.c.b16 %v120, %v116
  %v185 = vpack.c.b16 %v121, %v117
  %v186 = vpack.c.b16 %v126, %v122
  %v187 = vpack.c.b16 %v127, %v123
  %v188 = vpack.c.b16 %v128, %v124
  %v189 = vpack.c.b16 %v129, %v125
  %v190 = vpack.c.b16 %v134, %v130
  %v191 = vpack.c.b16 %v135, %v131
  %v192 = vpack.c.b16 %v136, %v132
  %v193 = vpack.c.b16 %v137, %v133
  %v194 = vpack.c.b16 %v142, %v138
  %v195 = vpack.c.b16 %v143, %v139
  %v196 = vpack.c.b16 %v144, %v140
  %v197 = vpack.c.b16 %v145, %v141
  %v198 = vpack.c.b16 %v150, %v146
  %v199 = vpack.c.b16 %v151, %v147
  %v200 = vpack.c.b16 %v152, %v148
  %v201 = vpack.c.b16 %v153, %v149
  %v202 = vpack.c.b16 %v158, %v154
  %v203 = vpack.c.b16 %v159, %v155
  %v204 = vpack.c.b16 %v160, %v156
  %v205 = vpack.c.b16 %v161, %v157
  %v206 = vpack.c.b16 %v166, %v162
  %v207 = vpack.c.b16 %v167, %v163
  %v208 = vpack.c.b16 %v168, %v164
  %v209 = vpack.c.b16 %v169, %v165
  %v210 = vpack.c.b16 %v174, %v170
  %v211 = vpack.c.b16 %v175, %v171
  %v212 = vpack.c.b16 %v176, %v172
  %v213 = vpack.c.b16 %v177, %v173
  %vm250 = vcmask 130048
  %v252 = vsel %vm250, %v68, 0
  %254 = vmatprep.subr.bf16.mxu0 %v207
  %255 = vmatpush1.bf16.msra.mxu0 %v206
  %256 = vmatprep.subr.bf16.mxu0 %v203
  %257 = vmatpush1.bf16.msra.mxu0 %v202
  %258 = vmatprep.subr.bf16.mxu0 %v199
  %259 = vmatpush1.bf16.msra.mxu0 %v198
  %260 = vmatprep.subr.bf16.mxu0 %v195
  %261 = vmatpush1.bf16.msra.mxu0 %v194
  %262 = vmatprep.subr.bf16.mxu0 %v191
  %263 = vmatpush1.bf16.msra.mxu0 %v190
  %264 = vmatprep.subr.bf16.mxu0 %v187
  %265 = vmatpush1.bf16.msra.mxu0 %v186
  %266 = vmatprep.subr.bf16.mxu0 %v183
  %267 = vmatpush1.bf16.msra.mxu0 %v182
  %268 = vmatprep.subr.bf16.mxu0 %v179
  %269 = vmatpush1.bf16.msra.mxu0 %v178
  %270 = vmatprep.subr.bf16.mxu0 0
  %271 = vmatpush2.bf16.msra.mxu0 0
  %272 = vmatprep.subr.bf16.mxu0 0
  %273 = vmatpush2.bf16.msra.mxu0 0
  %274 = vmatprep.subr.bf16.mxu0 0
  %275 = vmatpush2.bf16.msra.mxu0 0
  %276 = vmatprep.subr.bf16.mxu0 0
  %277 = vmatpush2.bf16.msra.mxu0 0
  %278 = vmatprep.subr.bf16.mxu0 0
  %279 = vmatpush2.bf16.msra.mxu0 0
  %280 = vmatprep.subr.bf16.mxu0 0
  %281 = vmatpush2.bf16.msra.mxu0 0
  %282 = vmatprep.subr.bf16.mxu0 0
  %283 = vmatpush2.bf16.msra.mxu0 0
  %284 = vmatprep.subr.bf16.mxu0 %v211
  %285 = vmatpush2.bf16.msra.mxu0 %v210
  %286 = vmatprep.mubr.bf16.mxu0 %v252
  %287 = vmatmul.mubr.bf16.gmra.mxu0 %v67
  %v288 = vpop.f32.mrf.mxu0
  %v289 = vadd.f32 0.0, %v288
  %v290 = vpop.f32.mrf.mxu0
  %v291 = vadd.f32 0.0, %v290
  %v292 = vpop.f32.mrf.mxu0
  %v293 = vadd.f32 0.0, %v292
  %v294 = vpop.f32.mrf.mxu0
  %v295 = vadd.f32 0.0, %v294
  %296 = vdwg.mxu0
  %297 = vmatprep.subr.bf16.mxu0 %v209
  %298 = vmatpush1.bf16.msra.mxu0 %v208
  %299 = vmatprep.subr.bf16.mxu0 %v205
  %300 = vmatpush1.bf16.msra.mxu0 %v204
  %301 = vmatprep.subr.bf16.mxu0 %v201
  %302 = vmatpush1.bf16.msra.mxu0 %v200
  %303 = vmatprep.subr.bf16.mxu0 %v197
  %304 = vmatpush1.bf16.msra.mxu0 %v196
  %305 = vmatprep.subr.bf16.mxu0 %v193
  %306 = vmatpush1.bf16.msra.mxu0 %v192
  %307 = vmatprep.subr.bf16.mxu0 %v189
  %308 = vmatpush1.bf16.msra.mxu0 %v188
  %309 = vmatprep.subr.bf16.mxu0 %v185
  %310 = vmatpush1.bf16.msra.mxu0 %v184
  %311 = vmatprep.subr.bf16.mxu0 %v181
  %312 = vmatpush1.bf16.msra.mxu0 %v180
  %313 = vmatprep.subr.bf16.mxu0 0
  %314 = vmatpush2.bf16.msra.mxu0 0
  %315 = vmatprep.subr.bf16.mxu0 0
  %316 = vmatpush2.bf16.msra.mxu0 0
  %317 = vmatprep.subr.bf16.mxu0 0
  %318 = vmatpush2.bf16.msra.mxu0 0
  %319 = vmatprep.subr.bf16.mxu0 0
  %320 = vmatpush2.bf16.msra.mxu0 0
  %321 = vmatprep.subr.bf16.mxu0 0
  %322 = vmatpush2.bf16.msra.mxu0 0
  %323 = vmatprep.subr.bf16.mxu0 0
  %324 = vmatpush2.bf16.msra.mxu0 0
  %325 = vmatprep.subr.bf16.mxu0 0
  %326 = vmatpush2.bf16.msra.mxu0 0
  %327 = vmatprep.subr.bf16.mxu0 %v213
  %328 = vmatpush2.bf16.msra.mxu0 %v212
  %329 = vmatprep.mubr.bf16.mxu0 %v252
  %330 = vmatmul.mubr.bf16.gmra.mxu0 %v67
  %v331 = vpop.f32.mrf.mxu0
  %v332 = vadd.f32 0.0, %v331
  %v333 = vpop.f32.mrf.mxu0
  %v334 = vadd.f32 0.0, %v333
  %v335 = vpop.f32.mrf.mxu0
  %v336 = vadd.f32 0.0, %v335
  %v337 = vpop.f32.mrf.mxu0
  %v338 = vadd.f32 0.0, %v337
  %339 = vdwg.mxu0
  %v340 = vld [vmem:[%s4] sm:$0xff]
  %v341 = vld [vmem:[%s4 + $0x8] sm:$0xff]
  %343 = vset.pattern.permute.xlu0 0
  %344 = vperm.xlu0 %343, %v340
  %v345 = vpop.permute.xlu0 %344
  %348 = vset.pattern.permute.xlu0 0
  %349 = vperm.xlu0 %348, %v341
  %v350 = vpop.permute.xlu0 %349
  %v352 = vadd.f32 %v289, %v345
  %v353 = vadd.f32 %v291, %v345
  %v354 = vadd.f32 %v332, %v345
  %v355 = vadd.f32 %v334, %v345
  %v356 = vadd.f32 %v293, %v350
  %v357 = vadd.f32 %v295, %v350
  %v358 = vadd.f32 %v336, %v350
  %v359 = vadd.f32 %v338, %v350
  %360 = vst [vmem:[%s6] sm:$0xff] %v352
  %361 = vst [vmem:[%s6 + $0x8] sm:$0xff] %v353
  %362 = vst [vmem:[%s6 + $0x10] sm:$0xff] %v354
  %363 = vst [vmem:[%s6 + $0x18] sm:$0xff] %v355
  %364 = vst [vmem:[%s6 + $0x20] sm:$0xff] %v356
  %365 = vst [vmem:[%s6 + $0x28] sm:$0xff] %v357
  %366 = vst [vmem:[%s6 + $0x30] sm:$0xff] %v358
  %367 = vst [vmem:[%s6 + $0x38] sm:$0xff] %v359
  %v368 = vld [vmem:[%s2] sm:$0xff]
  %v369 = vld [vmem:[%s2 + $0x8] sm:$0xff]
  %371 = vset.pattern.permute.xlu0 0
  %372 = vperm.xlu0 %371, %v368
  %v373 = vpop.permute.xlu0 %372
  %376 = vset.pattern.permute.xlu0 0
  %377 = vperm.xlu0 %376, %v369
  %v378 = vpop.permute.xlu0 %377
  %v380 = vmul.f32 %v289, %v373
  %v381 = vmul.f32 %v291, %v373
  %v382 = vmul.f32 %v332, %v373
  %v383 = vmul.f32 %v334, %v373
  %v384 = vmul.f32 %v293, %v378
  %v385 = vmul.f32 %v295, %v378
  %v386 = vmul.f32 %v336, %v378
  %v387 = vmul.f32 %v338, %v378
  %v388 = vld [vmem:[%s3] sm:$0xff]
  %v389 = vld [vmem:[%s3 + $0x8] sm:$0xff]
  %391 = vset.pattern.permute.xlu0 0
  %392 = vperm.xlu0 %391, %v388
  %v393 = vpop.permute.xlu0 %392
  %396 = vset.pattern.permute.xlu0 0
  %397 = vperm.xlu0 %396, %v389
  %v398 = vpop.permute.xlu0 %397
  %v400 = vadd.f32 %v380, %v393
  %v401 = vadd.f32 %v381, %v393
  %v402 = vadd.f32 %v382, %v393
  %v403 = vadd.f32 %v383, %v393
  %v404 = vadd.f32 %v384, %v398
  %v405 = vadd.f32 %v385, %v398
  %v406 = vadd.f32 %v386, %v398
  %v407 = vadd.f32 %v387, %v398
  %vm408 = vcmp.gt.f32.partialorder %v400, 0.0
  %vm409 = vcmp.gt.f32.partialorder %v401, 0.0
  %vm410 = vcmp.gt.f32.partialorder %v402, 0.0
  %vm411 = vcmp.gt.f32.partialorder %v403, 0.0
  %vm412 = vcmp.gt.f32.partialorder %v404, 0.0
  %vm413 = vcmp.gt.f32.partialorder %v405, 0.0
  %vm414 = vcmp.gt.f32.partialorder %v406, 0.0
  %vm415 = vcmp.gt.f32.partialorder %v407, 0.0
  %v416 = vmul.f32 %v400, 0.01
  %v417 = vmul.f32 %v401, 0.01
  %v418 = vmul.f32 %v402, 0.01
  %v419 = vmul.f32 %v403, 0.01
  %v420 = vmul.f32 %v404, 0.01
  %v421 = vmul.f32 %v405, 0.01
  %v422 = vmul.f32 %v406, 0.01
  %v423 = vmul.f32 %v407, 0.01
  %v424 = vsel %vm408, %v400, %v416
  %v425 = vsel %vm409, %v401, %v417
  %v426 = vsel %vm410, %v402, %v418
  %v427 = vsel %vm411, %v403, %v419
  %v428 = vsel %vm412, %v404, %v420
  %v429 = vsel %vm413, %v405, %v421
  %v430 = vsel %vm414, %v406, %v422
  %v431 = vsel %vm415, %v407, %v423
  %v432 = vpack.c.bf16 %v428, %v424
  %v433 = vpack.c.bf16 %v429, %v425
  %v434 = vpack.c.bf16 %v430, %v426
  %v435 = vpack.c.bf16 %v431, %v427
  %v440 = vunpack.c.l.b16 %v432
  %v441 = vunpack.c.l.b16 %v433
  %v442 = vunpack.c.l.b16 %v434
  %v443 = vunpack.c.l.b16 %v435
  %v444 = vunpack.c.h.b16 %v432
  %v445 = vunpack.c.h.b16 %v433
  %v446 = vunpack.c.h.b16 %v434
  %v447 = vunpack.c.h.b16 %v435
  %v448 = vpack.c.b16 %v441, %v440
  %v449 = vpack.c.b16 %v443, %v442
  %v450 = vpack.c.b16 %v445, %v444
  %v451 = vpack.c.b16 %v447, %v446
  %456 = vst [vmem:[%s5] sm:$0xff] %v448
  %457 = vst [vmem:[%s5 + $0x8] sm:$0xff] %v449
  %458 = vst [vmem:[%s5 + $0x10] sm:$0xff] %v450
  %459 = vst [vmem:[%s5 + $0x18] sm:$0xff] %v451
  // Predicated region
  $region22: #{breast_cnn_forward.18} parent=0 // pred_check
    _
  $region23: #{breast_cnn_forward.18} parent=0 // pred_check_branch
    %461 = sbr.rel (0) target = $region25
  $region24: #{breast_cnn_forward.18} parent=0 // pred_region
    _
  $region25: #{breast_cnn_forward.18} parent=0 // pred_fallthru
    _
  // Predicated region
  $region26: #{breast_cnn_forward.18} parent=0 // pred_check
    _
  $region27: #{breast_cnn_forward.18} parent=0 // pred_check_branch
    %463 = sbr.rel (0) target = $region29
  $region28: #{breast_cnn_forward.18} parent=0 // pred_region
    _
  $region29: #{breast_cnn_forward.18} parent=0 // pred_fallthru
    _
  // Predicated region
  $region30: #{breast_cnn_forward.18} parent=0 // pred_check
    _
  $region31: #{breast_cnn_forward.18} parent=0 // pred_check_branch
    %465 = sbr.rel (0) target = $region33
  $region32: #{breast_cnn_forward.18} parent=0 // pred_region
    _
  $region33: #{breast_cnn_forward.18} parent=0 // pred_fallthru
    _
  // Predicated region
  $region34: #{breast_cnn_forward.18} parent=0 // pred_check
    _
  $region35: #{breast_cnn_forward.18} parent=0 // pred_check_branch
    %467 = sbr.rel (0) target = $region37
  $region36: #{breast_cnn_forward.18} parent=0 // pred_region
    _
  $region37: #{breast_cnn_forward.18} parent=0 // pred_fallthru
    _

// kernel: breast_cnn_forward.20
$region0: #{breast_cnn_forward.20}
  #allocation0 [shape = 'u32[]', space=smem, size = 0x4, offset = 0x4, fixed_abs, tag = 'smem constant byte address 0x4 - core index']
  #allocation1 [shape = 'u32[144,128]{1,0:T(1,128)}', space=vmem, size = 0x12000, scoped, tag = 'internal scratch']
  %s0 = inlined_call_operand.vmem [shape: bf16[64,144], index: 0, kind: input, shape index: {}]
  %s1 = inlined_call_operand.vmem [shape: bf16[144,128], index: 1, kind: input, shape index: {}]
  %s2 = inlined_call_operand.vmem [shape: f32[64,1], index: 2, kind: input, shape index: {}]
  %s3 = inlined_call_operand.vmem [shape: f32[64,1], index: 3, kind: input, shape index: {}]
  %s4 = inlined_call_operand.vmem [shape: f32[64,128], index: 4, kind: output, shape index: {}]
  %s5 = sld [smem:[#allocation0]]
  $region26: #{breast_cnn_forward.20} parent=0
    _
  %s7 = ssub.s32 1, %s5
  %s8 = scalar_select 0, %s7, %s5
  // Predicated region
  $region2: #{breast_cnn_forward.20} parent=0 // pred_check
    _
  $region3: #{breast_cnn_forward.20} parent=0 // pred_check_branch
    %10 = sbr.rel (0) target = $region5
  $region4: #{breast_cnn_forward.20} parent=0 // pred_region
    _
  $region5: #{breast_cnn_forward.20} parent=0 // pred_fallthru
    _
  // Predicated region
  $region6: #{breast_cnn_forward.20} parent=0 // pred_check
    _
  $region7: #{breast_cnn_forward.20} parent=0 // pred_check_branch
    %12 = sbr.rel (0) target = $region9
  $region8: #{breast_cnn_forward.20} parent=0 // pred_region
    _
  $region9: #{breast_cnn_forward.20} parent=0 // pred_fallthru
    _
  // Predicated region
  $region10: #{breast_cnn_forward.20} parent=0 // pred_check
    _
  $region11: #{breast_cnn_forward.20} parent=0 // pred_check_branch
    %14 = sbr.rel (0) target = $region13
  $region12: #{breast_cnn_forward.20} parent=0 // pred_region
    _
  $region13: #{breast_cnn_forward.20} parent=0 // pred_fallthru
    _
  // Predicated region
  $region14: #{breast_cnn_forward.20} parent=0 // pred_check
    _
  $region15: #{breast_cnn_forward.20} parent=0 // pred_check_branch
    %16 = sbr.rel (0) target = $region17
  $region16: #{breast_cnn_forward.20} parent=0 // pred_region
    _
  $region17: #{breast_cnn_forward.20} parent=0 // pred_fallthru
    _
  %v18 = vld [vmem:[%s0] sm:$0xff]
  %v19 = vld [vmem:[%s0 + $0x8] sm:$0xff]
  %v20 = vld [vmem:[%s0 + $0x10] sm:$0xff]
  %v21 = vld [vmem:[%s0 + $0x18] sm:$0xff]
  %v22 = vld [vmem:[%s0 + $0x20] sm:$0xff]
  %v23 = vld [vmem:[%s0 + $0x28] sm:$0xff]
  %v24 = vld [vmem:[%s0 + $0x30] sm:$0xff]
  %v25 = vld [vmem:[%s0 + $0x38] sm:$0xff]
  %v26 = vld [vmem:[%s1] sm:$0xf]
  %v27 = vld [vmem:[%s1 + $0x4] sm:$0xf]
  %v28 = vld [vmem:[%s1 + $0x8] sm:$0xf]
  %v29 = vld [vmem:[%s1 + $0xc] sm:$0xf]
  %v30 = vld [vmem:[%s1 + $0x10] sm:$0xf]
  %v31 = vld [vmem:[%s1 + $0x14] sm:$0xf]
  %v32 = vld [vmem:[%s1 + $0x18] sm:$0xf]
  %v33 = vld [vmem:[%s1 + $0x1c] sm:$0xf]
  %v34 = vld [vmem:[%s1 + $0x20] sm:$0xf]
  %v35 = vld [vmem:[%s1 + $0x24] sm:$0xf]
  %v36 = vld [vmem:[%s1 + $0x28] sm:$0xf]
  %v37 = vld [vmem:[%s1 + $0x2c] sm:$0xf]
  %v38 = vld [vmem:[%s1 + $0x30] sm:$0xf]
  %v39 = vld [vmem:[%s1 + $0x34] sm:$0xf]
  %v40 = vld [vmem:[%s1 + $0x38] sm:$0xf]
  %v41 = vld [vmem:[%s1 + $0x3c] sm:$0xf]
  %v42 = vld [vmem:[%s1 + $0x40] sm:$0xf]
  %v43 = vld [vmem:[%s1 + $0x44] sm:$0xf]
  %v52 = vunpack.c.l.b16 %v18
  %v53 = vunpack.c.h.b16 %v18
  %v54 = vunpack.c.l.b16 %v19
  %v55 = vunpack.c.h.b16 %v19
  %v56 = vunpack.c.l.b16 %v20
  %v57 = vunpack.c.h.b16 %v20
  %v58 = vunpack.c.l.b16 %v21
  %v59 = vunpack.c.h.b16 %v21
  %v60 = vunpack.c.l.b16 %v22
  %v61 = vunpack.c.h.b16 %v22
  %v62 = vunpack.c.l.b16 %v23
  %v63 = vunpack.c.h.b16 %v23
  %v64 = vunpack.c.l.b16 %v24
  %v65 = vunpack.c.h.b16 %v24
  %v66 = vunpack.c.l.b16 %v25
  %v67 = vunpack.c.h.b16 %v25
  %v68 = vpack.c.b16 %v54, %v52
  %v69 = vpack.c.b16 %v55, %v53
  %v70 = vpack.c.b16 %v58, %v56
  %v71 = vpack.c.b16 %v59, %v57
  %v72 = vpack.c.b16 %v62, %v60
  %v73 = vpack.c.b16 %v63, %v61
  %v74 = vpack.c.b16 %v66, %v64
  %v75 = vpack.c.b16 %v67, %v65
  %v98 = vunpack.c.l.b16 %v26
  %v99 = vunpack.c.l.b16 %v27
  %v100 = vunpack.c.l.b16 %v28
  %v101 = vunpack.c.l.b16 %v29
  %v102 = vunpack.c.l.b16 %v30
  %v103 = vunpack.c.l.b16 %v31
  %v104 = vunpack.c.l.b16 %v32
  %v105 = vunpack.c.l.b16 %v33
  %v106 = vunpack.c.l.b16 %v34
  %v107 = vunpack.c.l.b16 %v35
  %v108 = vunpack.c.l.b16 %v36
  %v109 = vunpack.c.l.b16 %v37
  %v110 = vunpack.c.l.b16 %v38
  %v111 = vunpack.c.l.b16 %v39
  %v112 = vunpack.c.l.b16 %v40
  %v113 = vunpack.c.l.b16 %v41
  %v114 = vunpack.c.l.b16 %v42
  %v115 = vunpack.c.l.b16 %v43
  %v116 = vpack.c.b16 %v99, %v98
  %v117 = vpack.c.b16 %v101, %v100
  %v118 = vpack.c.b16 %v103, %v102
  %v119 = vpack.c.b16 %v105, %v104
  %v120 = vpack.c.b16 %v107, %v106
  %v121 = vpack.c.b16 %v109, %v108
  %v122 = vpack.c.b16 %v111, %v110
  %v123 = vpack.c.b16 %v113, %v112
  %v124 = vpack.c.b16 %v115, %v114
  %vm134 = vcmask 130048
  %v136 = vsel %vm134, %v69, 0
  %v139 = vsel %vm134, %v71, 0
  %v142 = vsel %vm134, %v73, 0
  %v145 = vsel %vm134, %v75, 0
  %147 = vmatprep.subr.bf16.mxu0 0
  %148 = vmatpush1.bf16.msra.mxu0 %v123
  %149 = vmatprep.subr.bf16.mxu0 0
  %150 = vmatpush1.bf16.msra.mxu0 %v122
  %151 = vmatprep.subr.bf16.mxu0 0
  %152 = vmatpush1.bf16.msra.mxu0 %v121
  %153 = vmatprep.subr.bf16.mxu0 0
  %154 = vmatpush1.bf16.msra.mxu0 %v120
  %155 = vmatprep.subr.bf16.mxu0 0
  %156 = vmatpush1.bf16.msra.mxu0 %v119
  %157 = vmatprep.subr.bf16.mxu0 0
  %158 = vmatpush1.bf16.msra.mxu0 %v118
  %159 = vmatprep.subr.bf16.mxu0 0
  %160 = vmatpush1.bf16.msra.mxu0 %v117
  %161 = vmatprep.subr.bf16.mxu0 0
  %162 = vmatpush1.bf16.msra.mxu0 %v116
  %163 = vmatprep.subr.bf16.mxu0 0
  %164 = vmatpush2.bf16.msra.mxu0 0
  %165 = vmatprep.subr.bf16.mxu0 0
  %166 = vmatpush2.bf16.msra.mxu0 0
  %167 = vmatprep.subr.bf16.mxu0 0
  %168 = vmatpush2.bf16.msra.mxu0 0
  %169 = vmatprep.subr.bf16.mxu0 0
  %170 = vmatpush2.bf16.msra.mxu0 0
  %171 = vmatprep.subr.bf16.mxu0 0
  %172 = vmatpush2.bf16.msra.mxu0 0
  %173 = vmatprep.subr.bf16.mxu0 0
  %174 = vmatpush2.bf16.msra.mxu0 0
  %175 = vmatprep.subr.bf16.mxu0 0
  %176 = vmatpush2.bf16.msra.mxu0 0
  %177 = vmatprep.subr.bf16.mxu0 0
  %178 = vmatpush2.bf16.msra.mxu0 %v124
  %179 = vmatprep.mubr.bf16.mxu0 %v136
  %180 = vmatmul.mubr.bf16.gmra.mxu0 %v68
  %v181 = vpop.f32.mrf.mxu0
  %v182 = vadd.f32 0.0, %v181
  %v183 = vpop.f32.mrf.mxu0
  %v184 = vpop.f32.mrf.mxu0
  %v185 = vadd.f32 0.0, %v184
  %v186 = vpop.f32.mrf.mxu0
  %187 = vmatprep.mubr.bf16.mxu0 %v139
  %188 = vmatmul.mubr.bf16.gmra.mxu0 %v70
  %v189 = vpop.f32.mrf.mxu0
  %v190 = vadd.f32 0.0, %v189
  %v191 = vpop.f32.mrf.mxu0
  %v192 = vpop.f32.mrf.mxu0
  %v193 = vadd.f32 0.0, %v192
  %v194 = vpop.f32.mrf.mxu0
  %195 = vmatprep.mubr.bf16.mxu0 %v142
  %196 = vmatmul.mubr.bf16.gmra.mxu0 %v72
  %v197 = vpop.f32.mrf.mxu0
  %v198 = vadd.f32 0.0, %v197
  %v199 = vpop.f32.mrf.mxu0
  %v200 = vpop.f32.mrf.mxu0
  %v201 = vadd.f32 0.0, %v200
  %v202 = vpop.f32.mrf.mxu0
  %203 = vmatprep.mubr.bf16.mxu0 %v145
  %204 = vmatmul.mubr.bf16.gmra.mxu0 %v74
  %v205 = vpop.f32.mrf.mxu0
  %v206 = vadd.f32 0.0, %v205
  %v207 = vpop.f32.mrf.mxu0
  %v208 = vpop.f32.mrf.mxu0
  %v209 = vadd.f32 0.0, %v208
  %v210 = vpop.f32.mrf.mxu0
  %211 = vdwg.mxu0
  %v212 = vld [vmem:[%s2] sm:$0xff]
  %v213 = vld [vmem:[%s2 + $0x8] sm:$0xff]
  %v214 = vld [vmem:[%s2 + $0x10] sm:$0xff]
  %v215 = vld [vmem:[%s2 + $0x18] sm:$0xff]
  %v216 = vld [vmem:[%s2 + $0x20] sm:$0xff]
  %v217 = vld [vmem:[%s2 + $0x28] sm:$0xff]
  %v218 = vld [vmem:[%s2 + $0x30] sm:$0xff]
  %v219 = vld [vmem:[%s2 + $0x38] sm:$0xff]
  %221 = vset.pattern.permute.xlu0 0
  %222 = vperm.xlu0 %221, %v212
  %v223 = vpop.permute.xlu0 %222
  %226 = vset.pattern.permute.xlu0 0
  %227 = vperm.xlu0 %226, %v213
  %v228 = vpop.permute.xlu0 %227
  %231 = vset.pattern.permute.xlu0 0
  %232 = vperm.xlu0 %231, %v214
  %v233 = vpop.permute.xlu0 %232
  %236 = vset.pattern.permute.xlu0 0
  %237 = vperm.xlu0 %236, %v215
  %v238 = vpop.permute.xlu0 %237
  %241 = vset.pattern.permute.xlu0 0
  %242 = vperm.xlu0 %241, %v216
  %v243 = vpop.permute.xlu0 %242
  %246 = vset.pattern.permute.xlu0 0
  %247 = vperm.xlu0 %246, %v217
  %v248 = vpop.permute.xlu0 %247
  %251 = vset.pattern.permute.xlu0 0
  %252 = vperm.xlu0 %251, %v218
  %v253 = vpop.permute.xlu0 %252
  %256 = vset.pattern.permute.xlu0 0
  %257 = vperm.xlu0 %256, %v219
  %v258 = vpop.permute.xlu0 %257
  %v260 = vmul.f32 %v182, %v223
  %v261 = vmul.f32 %v185, %v228
  %v262 = vmul.f32 %v190, %v233
  %v263 = vmul.f32 %v193, %v238
  %v264 = vmul.f32 %v198, %v243
  %v265 = vmul.f32 %v201, %v248
  %v266 = vmul.f32 %v206, %v253
  %v267 = vmul.f32 %v209, %v258
  %v268 = vld [vmem:[%s3] sm:$0xff]
  %v269 = vld [vmem:[%s3 + $0x8] sm:$0xff]
  %v270 = vld [vmem:[%s3 + $0x10] sm:$0xff]
  %v271 = vld [vmem:[%s3 + $0x18] sm:$0xff]
  %v272 = vld [vmem:[%s3 + $0x20] sm:$0xff]
  %v273 = vld [vmem:[%s3 + $0x28] sm:$0xff]
  %v274 = vld [vmem:[%s3 + $0x30] sm:$0xff]
  %v275 = vld [vmem:[%s3 + $0x38] sm:$0xff]
  %277 = vset.pattern.permute.xlu0 0
  %278 = vperm.xlu0 %277, %v268
  %v279 = vpop.permute.xlu0 %278
  %282 = vset.pattern.permute.xlu0 0
  %283 = vperm.xlu0 %282, %v269
  %v284 = vpop.permute.xlu0 %283
  %287 = vset.pattern.permute.xlu0 0
  %288 = vperm.xlu0 %287, %v270
  %v289 = vpop.permute.xlu0 %288
  %292 = vset.pattern.permute.xlu0 0
  %293 = vperm.xlu0 %292, %v271
  %v294 = vpop.permute.xlu0 %293
  %297 = vset.pattern.permute.xlu0 0
  %298 = vperm.xlu0 %297, %v272
  %v299 = vpop.permute.xlu0 %298
  %302 = vset.pattern.permute.xlu0 0
  %303 = vperm.xlu0 %302, %v273
  %v304 = vpop.permute.xlu0 %303
  %307 = vset.pattern.permute.xlu0 0
  %308 = vperm.xlu0 %307, %v274
  %v309 = vpop.permute.xlu0 %308
  %312 = vset.pattern.permute.xlu0 0
  %313 = vperm.xlu0 %312, %v275
  %v314 = vpop.permute.xlu0 %313
  %v316 = vadd.f32 %v260, %v279
  %v317 = vadd.f32 %v261, %v284
  %v318 = vadd.f32 %v262, %v289
  %v319 = vadd.f32 %v263, %v294
  %v320 = vadd.f32 %v264, %v299
  %v321 = vadd.f32 %v265, %v304
  %v322 = vadd.f32 %v266, %v309
  %v323 = vadd.f32 %v267, %v314
  %v324 = vlaneseq
  %v325 = vshrl.u32 %v324, 7
  %v326 = vadd.s32 %v325, 8
  %v327 = vadd.s32 %v325, 16
  %v328 = vadd.s32 %v325, 24
  %v329 = vadd.s32 %v325, 32
  %v330 = vadd.s32 %v325, 40
  %v331 = vadd.s32 %v325, 48
  %v332 = vadd.s32 %v325, 56
  %vm333 = vcmp.lt.s32.totalorder %v325, 32
  %vm334 = vcmp.lt.s32.totalorder %v326, 32
  %vm335 = vcmp.lt.s32.totalorder %v327, 32
  %vm336 = vcmp.lt.s32.totalorder %v328, 32
  %vm337 = vcmp.lt.s32.totalorder %v329, 32
  %vm338 = vcmp.lt.s32.totalorder %v330, 32
  %vm339 = vcmp.lt.s32.totalorder %v331, 32
  %vm340 = vcmp.lt.s32.totalorder %v332, 32
  %vm341 = vcmp.lt.f32.partialorder %v316, 0.0
  %vm342 = vcmp.lt.f32.partialorder %v317, 0.0
  %vm343 = vcmp.lt.f32.partialorder %v318, 0.0
  %vm344 = vcmp.lt.f32.partialorder %v319, 0.0
  %vm345 = vcmp.lt.f32.partialorder %v320, 0.0
  %vm346 = vcmp.lt.f32.partialorder %v321, 0.0
  %vm347 = vcmp.lt.f32.partialorder %v322, 0.0
  %vm348 = vcmp.lt.f32.partialorder %v323, 0.0
  %vm349 = vmand %vm333, %vm341
  %vm350 = vmand %vm334, %vm342
  %vm351 = vmand %vm335, %vm343
  %vm352 = vmand %vm336, %vm344
  %vm353 = vmand %vm337, %vm345
  %vm354 = vmand %vm338, %vm346
  %vm355 = vmand %vm339, %vm347
  %vm356 = vmand %vm340, %vm348
  %v357 = vmul.f32 %v316, 0.01
  %v358 = vmul.f32 %v317, 0.01
  %v359 = vmul.f32 %v318, 0.01
  %v360 = vmul.f32 %v319, 0.01
  %v361 = vmul.f32 %v320, 0.01
  %v362 = vmul.f32 %v321, 0.01
  %v363 = vmul.f32 %v322, 0.01
  %v364 = vmul.f32 %v323, 0.01
  %v365 = vsel %vm349, %v357, %v316
  %v366 = vsel %vm350, %v358, %v317
  %v367 = vsel %vm351, %v359, %v318
  %v368 = vsel %vm352, %v360, %v319
  %v369 = vsel %vm353, %v361, %v320
  %v370 = vsel %vm354, %v362, %v321
  %v371 = vsel %vm355, %v363, %v322
  %v372 = vsel %vm356, %v364, %v323
  %373 = vst [vmem:[%s4] sm:$0xff] %v365
  %374 = vst [vmem:[%s4 + $0x8] sm:$0xff] %v366
  %375 = vst [vmem:[%s4 + $0x10] sm:$0xff] %v367
  %376 = vst [vmem:[%s4 + $0x18] sm:$0xff] %v368
  %377 = vst [vmem:[%s4 + $0x20] sm:$0xff] %v369
  %378 = vst [vmem:[%s4 + $0x28] sm:$0xff] %v370
  %379 = vst [vmem:[%s4 + $0x30] sm:$0xff] %v371
  %380 = vst [vmem:[%s4 + $0x38] sm:$0xff] %v372
  // Predicated region
  $region18: #{breast_cnn_forward.20} parent=0 // pred_check
    _
  $region19: #{breast_cnn_forward.20} parent=0 // pred_check_branch
    %382 = sbr.rel (0) target = $region21
  $region20: #{breast_cnn_forward.20} parent=0 // pred_region
    _
  $region21: #{breast_cnn_forward.20} parent=0 // pred_fallthru
    _
  // Predicated region
  $region22: #{breast_cnn_forward.20} parent=0 // pred_check
    _
  $region23: #{breast_cnn_forward.20} parent=0 // pred_check_branch
    %384 = sbr.rel (0) target = $region25
  $region24: #{breast_cnn_forward.20} parent=0 // pred_region
    _
  $region25: #{breast_cnn_forward.20} parent=0 // pred_fallthru
    _

// kernel: breast_cnn_forward.21
$region0: #{breast_cnn_forward.21}
  #allocation0 [shape = 'u32[]', space=smem, size = 0x4, offset = 0x4, fixed_abs, tag = 'smem constant byte address 0x4 - core index']
  #allocation1 [shape = 'u32[144,128]{1,0:T(1,128)}', space=vmem, size = 0x12000, scoped, tag = 'internal scratch']
  %s0 = inlined_call_operand.vmem [shape: bf16[32,288], index: 0, kind: input, shape index: {}]
  %s1 = inlined_call_operand.vmem [shape: bf16[288,128], index: 1, kind: input, shape index: {}]
  %s2 = inlined_call_operand.vmem [shape: f32[32,1], index: 2, kind: input, shape index: {}]
  %s3 = inlined_call_operand.vmem [shape: f32[32,1], index: 3, kind: input, shape index: {}]
  %s4 = inlined_call_operand.vmem [shape: f32[32,128], index: 4, kind: input, shape index: {}]
  %s5 = inlined_call_operand.vmem [shape: bf16[32,128], index: 5, kind: output, shape index: {}]
  %s6 = sld [smem:[#allocation0]]
  $region30: #{breast_cnn_forward.21} parent=0
    _
  %s8 = ssub.s32 1, %s6
  %s9 = scalar_select 0, %s8, %s6
  // Predicated region
  $region2: #{breast_cnn_forward.21} parent=0 // pred_check
    _
  $region3: #{breast_cnn_forward.21} parent=0 // pred_check_branch
    %11 = sbr.rel (0) target = $region5
  $region4: #{breast_cnn_forward.21} parent=0 // pred_region
    _
  $region5: #{breast_cnn_forward.21} parent=0 // pred_fallthru
    _
  // Predicated region
  $region6: #{breast_cnn_forward.21} parent=0 // pred_check
    _
  $region7: #{breast_cnn_forward.21} parent=0 // pred_check_branch
    %13 = sbr.rel (0) target = $region9
  $region8: #{breast_cnn_forward.21} parent=0 // pred_region
    _
  $region9: #{breast_cnn_forward.21} parent=0 // pred_fallthru
    _
  // Predicated region
  $region10: #{breast_cnn_forward.21} parent=0 // pred_check
    _
  $region11: #{breast_cnn_forward.21} parent=0 // pred_check_branch
    %15 = sbr.rel (0) target = $region13
  $region12: #{breast_cnn_forward.21} parent=0 // pred_region
    _
  $region13: #{breast_cnn_forward.21} parent=0 // pred_fallthru
    _
  // Predicated region
  $region14: #{breast_cnn_forward.21} parent=0 // pred_check
    _
  $region15: #{breast_cnn_forward.21} parent=0 // pred_check_branch
    %17 = sbr.rel (0) target = $region17
  $region16: #{breast_cnn_forward.21} parent=0 // pred_region
    _
  $region17: #{breast_cnn_forward.21} parent=0 // pred_fallthru
    _
  // Predicated region
  $region18: #{breast_cnn_forward.21} parent=0 // pred_check
    _
  $region19: #{breast_cnn_forward.21} parent=0 // pred_check_branch
    %19 = sbr.rel (0) target = $region21
  $region20: #{breast_cnn_forward.21} parent=0 // pred_region
    _
  $region21: #{breast_cnn_forward.21} parent=0 // pred_fallthru
    _
  %v21 = vld [vmem:[%s0] sm:$0xff]
  %v22 = vld [vmem:[%s0 + $0x8] sm:$0xf]
  %v23 = vld [vmem:[%s0 + $0xc] sm:$0xff]
  %v24 = vld [vmem:[%s0 + $0x14] sm:$0xf]
  %v25 = vld [vmem:[%s0 + $0x18] sm:$0xff]
  %v26 = vld [vmem:[%s0 + $0x20] sm:$0xf]
  %v27 = vld [vmem:[%s0 + $0x24] sm:$0xff]
  %v28 = vld [vmem:[%s0 + $0x2c] sm:$0xf]
  %v29 = vld [vmem:[%s1] sm:$0xf]
  %v30 = vld [vmem:[%s1 + $0x4] sm:$0xf]
  %v31 = vld [vmem:[%s1 + $0x8] sm:$0xf]
  %v32 = vld [vmem:[%s1 + $0xc] sm:$0xf]
  %v33 = vld [vmem:[%s1 + $0x10] sm:$0xf]
  %v34 = vld [vmem:[%s1 + $0x14] sm:$0xf]
  %v35 = vld [vmem:[%s1 + $0x18] sm:$0xf]
  %v36 = vld [vmem:[%s1 + $0x1c] sm:$0xf]
  %v37 = vld [vmem:[%s1 + $0x20] sm:$0xf]
  %v38 = vld [vmem:[%s1 + $0x24] sm:$0xf]
  %v39 = vld [vmem:[%s1 + $0x28] sm:$0xf]
  %v40 = vld [vmem:[%s1 + $0x2c] sm:$0xf]
  %v41 = vld [vmem:[%s1 + $0x30] sm:$0xf]
  %v42 = vld [vmem:[%s1 + $0x34] sm:$0xf]
  %v43 = vld [vmem:[%s1 + $0x38] sm:$0xf]
  %v44 = vld [vmem:[%s1 + $0x3c] sm:$0xf]
  %v45 = vld [vmem:[%s1 + $0x40] sm:$0xf]
  %v46 = vld [vmem:[%s1 + $0x44] sm:$0xf]
  %v47 = vld [vmem:[%s1 + $0x48] sm:$0xf]
  %v48 = vld [vmem:[%s1 + $0x4c] sm:$0xf]
  %v49 = vld [vmem:[%s1 + $0x50] sm:$0xf]
  %v50 = vld [vmem:[%s1 + $0x54] sm:$0xf]
  %v51 = vld [vmem:[%s1 + $0x58] sm:$0xf]
  %v52 = vld [vmem:[%s1 + $0x5c] sm:$0xf]
  %v53 = vld [vmem:[%s1 + $0x60] sm:$0xf]
  %v54 = vld [vmem:[%s1 + $0x64] sm:$0xf]
  %v55 = vld [vmem:[%s1 + $0x68] sm:$0xf]
  %v56 = vld [vmem:[%s1 + $0x6c] sm:$0xf]
  %v57 = vld [vmem:[%s1 + $0x70] sm:$0xf]
  %v58 = vld [vmem:[%s1 + $0x74] sm:$0xf]
  %v59 = vld [vmem:[%s1 + $0x78] sm:$0xf]
  %v60 = vld [vmem:[%s1 + $0x7c] sm:$0xf]
  %v61 = vld [vmem:[%s1 + $0x80] sm:$0xf]
  %v62 = vld [vmem:[%s1 + $0x84] sm:$0xf]
  %v63 = vld [vmem:[%s1 + $0x88] sm:$0xf]
  %v64 = vld [vmem:[%s1 + $0x8c] sm:$0xf]
  %v65 = vld [vmem:[%s4] sm:$0xff]
  %v66 = vld [vmem:[%s4 + $0x8] sm:$0xff]
  %v67 = vld [vmem:[%s4 + $0x10] sm:$0xff]
  %v68 = vld [vmem:[%s4 + $0x18] sm:$0xff]
  %v77 = vunpack.c.l.b16 %v21
  %v78 = vunpack.c.h.b16 %v21
  %v79 = vunpack.c.l.b16 %v22
  %v80 = vunpack.c.l.b16 %v23
  %v81 = vunpack.c.h.b16 %v23
  %v82 = vunpack.c.l.b16 %v24
  %v83 = vunpack.c.l.b16 %v25
  %v84 = vunpack.c.h.b16 %v25
  %v85 = vunpack.c.l.b16 %v26
  %v86 = vunpack.c.l.b16 %v27
  %v87 = vunpack.c.h.b16 %v27
  %v88 = vunpack.c.l.b16 %v28
  %v89 = vpack.c.b16 %v80, %v77
  %v90 = vpack.c.b16 %v81, %v78
  %v91 = vpack.c.b16 %v82, %v79
  %v92 = vpack.c.b16 %v86, %v83
  %v93 = vpack.c.b16 %v87, %v84
  %v94 = vpack.c.b16 %v88, %v85
  %v135 = vunpack.c.l.b16 %v29
  %v136 = vunpack.c.l.b16 %v30
  %v137 = vunpack.c.l.b16 %v31
  %v138 = vunpack.c.l.b16 %v32
  %v139 = vunpack.c.l.b16 %v33
  %v140 = vunpack.c.l.b16 %v34
  %v141 = vunpack.c.l.b16 %v35
  %v142 = vunpack.c.l.b16 %v36
  %v143 = vunpack.c.l.b16 %v37
  %v144 = vunpack.c.l.b16 %v38
  %v145 = vunpack.c.l.b16 %v39
  %v146 = vunpack.c.l.b16 %v40
  %v147 = vunpack.c.l.b16 %v41
  %v148 = vunpack.c.l.b16 %v42
  %v149 = vunpack.c.l.b16 %v43
  %v150 = vunpack.c.l.b16 %v44
  %v151 = vunpack.c.l.b16 %v45
  %v152 = vunpack.c.l.b16 %v46
  %v153 = vunpack.c.l.b16 %v47
  %v154 = vunpack.c.l.b16 %v48
  %v155 = vunpack.c.l.b16 %v49
  %v156 = vunpack.c.l.b16 %v50
  %v157 = vunpack.c.l.b16 %v51
  %v158 = vunpack.c.l.b16 %v52
  %v159 = vunpack.c.l.b16 %v53
  %v160 = vunpack.c.l.b16 %v54
  %v161 = vunpack.c.l.b16 %v55
  %v162 = vunpack.c.l.b16 %v56
  %v163 = vunpack.c.l.b16 %v57
  %v164 = vunpack.c.l.b16 %v58
  %v165 = vunpack.c.l.b16 %v59
  %v166 = vunpack.c.l.b16 %v60
  %v167 = vunpack.c.l.b16 %v61
  %v168 = vunpack.c.l.b16 %v62
  %v169 = vunpack.c.l.b16 %v63
  %v170 = vunpack.c.l.b16 %v64
  %v171 = vpack.c.b16 %v136, %v135
  %v172 = vpack.c.b16 %v138, %v137
  %v173 = vpack.c.b16 %v140, %v139
  %v174 = vpack.c.b16 %v142, %v141
  %v175 = vpack.c.b16 %v144, %v143
  %v176 = vpack.c.b16 %v146, %v145
  %v177 = vpack.c.b16 %v148, %v147
  %v178 = vpack.c.b16 %v150, %v149
  %v179 = vpack.c.b16 %v152, %v151
  %v180 = vpack.c.b16 %v154, %v153
  %v181 = vpack.c.b16 %v156, %v155
  %v182 = vpack.c.b16 %v158, %v157
  %v183 = vpack.c.b16 %v160, %v159
  %v184 = vpack.c.b16 %v162, %v161
  %v185 = vpack.c.b16 %v164, %v163
  %v186 = vpack.c.b16 %v166, %v165
  %v187 = vpack.c.b16 %v168, %v167
  %v188 = vpack.c.b16 %v170, %v169
  %vm207 = vcmask 261120
  %v209 = vsel %vm207, %v91, 0
  %v212 = vsel %vm207, %v94, 0
  %214 = vmatprep.subr.bf16.mxu0 0
  %215 = vmatpush1.bf16.msra.mxu0 %v178
  %216 = vmatprep.subr.bf16.mxu0 0
  %217 = vmatpush1.bf16.msra.mxu0 %v177
  %218 = vmatprep.subr.bf16.mxu0 0
  %219 = vmatpush1.bf16.msra.mxu0 %v176
  %220 = vmatprep.subr.bf16.mxu0 0
  %221 = vmatpush1.bf16.msra.mxu0 %v175
  %222 = vmatprep.subr.bf16.mxu0 0
  %223 = vmatpush1.bf16.msra.mxu0 %v174
  %224 = vmatprep.subr.bf16.mxu0 0
  %225 = vmatpush1.bf16.msra.mxu0 %v173
  %226 = vmatprep.subr.bf16.mxu0 0
  %227 = vmatpush1.bf16.msra.mxu0 %v172
  %228 = vmatprep.subr.bf16.mxu0 0
  %229 = vmatpush1.bf16.msra.mxu0 %v171
  %230 = vmatprep.subr.bf16.mxu0 0
  %231 = vmatpush2.bf16.msra.mxu0 %v186
  %232 = vmatprep.subr.bf16.mxu0 0
  %233 = vmatpush2.bf16.msra.mxu0 %v185
  %234 = vmatprep.subr.bf16.mxu0 0
  %235 = vmatpush2.bf16.msra.mxu0 %v184
  %236 = vmatprep.subr.bf16.mxu0 0
  %237 = vmatpush2.bf16.msra.mxu0 %v183
  %238 = vmatprep.subr.bf16.mxu0 0
  %239 = vmatpush2.bf16.msra.mxu0 %v182
  %240 = vmatprep.subr.bf16.mxu0 0
  %241 = vmatpush2.bf16.msra.mxu0 %v181
  %242 = vmatprep.subr.bf16.mxu0 0
  %243 = vmatpush2.bf16.msra.mxu0 %v180
  %244 = vmatprep.subr.bf16.mxu0 0
  %245 = vmatpush2.bf16.msra.mxu0 %v179
  %246 = vmatprep.mubr.bf16.mxu0 %v90
  %247 = vmatmul.mubr.bf16.gmra.mxu0 %v89
  %v248 = vpop.f32.mrf.mxu0
  %v249 = vadd.f32 %v65, %v248
  %v250 = vpop.f32.mrf.mxu0
  %v251 = vpop.f32.mrf.mxu0
  %v252 = vadd.f32 %v66, %v251
  %v253 = vpop.f32.mrf.mxu0
  %254 = vmatprep.mubr.bf16.mxu0 %v93
  %255 = vmatmul.mubr.bf16.gmra.mxu0 %v92
  %v256 = vpop.f32.mrf.mxu0
  %v257 = vadd.f32 %v67, %v256
  %v258 = vpop.f32.mrf.mxu0
  %v259 = vpop.f32.mrf.mxu0
  %v260 = vadd.f32 %v68, %v259
  %v261 = vpop.f32.mrf.mxu0
  %262 = vdwg.mxu0
  %263 = vmatprep.subr.bf16.mxu0 0
  %264 = vmatpush1.bf16.msra.mxu0 0
  %265 = vmatprep.subr.bf16.mxu0 0
  %266 = vmatpush1.bf16.msra.mxu0 0
  %267 = vmatprep.subr.bf16.mxu0 0
  %268 = vmatpush1.bf16.msra.mxu0 0
  %269 = vmatprep.subr.bf16.mxu0 0
  %270 = vmatpush1.bf16.msra.mxu0 0
  %271 = vmatprep.subr.bf16.mxu0 0
  %272 = vmatpush1.bf16.msra.mxu0 0
  %273 = vmatprep.subr.bf16.mxu0 0
  %274 = vmatpush1.bf16.msra.mxu0 0
  %275 = vmatprep.subr.bf16.mxu0 0
  %276 = vmatpush1.bf16.msra.mxu0 %v188
  %277 = vmatprep.subr.bf16.mxu0 0
  %278 = vmatpush1.bf16.msra.mxu0 %v187
  %279 = vmatprep.subr.bf16.mxu0 0
  %280 = vmatpush2.bf16.msra.mxu0 0
  %281 = vmatprep.subr.bf16.mxu0 0
  %282 = vmatpush2.bf16.msra.mxu0 0
  %283 = vmatprep.subr.bf16.mxu0 0
  %284 = vmatpush2.bf16.msra.mxu0 0
  %285 = vmatprep.subr.bf16.mxu0 0
  %286 = vmatpush2.bf16.msra.mxu0 0
  %287 = vmatprep.subr.bf16.mxu0 0
  %288 = vmatpush2.bf16.msra.mxu0 0
  %289 = vmatprep.subr.bf16.mxu0 0
  %290 = vmatpush2.bf16.msra.mxu0 0
  %291 = vmatprep.subr.bf16.mxu0 0
  %292 = vmatpush2.bf16.msra.mxu0 0
  %293 = vmatprep.subr.bf16.mxu0 0
  %294 = vmatpush2.bf16.msra.mxu0 0
  %295 = vmatprep.mubr.bf16.mxu0 0
  %296 = vmatmul.mubr.bf16.gmra.mxu0 %v209
  %v297 = vpop.f32.mrf.mxu0
  %v298 = vadd.f32 %v249, %v297
  %v299 = vpop.f32.mrf.mxu0
  %v300 = vpop.f32.mrf.mxu0
  %v301 = vadd.f32 %v252, %v300
  %v302 = vpop.f32.mrf.mxu0
  %303 = vmatprep.mubr.bf16.mxu0 0
  %304 = vmatmul.mubr.bf16.gmra.mxu0 %v212
  %v305 = vpop.f32.mrf.mxu0
  %v306 = vadd.f32 %v257, %v305
  %v307 = vpop.f32.mrf.mxu0
  %v308 = vpop.f32.mrf.mxu0
  %v309 = vadd.f32 %v260, %v308
  %v310 = vpop.f32.mrf.mxu0
  %311 = vdwg.mxu0
  %v312 = vld [vmem:[%s2] sm:$0xff]
  %v313 = vld [vmem:[%s2 + $0x8] sm:$0xff]
  %v314 = vld [vmem:[%s2 + $0x10] sm:$0xff]
  %v315 = vld [vmem:[%s2 + $0x18] sm:$0xff]
  %317 = vset.pattern.permute.xlu0 0
  %318 = vperm.xlu0 %317, %v312
  %v319 = vpop.permute.xlu0 %318
  %322 = vset.pattern.permute.xlu0 0
  %323 = vperm.xlu0 %322, %v313
  %v324 = vpop.permute.xlu0 %323
  %327 = vset.pattern.permute.xlu0 0
  %328 = vperm.xlu0 %327, %v314
  %v329 = vpop.permute.xlu0 %328
  %332 = vset.pattern.permute.xlu0 0
  %333 = vperm.xlu0 %332, %v315
  %v334 = vpop.permute.xlu0 %333
  %v336 = vmul.f32 %v298, %v319
  %v337 = vmul.f32 %v301, %v324
  %v338 = vmul.f32 %v306, %v329
  %v339 = vmul.f32 %v309, %v334
  %v340 = vld [vmem:[%s3] sm:$0xff]
  %v341 = vld [vmem:[%s3 + $0x8] sm:$0xff]
  %v342 = vld [vmem:[%s3 + $0x10] sm:$0xff]
  %v343 = vld [vmem:[%s3 + $0x18] sm:$0xff]
  %345 = vset.pattern.permute.xlu0 0
  %346 = vperm.xlu0 %345, %v340
  %v347 = vpop.permute.xlu0 %346
  %350 = vset.pattern.permute.xlu0 0
  %351 = vperm.xlu0 %350, %v341
  %v352 = vpop.permute.xlu0 %351
  %355 = vset.pattern.permute.xlu0 0
  %356 = vperm.xlu0 %355, %v342
  %v357 = vpop.permute.xlu0 %356
  %360 = vset.pattern.permute.xlu0 0
  %361 = vperm.xlu0 %360, %v343
  %v362 = vpop.permute.xlu0 %361
  %v364 = vadd.f32 %v336, %v347
  %v365 = vadd.f32 %v337, %v352
  %v366 = vadd.f32 %v338, %v357
  %v367 = vadd.f32 %v339, %v362
  %vm368 = vcmp.gt.f32.partialorder %v364, 0.0
  %vm369 = vcmp.gt.f32.partialorder %v365, 0.0
  %vm370 = vcmp.gt.f32.partialorder %v366, 0.0
  %vm371 = vcmp.gt.f32.partialorder %v367, 0.0
  %v372 = vmul.f32 %v364, 0.01
  %v373 = vmul.f32 %v365, 0.01
  %v374 = vmul.f32 %v366, 0.01
  %v375 = vmul.f32 %v367, 0.01
  %v376 = vsel %vm368, %v364, %v372
  %v377 = vsel %vm369, %v365, %v373
  %v378 = vsel %vm370, %v366, %v374
  %v379 = vsel %vm371, %v367, %v375
  %v380 = vpack.c.bf16 %v377, %v376
  %v381 = vpack.c.bf16 %v379, %v378
  %v384 = vunpack.c.l.b16 %v380
  %v385 = vunpack.c.h.b16 %v380
  %v386 = vunpack.c.l.b16 %v381
  %v387 = vunpack.c.h.b16 %v381
  %v388 = vpack.c.b16 %v384, %v384
  %v389 = vpack.c.b16 %v385, %v385
  %v390 = vpack.c.b16 %v386, %v386
  %v391 = vpack.c.b16 %v387, %v387
  %396 = vst [vmem:[%s5] sm:$0xf] %v388
  %397 = vst [vmem:[%s5 + $0x4] sm:$0xf] %v389
  %398 = vst [vmem:[%s5 + $0x8] sm:$0xf] %v390
  %399 = vst [vmem:[%s5 + $0xc] sm:$0xf] %v391
  // Predicated region
  $region22: #{breast_cnn_forward.21} parent=0 // pred_check
    _
  $region23: #{breast_cnn_forward.21} parent=0 // pred_check_branch
    %401 = sbr.rel (0) target = $region25
  $region24: #{breast_cnn_forward.21} parent=0 // pred_region
    _
  $region25: #{breast_cnn_forward.21} parent=0 // pred_fallthru
    _
  // Predicated region
  $region26: #{breast_cnn_forward.21} parent=0 // pred_check
    _
  $region27: #{breast_cnn_forward.21} parent=0 // pred_check_branch
    %403 = sbr.rel (0) target = $region29
  $region28: #{breast_cnn_forward.21} parent=0 // pred_region
    _
  $region29: #{breast_cnn_forward.21} parent=0 // pred_fallthru
    _

// kernel: breast_cnn_forward.22
$region0: #{breast_cnn_forward.22}
  #allocation0 [shape = 'u32[]', space=smem, size = 0x4, offset = 0x4, fixed_abs, tag = 'smem constant byte address 0x4 - core index']
  #allocation1 [shape = 'u32[144,128]{1,0:T(1,128)}', space=vmem, size = 0x12000, scoped, tag = 'internal scratch']
  %s0 = inlined_call_operand.vmem [shape: bf16[32,288], index: 0, kind: input, shape index: {}]
  %s1 = inlined_call_operand.vmem [shape: bf16[288,128], index: 1, kind: input, shape index: {}]
  %s2 = inlined_call_operand.vmem [shape: f32[32,1], index: 2, kind: input, shape index: {}]
  %s3 = inlined_call_operand.vmem [shape: f32[32,1], index: 3, kind: input, shape index: {}]
  %s4 = inlined_call_operand.vmem [shape: f32[32,1], index: 4, kind: input, shape index: {}]
  %s5 = inlined_call_operand.vmem [shape: bf16[32,128], index: 5, kind: output, shape index: {0}]
  %s6 = inlined_call_operand.vmem [shape: f32[32,128], index: 6, kind: output, shape index: {1}]
  %7 = xla_tuple %s5, %s6
  %s8 = sld [smem:[#allocation0]]
  $region38: #{breast_cnn_forward.22} parent=0
    _
  %s10 = ssub.s32 1, %s8
  %s11 = scalar_select 0, %s10, %s8
  // Predicated region
  $region2: #{breast_cnn_forward.22} parent=0 // pred_check
    _
  $region3: #{breast_cnn_forward.22} parent=0 // pred_check_branch
    %13 = sbr.rel (0) target = $region5
  $region4: #{breast_cnn_forward.22} parent=0 // pred_region
    _
  $region5: #{breast_cnn_forward.22} parent=0 // pred_fallthru
    _
  // Predicated region
  $region6: #{breast_cnn_forward.22} parent=0 // pred_check
    _
  $region7: #{breast_cnn_forward.22} parent=0 // pred_check_branch
    %15 = sbr.rel (0) target = $region9
  $region8: #{breast_cnn_forward.22} parent=0 // pred_region
    _
  $region9: #{breast_cnn_forward.22} parent=0 // pred_fallthru
    _
  // Predicated region
  $region10: #{breast_cnn_forward.22} parent=0 // pred_check
    _
  $region11: #{breast_cnn_forward.22} parent=0 // pred_check_branch
    %17 = sbr.rel (0) target = $region13
  $region12: #{breast_cnn_forward.22} parent=0 // pred_region
    _
  $region13: #{breast_cnn_forward.22} parent=0 // pred_fallthru
    _
  // Predicated region
  $region14: #{breast_cnn_forward.22} parent=0 // pred_check
    _
  $region15: #{breast_cnn_forward.22} parent=0 // pred_check_branch
    %19 = sbr.rel (0) target = $region17
  $region16: #{breast_cnn_forward.22} parent=0 // pred_region
    _
  $region17: #{breast_cnn_forward.22} parent=0 // pred_fallthru
    _
  // Predicated region
  $region18: #{breast_cnn_forward.22} parent=0 // pred_check
    _
  $region19: #{breast_cnn_forward.22} parent=0 // pred_check_branch
    %21 = sbr.rel (0) target = $region21
  $region20: #{breast_cnn_forward.22} parent=0 // pred_region
    _
  $region21: #{breast_cnn_forward.22} parent=0 // pred_fallthru
    _
  %v23 = vld [vmem:[%s0] sm:$0xff]
  %v24 = vld [vmem:[%s0 + $0x8] sm:$0xf]
  %v25 = vld [vmem:[%s0 + $0xc] sm:$0xff]
  %v26 = vld [vmem:[%s0 + $0x14] sm:$0xf]
  %v27 = vld [vmem:[%s0 + $0x18] sm:$0xff]
  %v28 = vld [vmem:[%s0 + $0x20] sm:$0xf]
  %v29 = vld [vmem:[%s0 + $0x24] sm:$0xff]
  %v30 = vld [vmem:[%s0 + $0x2c] sm:$0xf]
  %v31 = vld [vmem:[%s1] sm:$0xf]
  %v32 = vld [vmem:[%s1 + $0x4] sm:$0xf]
  %v33 = vld [vmem:[%s1 + $0x8] sm:$0xf]
  %v34 = vld [vmem:[%s1 + $0xc] sm:$0xf]
  %v35 = vld [vmem:[%s1 + $0x10] sm:$0xf]
  %v36 = vld [vmem:[%s1 + $0x14] sm:$0xf]
  %v37 = vld [vmem:[%s1 + $0x18] sm:$0xf]
  %v38 = vld [vmem:[%s1 + $0x1c] sm:$0xf]
  %v39 = vld [vmem:[%s1 + $0x20] sm:$0xf]
  %v40 = vld [vmem:[%s1 + $0x24] sm:$0xf]
  %v41 = vld [vmem:[%s1 + $0x28] sm:$0xf]
  %v42 = vld [vmem:[%s1 + $0x2c] sm:$0xf]
  %v43 = vld [vmem:[%s1 + $0x30] sm:$0xf]
  %v44 = vld [vmem:[%s1 + $0x34] sm:$0xf]
  %v45 = vld [vmem:[%s1 + $0x38] sm:$0xf]
  %v46 = vld [vmem:[%s1 + $0x3c] sm:$0xf]
  %v47 = vld [vmem:[%s1 + $0x40] sm:$0xf]
  %v48 = vld [vmem:[%s1 + $0x44] sm:$0xf]
  %v49 = vld [vmem:[%s1 + $0x48] sm:$0xf]
  %v50 = vld [vmem:[%s1 + $0x4c] sm:$0xf]
  %v51 = vld [vmem:[%s1 + $0x50] sm:$0xf]
  %v52 = vld [vmem:[%s1 + $0x54] sm:$0xf]
  %v53 = vld [vmem:[%s1 + $0x58] sm:$0xf]
  %v54 = vld [vmem:[%s1 + $0x5c] sm:$0xf]
  %v55 = vld [vmem:[%s1 + $0x60] sm:$0xf]
  %v56 = vld [vmem:[%s1 + $0x64] sm:$0xf]
  %v57 = vld [vmem:[%s1 + $0x68] sm:$0xf]
  %v58 = vld [vmem:[%s1 + $0x6c] sm:$0xf]
  %v59 = vld [vmem:[%s1 + $0x70] sm:$0xf]
  %v60 = vld [vmem:[%s1 + $0x74] sm:$0xf]
  %v61 = vld [vmem:[%s1 + $0x78] sm:$0xf]
  %v62 = vld [vmem:[%s1 + $0x7c] sm:$0xf]
  %v63 = vld [vmem:[%s1 + $0x80] sm:$0xf]
  %v64 = vld [vmem:[%s1 + $0x84] sm:$0xf]
  %v65 = vld [vmem:[%s1 + $0x88] sm:$0xf]
  %v66 = vld [vmem:[%s1 + $0x8c] sm:$0xf]
  %v75 = vunpack.c.l.b16 %v23
  %v76 = vunpack.c.h.b16 %v23
  %v77 = vunpack.c.l.b16 %v24
  %v78 = vunpack.c.l.b16 %v25
  %v79 = vunpack.c.h.b16 %v25
  %v80 = vunpack.c.l.b16 %v26
  %v81 = vunpack.c.l.b16 %v27
  %v82 = vunpack.c.h.b16 %v27
  %v83 = vunpack.c.l.b16 %v28
  %v84 = vunpack.c.l.b16 %v29
  %v85 = vunpack.c.h.b16 %v29
  %v86 = vunpack.c.l.b16 %v30
  %v87 = vpack.c.b16 %v78, %v75
  %v88 = vpack.c.b16 %v79, %v76
  %v89 = vpack.c.b16 %v80, %v77
  %v90 = vpack.c.b16 %v84, %v81
  %v91 = vpack.c.b16 %v85, %v82
  %v92 = vpack.c.b16 %v86, %v83
  %v133 = vunpack.c.l.b16 %v31
  %v134 = vunpack.c.l.b16 %v32
  %v135 = vunpack.c.l.b16 %v33
  %v136 = vunpack.c.l.b16 %v34
  %v137 = vunpack.c.l.b16 %v35
  %v138 = vunpack.c.l.b16 %v36
  %v139 = vunpack.c.l.b16 %v37
  %v140 = vunpack.c.l.b16 %v38
  %v141 = vunpack.c.l.b16 %v39
  %v142 = vunpack.c.l.b16 %v40
  %v143 = vunpack.c.l.b16 %v41
  %v144 = vunpack.c.l.b16 %v42
  %v145 = vunpack.c.l.b16 %v43
  %v146 = vunpack.c.l.b16 %v44
  %v147 = vunpack.c.l.b16 %v45
  %v148 = vunpack.c.l.b16 %v46
  %v149 = vunpack.c.l.b16 %v47
  %v150 = vunpack.c.l.b16 %v48
  %v151 = vunpack.c.l.b16 %v49
  %v152 = vunpack.c.l.b16 %v50
  %v153 = vunpack.c.l.b16 %v51
  %v154 = vunpack.c.l.b16 %v52
  %v155 = vunpack.c.l.b16 %v53
  %v156 = vunpack.c.l.b16 %v54
  %v157 = vunpack.c.l.b16 %v55
  %v158 = vunpack.c.l.b16 %v56
  %v159 = vunpack.c.l.b16 %v57
  %v160 = vunpack.c.l.b16 %v58
  %v161 = vunpack.c.l.b16 %v59
  %v162 = vunpack.c.l.b16 %v60
  %v163 = vunpack.c.l.b16 %v61
  %v164 = vunpack.c.l.b16 %v62
  %v165 = vunpack.c.l.b16 %v63
  %v166 = vunpack.c.l.b16 %v64
  %v167 = vunpack.c.l.b16 %v65
  %v168 = vunpack.c.l.b16 %v66
  %v169 = vpack.c.b16 %v134, %v133
  %v170 = vpack.c.b16 %v136, %v135
  %v171 = vpack.c.b16 %v138, %v137
  %v172 = vpack.c.b16 %v140, %v139
  %v173 = vpack.c.b16 %v142, %v141
  %v174 = vpack.c.b16 %v144, %v143
  %v175 = vpack.c.b16 %v146, %v145
  %v176 = vpack.c.b16 %v148, %v147
  %v177 = vpack.c.b16 %v150, %v149
  %v178 = vpack.c.b16 %v152, %v151
  %v179 = vpack.c.b16 %v154, %v153
  %v180 = vpack.c.b16 %v156, %v155
  %v181 = vpack.c.b16 %v158, %v157
  %v182 = vpack.c.b16 %v160, %v159
  %v183 = vpack.c.b16 %v162, %v161
  %v184 = vpack.c.b16 %v164, %v163
  %v185 = vpack.c.b16 %v166, %v165
  %v186 = vpack.c.b16 %v168, %v167
  %vm205 = vcmask 261120
  %v207 = vsel %vm205, %v89, 0
  %v210 = vsel %vm205, %v92, 0
  %212 = vmatprep.subr.bf16.mxu0 0
  %213 = vmatpush1.bf16.msra.mxu0 %v176
  %214 = vmatprep.subr.bf16.mxu0 0
  %215 = vmatpush1.bf16.msra.mxu0 %v175
  %216 = vmatprep.subr.bf16.mxu0 0
  %217 = vmatpush1.bf16.msra.mxu0 %v174
  %218 = vmatprep.subr.bf16.mxu0 0
  %219 = vmatpush1.bf16.msra.mxu0 %v173
  %220 = vmatprep.subr.bf16.mxu0 0
  %221 = vmatpush1.bf16.msra.mxu0 %v172
  %222 = vmatprep.subr.bf16.mxu0 0
  %223 = vmatpush1.bf16.msra.mxu0 %v171
  %224 = vmatprep.subr.bf16.mxu0 0
  %225 = vmatpush1.bf16.msra.mxu0 %v170
  %226 = vmatprep.subr.bf16.mxu0 0
  %227 = vmatpush1.bf16.msra.mxu0 %v169
  %228 = vmatprep.subr.bf16.mxu0 0
  %229 = vmatpush2.bf16.msra.mxu0 %v184
  %230 = vmatprep.subr.bf16.mxu0 0
  %231 = vmatpush2.bf16.msra.mxu0 %v183
  %232 = vmatprep.subr.bf16.mxu0 0
  %233 = vmatpush2.bf16.msra.mxu0 %v182
  %234 = vmatprep.subr.bf16.mxu0 0
  %235 = vmatpush2.bf16.msra.mxu0 %v181
  %236 = vmatprep.subr.bf16.mxu0 0
  %237 = vmatpush2.bf16.msra.mxu0 %v180
  %238 = vmatprep.subr.bf16.mxu0 0
  %239 = vmatpush2.bf16.msra.mxu0 %v179
  %240 = vmatprep.subr.bf16.mxu0 0
  %241 = vmatpush2.bf16.msra.mxu0 %v178
  %242 = vmatprep.subr.bf16.mxu0 0
  %243 = vmatpush2.bf16.msra.mxu0 %v177
  %244 = vmatprep.mubr.bf16.mxu0 %v88
  %245 = vmatmul.mubr.bf16.gmra.mxu0 %v87
  %v246 = vpop.f32.mrf.mxu0
  %v247 = vadd.f32 0.0, %v246
  %v248 = vpop.f32.mrf.mxu0
  %v249 = vpop.f32.mrf.mxu0
  %v250 = vadd.f32 0.0, %v249
  %v251 = vpop.f32.mrf.mxu0
  %252 = vmatprep.mubr.bf16.mxu0 %v91
  %253 = vmatmul.mubr.bf16.gmra.mxu0 %v90
  %v254 = vpop.f32.mrf.mxu0
  %v255 = vadd.f32 0.0, %v254
  %v256 = vpop.f32.mrf.mxu0
  %v257 = vpop.f32.mrf.mxu0
  %v258 = vadd.f32 0.0, %v257
  %v259 = vpop.f32.mrf.mxu0
  %260 = vdwg.mxu0
  %261 = vmatprep.subr.bf16.mxu0 0
  %262 = vmatpush1.bf16.msra.mxu0 0
  %263 = vmatprep.subr.bf16.mxu0 0
  %264 = vmatpush1.bf16.msra.mxu0 0
  %265 = vmatprep.subr.bf16.mxu0 0
  %266 = vmatpush1.bf16.msra.mxu0 0
  %267 = vmatprep.subr.bf16.mxu0 0
  %268 = vmatpush1.bf16.msra.mxu0 0
  %269 = vmatprep.subr.bf16.mxu0 0
  %270 = vmatpush1.bf16.msra.mxu0 0
  %271 = vmatprep.subr.bf16.mxu0 0
  %272 = vmatpush1.bf16.msra.mxu0 0
  %273 = vmatprep.subr.bf16.mxu0 0
  %274 = vmatpush1.bf16.msra.mxu0 %v186
  %275 = vmatprep.subr.bf16.mxu0 0
  %276 = vmatpush1.bf16.msra.mxu0 %v185
  %277 = vmatprep.subr.bf16.mxu0 0
  %278 = vmatpush2.bf16.msra.mxu0 0
  %279 = vmatprep.subr.bf16.mxu0 0
  %280 = vmatpush2.bf16.msra.mxu0 0
  %281 = vmatprep.subr.bf16.mxu0 0
  %282 = vmatpush2.bf16.msra.mxu0 0
  %283 = vmatprep.subr.bf16.mxu0 0
  %284 = vmatpush2.bf16.msra.mxu0 0
  %285 = vmatprep.subr.bf16.mxu0 0
  %286 = vmatpush2.bf16.msra.mxu0 0
  %287 = vmatprep.subr.bf16.mxu0 0
  %288 = vmatpush2.bf16.msra.mxu0 0
  %289 = vmatprep.subr.bf16.mxu0 0
  %290 = vmatpush2.bf16.msra.mxu0 0
  %291 = vmatprep.subr.bf16.mxu0 0
  %292 = vmatpush2.bf16.msra.mxu0 0
  %293 = vmatprep.mubr.bf16.mxu0 0
  %294 = vmatmul.mubr.bf16.gmra.mxu0 %v207
  %v295 = vpop.f32.mrf.mxu0
  %v296 = vadd.f32 %v247, %v295
  %v297 = vpop.f32.mrf.mxu0
  %v298 = vpop.f32.mrf.mxu0
  %v299 = vadd.f32 %v250, %v298
  %v300 = vpop.f32.mrf.mxu0
  %301 = vmatprep.mubr.bf16.mxu0 0
  %302 = vmatmul.mubr.bf16.gmra.mxu0 %v210
  %v303 = vpop.f32.mrf.mxu0
  %v304 = vadd.f32 %v255, %v303
  %v305 = vpop.f32.mrf.mxu0
  %v306 = vpop.f32.mrf.mxu0
  %v307 = vadd.f32 %v258, %v306
  %v308 = vpop.f32.mrf.mxu0
  %309 = vdwg.mxu0
  %v310 = vld [vmem:[%s4] sm:$0xff]
  %v311 = vld [vmem:[%s4 + $0x8] sm:$0xff]
  %v312 = vld [vmem:[%s4 + $0x10] sm:$0xff]
  %v313 = vld [vmem:[%s4 + $0x18] sm:$0xff]
  %315 = vset.pattern.permute.xlu0 0
  %316 = vperm.xlu0 %315, %v310
  %v317 = vpop.permute.xlu0 %316
  %320 = vset.pattern.permute.xlu0 0
  %321 = vperm.xlu0 %320, %v311
  %v322 = vpop.permute.xlu0 %321
  %325 = vset.pattern.permute.xlu0 0
  %326 = vperm.xlu0 %325, %v312
  %v327 = vpop.permute.xlu0 %326
  %330 = vset.pattern.permute.xlu0 0
  %331 = vperm.xlu0 %330, %v313
  %v332 = vpop.permute.xlu0 %331
  %v334 = vadd.f32 %v296, %v317
  %v335 = vadd.f32 %v299, %v322
  %v336 = vadd.f32 %v304, %v327
  %v337 = vadd.f32 %v307, %v332
  %338 = vst [vmem:[%s6] sm:$0xff] %v334
  %339 = vst [vmem:[%s6 + $0x8] sm:$0xff] %v335
  %340 = vst [vmem:[%s6 + $0x10] sm:$0xff] %v336
  %341 = vst [vmem:[%s6 + $0x18] sm:$0xff] %v337
  %v342 = vld [vmem:[%s2] sm:$0xff]
  %v343 = vld [vmem:[%s2 + $0x8] sm:$0xff]
  %v344 = vld [vmem:[%s2 + $0x10] sm:$0xff]
  %v345 = vld [vmem:[%s2 + $0x18] sm:$0xff]
  %347 = vset.pattern.permute.xlu0 0
  %348 = vperm.xlu0 %347, %v342
  %v349 = vpop.permute.xlu0 %348
  %352 = vset.pattern.permute.xlu0 0
  %353 = vperm.xlu0 %352, %v343
  %v354 = vpop.permute.xlu0 %353
  %357 = vset.pattern.permute.xlu0 0
  %358 = vperm.xlu0 %357, %v344
  %v359 = vpop.permute.xlu0 %358
  %362 = vset.pattern.permute.xlu0 0
  %363 = vperm.xlu0 %362, %v345
  %v364 = vpop.permute.xlu0 %363
  %v366 = vmul.f32 %v296, %v349
  %v367 = vmul.f32 %v299, %v354
  %v368 = vmul.f32 %v304, %v359
  %v369 = vmul.f32 %v307, %v364
  %v370 = vld [vmem:[%s3] sm:$0xff]
  %v371 = vld [vmem:[%s3 + $0x8] sm:$0xff]
  %v372 = vld [vmem:[%s3 + $0x10] sm:$0xff]
  %v373 = vld [vmem:[%s3 + $0x18] sm:$0xff]
  %375 = vset.pattern.permute.xlu0 0
  %376 = vperm.xlu0 %375, %v370
  %v377 = vpop.permute.xlu0 %376
  %380 = vset.pattern.permute.xlu0 0
  %381 = vperm.xlu0 %380, %v371
  %v382 = vpop.permute.xlu0 %381
  %385 = vset.pattern.permute.xlu0 0
  %386 = vperm.xlu0 %385, %v372
  %v387 = vpop.permute.xlu0 %386
  %390 = vset.pattern.permute.xlu0 0
  %391 = vperm.xlu0 %390, %v373
  %v392 = vpop.permute.xlu0 %391
  %v394 = vadd.f32 %v366, %v377
  %v395 = vadd.f32 %v367, %v382
  %v396 = vadd.f32 %v368, %v387
  %v397 = vadd.f32 %v369, %v392
  %vm398 = vcmp.gt.f32.partialorder %v394, 0.0
  %vm399 = vcmp.gt.f32.partialorder %v395, 0.0
  %vm400 = vcmp.gt.f32.partialorder %v396, 0.0
  %vm401 = vcmp.gt.f32.partialorder %v397, 0.0
  %v402 = vmul.f32 %v394, 0.01
  %v403 = vmul.f32 %v395, 0.01
  %v404 = vmul.f32 %v396, 0.01
  %v405 = vmul.f32 %v397, 0.01
  %v406 = vsel %vm398, %v394, %v402
  %v407 = vsel %vm399, %v395, %v403
  %v408 = vsel %vm400, %v396, %v404
  %v409 = vsel %vm401, %v397, %v405
  %v410 = vpack.c.bf16 %v407, %v406
  %v411 = vpack.c.bf16 %v409, %v408
  %v414 = vunpack.c.l.b16 %v410
  %v415 = vunpack.c.h.b16 %v410
  %v416 = vunpack.c.l.b16 %v411
  %v417 = vunpack.c.h.b16 %v411
  %v418 = vpack.c.b16 %v414, %v414
  %v419 = vpack.c.b16 %v415, %v415
  %v420 = vpack.c.b16 %v416, %v416
  %v421 = vpack.c.b16 %v417, %v417
  %426 = vst [vmem:[%s5] sm:$0xf] %v418
  %427 = vst [vmem:[%s5 + $0x4] sm:$0xf] %v419
  %428 = vst [vmem:[%s5 + $0x8] sm:$0xf] %v420
  %429 = vst [vmem:[%s5 + $0xc] sm:$0xf] %v421
  // Predicated region
  $region22: #{breast_cnn_forward.22} parent=0 // pred_check
    _
  $region23: #{breast_cnn_forward.22} parent=0 // pred_check_branch
    %431 = sbr.rel (0) target = $region25
  $region24: #{breast_cnn_forward.22} parent=0 // pred_region
    _
  $region25: #{breast_cnn_forward.22} parent=0 // pred_fallthru
    _
  // Predicated region
  $region26: #{breast_cnn_forward.22} parent=0 // pred_check
    _
  $region27: #{breast_cnn_forward.22} parent=0 // pred_check_branch
    %433 = sbr.rel (0) target = $region29
  $region28: #{breast_cnn_forward.22} parent=0 // pred_region
    _
  $region29: #{breast_cnn_forward.22} parent=0 // pred_fallthru
    _
  // Predicated region
  $region30: #{breast_cnn_forward.22} parent=0 // pred_check
    _
  $region31: #{breast_cnn_forward.22} parent=0 // pred_check_branch
    %435 = sbr.rel (0) target = $region33
  $region32: #{breast_cnn_forward.22} parent=0 // pred_region
    _
  $region33: #{breast_cnn_forward.22} parent=0 // pred_fallthru
    _
  // Predicated region
  $region34: #{breast_cnn_forward.22} parent=0 // pred_check
    _
  $region35: #{breast_cnn_forward.22} parent=0 // pred_check_branch
    %437 = sbr.rel (0) target = $region37
  $region36: #{breast_cnn_forward.22} parent=0 // pred_region
    _
  $region37: #{breast_cnn_forward.22} parent=0 // pred_fallthru
    _

// kernel: breast_cnn_forward.26
$region0: #{breast_cnn_forward.26}
  #allocation0 [shape = 'u32[]', space=smem, size = 0x4, offset = 0x4, fixed_abs, tag = 'smem constant byte address 0x4 - core index']
  #allocation1 [shape = 'u32[144,128]{1,0:T(1,128)}', space=vmem, size = 0x12000, scoped, tag = 'internal scratch']
  %s0 = inlined_call_operand.vmem [shape: bf16[128,288], index: 0, kind: input, shape index: {}]
  %s1 = inlined_call_operand.vmem [shape: bf16[288,128], index: 1, kind: input, shape index: {}]
  %s2 = inlined_call_operand.vmem [shape: f32[128,1], index: 2, kind: input, shape index: {}]
  %s3 = inlined_call_operand.vmem [shape: f32[128,1], index: 3, kind: input, shape index: {}]
  %s4 = inlined_call_operand.vmem [shape: f32[128,128], index: 4, kind: output, shape index: {}]
  %s5 = sld [smem:[#allocation0]]
  $region26: #{breast_cnn_forward.26} parent=0
    _
  %s7 = ssub.s32 1, %s5
  %s8 = scalar_select 0, %s7, %s5
  // Predicated region
  $region2: #{breast_cnn_forward.26} parent=0 // pred_check
    _
  $region3: #{breast_cnn_forward.26} parent=0 // pred_check_branch
    %10 = sbr.rel (0) target = $region5
  $region4: #{breast_cnn_forward.26} parent=0 // pred_region
    _
  $region5: #{breast_cnn_forward.26} parent=0 // pred_fallthru
    _
  // Predicated region
  $region6: #{breast_cnn_forward.26} parent=0 // pred_check
    _
  $region7: #{breast_cnn_forward.26} parent=0 // pred_check_branch
    %12 = sbr.rel (0) target = $region9
  $region8: #{breast_cnn_forward.26} parent=0 // pred_region
    _
  $region9: #{breast_cnn_forward.26} parent=0 // pred_fallthru
    _
  // Predicated region
  $region10: #{breast_cnn_forward.26} parent=0 // pred_check
    _
  $region11: #{breast_cnn_forward.26} parent=0 // pred_check_branch
    %14 = sbr.rel (0) target = $region13
  $region12: #{breast_cnn_forward.26} parent=0 // pred_region
    _
  $region13: #{breast_cnn_forward.26} parent=0 // pred_fallthru
    _
  // Predicated region
  $region14: #{breast_cnn_forward.26} parent=0 // pred_check
    _
  $region15: #{breast_cnn_forward.26} parent=0 // pred_check_branch
    %16 = sbr.rel (0) target = $region17
  $region16: #{breast_cnn_forward.26} parent=0 // pred_region
    _
  $region17: #{breast_cnn_forward.26} parent=0 // pred_fallthru
    _
  %v18 = vld [vmem:[%s0] sm:$0xff]
  %v19 = vld [vmem:[%s0 + $0x8] sm:$0xf]
  %v20 = vld [vmem:[%s0 + $0xc] sm:$0xff]
  %v21 = vld [vmem:[%s0 + $0x14] sm:$0xf]
  %v22 = vld [vmem:[%s0 + $0x18] sm:$0xff]
  %v23 = vld [vmem:[%s0 + $0x20] sm:$0xf]
  %v24 = vld [vmem:[%s0 + $0x24] sm:$0xff]
  %v25 = vld [vmem:[%s0 + $0x2c] sm:$0xf]
  %v26 = vld [vmem:[%s0 + $0x30] sm:$0xff]
  %v27 = vld [vmem:[%s0 + $0x38] sm:$0xf]
  %v28 = vld [vmem:[%s0 + $0x3c] sm:$0xff]
  %v29 = vld [vmem:[%s0 + $0x44] sm:$0xf]
  %v30 = vld [vmem:[%s0 + $0x48] sm:$0xff]
  %v31 = vld [vmem:[%s0 + $0x50] sm:$0xf]
  %v32 = vld [vmem:[%s0 + $0x54] sm:$0xff]
  %v33 = vld [vmem:[%s0 + $0x5c] sm:$0xf]
  %v34 = vld [vmem:[%s0 + $0x60] sm:$0xff]
  %v35 = vld [vmem:[%s0 + $0x68] sm:$0xf]
  %v36 = vld [vmem:[%s0 + $0x6c] sm:$0xff]
  %v37 = vld [vmem:[%s0 + $0x74] sm:$0xf]
  %v38 = vld [vmem:[%s0 + $0x78] sm:$0xff]
  %v39 = vld [vmem:[%s0 + $0x80] sm:$0xf]
  %v40 = vld [vmem:[%s0 + $0x84] sm:$0xff]
  %v41 = vld [vmem:[%s0 + $0x8c] sm:$0xf]
  %v42 = vld [vmem:[%s0 + $0x90] sm:$0xff]
  %v43 = vld [vmem:[%s0 + $0x98] sm:$0xf]
  %v44 = vld [vmem:[%s0 + $0x9c] sm:$0xff]
  %v45 = vld [vmem:[%s0 + $0xa4] sm:$0xf]
  %v46 = vld [vmem:[%s0 + $0xa8] sm:$0xff]
  %v47 = vld [vmem:[%s0 + $0xb0] sm:$0xf]
  %v48 = vld [vmem:[%s0 + $0xb4] sm:$0xff]
  %v49 = vld [vmem:[%s0 + $0xbc] sm:$0xf]
  %v50 = vld [vmem:[%s1] sm:$0xf]
  %v51 = vld [vmem:[%s1 + $0x4] sm:$0xf]
  %v52 = vld [vmem:[%s1 + $0x8] sm:$0xf]
  %v53 = vld [vmem:[%s1 + $0xc] sm:$0xf]
  %v54 = vld [vmem:[%s1 + $0x10] sm:$0xf]
  %v55 = vld [vmem:[%s1 + $0x14] sm:$0xf]
  %v56 = vld [vmem:[%s1 + $0x18] sm:$0xf]
  %v57 = vld [vmem:[%s1 + $0x1c] sm:$0xf]
  %v58 = vld [vmem:[%s1 + $0x20] sm:$0xf]
  %v59 = vld [vmem:[%s1 + $0x24] sm:$0xf]
  %v60 = vld [vmem:[%s1 + $0x28] sm:$0xf]
  %v61 = vld [vmem:[%s1 + $0x2c] sm:$0xf]
  %v62 = vld [vmem:[%s1 + $0x30] sm:$0xf]
  %v63 = vld [vmem:[%s1 + $0x34] sm:$0xf]
  %v64 = vld [vmem:[%s1 + $0x38] sm:$0xf]
  %v65 = vld [vmem:[%s1 + $0x3c] sm:$0xf]
  %v66 = vld [vmem:[%s1 + $0x40] sm:$0xf]
  %v67 = vld [vmem:[%s1 + $0x44] sm:$0xf]
  %v68 = vld [vmem:[%s1 + $0x48] sm:$0xf]
  %v69 = vld [vmem:[%s1 + $0x4c] sm:$0xf]
  %v70 = vld [vmem:[%s1 + $0x50] sm:$0xf]
  %v71 = vld [vmem:[%s1 + $0x54] sm:$0xf]
  %v72 = vld [vmem:[%s1 + $0x58] sm:$0xf]
  %v73 = vld [vmem:[%s1 + $0x5c] sm:$0xf]
  %v74 = vld [vmem:[%s1 + $0x60] sm:$0xf]
  %v75 = vld [vmem:[%s1 + $0x64] sm:$0xf]
  %v76 = vld [vmem:[%s1 + $0x68] sm:$0xf]
  %v77 = vld [vmem:[%s1 + $0x6c] sm:$0xf]
  %v78 = vld [vmem:[%s1 + $0x70] sm:$0xf]
  %v79 = vld [vmem:[%s1 + $0x74] sm:$0xf]
  %v80 = vld [vmem:[%s1 + $0x78] sm:$0xf]
  %v81 = vld [vmem:[%s1 + $0x7c] sm:$0xf]
  %v82 = vld [vmem:[%s1 + $0x80] sm:$0xf]
  %v83 = vld [vmem:[%s1 + $0x84] sm:$0xf]
  %v84 = vld [vmem:[%s1 + $0x88] sm:$0xf]
  %v85 = vld [vmem:[%s1 + $0x8c] sm:$0xf]
  %v118 = vunpack.c.l.b16 %v18
  %v119 = vunpack.c.h.b16 %v18
  %v120 = vunpack.c.l.b16 %v19
  %v121 = vunpack.c.l.b16 %v20
  %v122 = vunpack.c.h.b16 %v20
  %v123 = vunpack.c.l.b16 %v21
  %v124 = vunpack.c.l.b16 %v22
  %v125 = vunpack.c.h.b16 %v22
  %v126 = vunpack.c.l.b16 %v23
  %v127 = vunpack.c.l.b16 %v24
  %v128 = vunpack.c.h.b16 %v24
  %v129 = vunpack.c.l.b16 %v25
  %v130 = vunpack.c.l.b16 %v26
  %v131 = vunpack.c.h.b16 %v26
  %v132 = vunpack.c.l.b16 %v27
  %v133 = vunpack.c.l.b16 %v28
  %v134 = vunpack.c.h.b16 %v28
  %v135 = vunpack.c.l.b16 %v29
  %v136 = vunpack.c.l.b16 %v30
  %v137 = vunpack.c.h.b16 %v30
  %v138 = vunpack.c.l.b16 %v31
  %v139 = vunpack.c.l.b16 %v32
  %v140 = vunpack.c.h.b16 %v32
  %v141 = vunpack.c.l.b16 %v33
  %v142 = vunpack.c.l.b16 %v34
  %v143 = vunpack.c.h.b16 %v34
  %v144 = vunpack.c.l.b16 %v35
  %v145 = vunpack.c.l.b16 %v36
  %v146 = vunpack.c.h.b16 %v36
  %v147 = vunpack.c.l.b16 %v37
  %v148 = vunpack.c.l.b16 %v38
  %v149 = vunpack.c.h.b16 %v38
  %v150 = vunpack.c.l.b16 %v39
  %v151 = vunpack.c.l.b16 %v40
  %v152 = vunpack.c.h.b16 %v40
  %v153 = vunpack.c.l.b16 %v41
  %v154 = vunpack.c.l.b16 %v42
  %v155 = vunpack.c.h.b16 %v42
  %v156 = vunpack.c.l.b16 %v43
  %v157 = vunpack.c.l.b16 %v44
  %v158 = vunpack.c.h.b16 %v44
  %v159 = vunpack.c.l.b16 %v45
  %v160 = vunpack.c.l.b16 %v46
  %v161 = vunpack.c.h.b16 %v46
  %v162 = vunpack.c.l.b16 %v47
  %v163 = vunpack.c.l.b16 %v48
  %v164 = vunpack.c.h.b16 %v48
  %v165 = vunpack.c.l.b16 %v49
  %v166 = vpack.c.b16 %v121, %v118
  %v167 = vpack.c.b16 %v122, %v119
  %v168 = vpack.c.b16 %v123, %v120
  %v169 = vpack.c.b16 %v127, %v124
  %v170 = vpack.c.b16 %v128, %v125
  %v171 = vpack.c.b16 %v129, %v126
  %v172 = vpack.c.b16 %v133, %v130
  %v173 = vpack.c.b16 %v134, %v131
  %v174 = vpack.c.b16 %v135, %v132
  %v175 = vpack.c.b16 %v139, %v136
  %v176 = vpack.c.b16 %v140, %v137
  %v177 = vpack.c.b16 %v141, %v138
  %v178 = vpack.c.b16 %v145, %v142
  %v179 = vpack.c.b16 %v146, %v143
  %v180 = vpack.c.b16 %v147, %v144
  %v181 = vpack.c.b16 %v151, %v148
  %v182 = vpack.c.b16 %v152, %v149
  %v183 = vpack.c.b16 %v153, %v150
  %v184 = vpack.c.b16 %v157, %v154
  %v185 = vpack.c.b16 %v158, %v155
  %v186 = vpack.c.b16 %v159, %v156
  %v187 = vpack.c.b16 %v163, %v160
  %v188 = vpack.c.b16 %v164, %v161
  %v189 = vpack.c.b16 %v165, %v162
  %v242 = vunpack.c.l.b16 %v50
  %v243 = vunpack.c.l.b16 %v51
  %v244 = vunpack.c.l.b16 %v52
  %v245 = vunpack.c.l.b16 %v53
  %v246 = vunpack.c.l.b16 %v54
  %v247 = vunpack.c.l.b16 %v55
  %v248 = vunpack.c.l.b16 %v56
  %v249 = vunpack.c.l.b16 %v57
  %v250 = vunpack.c.l.b16 %v58
  %v251 = vunpack.c.l.b16 %v59
  %v252 = vunpack.c.l.b16 %v60
  %v253 = vunpack.c.l.b16 %v61
  %v254 = vunpack.c.l.b16 %v62
  %v255 = vunpack.c.l.b16 %v63
  %v256 = vunpack.c.l.b16 %v64
  %v257 = vunpack.c.l.b16 %v65
  %v258 = vunpack.c.l.b16 %v66
  %v259 = vunpack.c.l.b16 %v67
  %v260 = vunpack.c.l.b16 %v68
  %v261 = vunpack.c.l.b16 %v69
  %v262 = vunpack.c.l.b16 %v70
  %v263 = vunpack.c.l.b16 %v71
  %v264 = vunpack.c.l.b16 %v72
  %v265 = vunpack.c.l.b16 %v73
  %v266 = vunpack.c.l.b16 %v74
  %v267 = vunpack.c.l.b16 %v75
  %v268 = vunpack.c.l.b16 %v76
  %v269 = vunpack.c.l.b16 %v77
  %v270 = vunpack.c.l.b16 %v78
  %v271 = vunpack.c.l.b16 %v79
  %v272 = vunpack.c.l.b16 %v80
  %v273 = vunpack.c.l.b16 %v81
  %v274 = vunpack.c.l.b16 %v82
  %v275 = vunpack.c.l.b16 %v83
  %v276 = vunpack.c.l.b16 %v84
  %v277 = vunpack.c.l.b16 %v85
  %v278 = vpack.c.b16 %v243, %v242
  %v279 = vpack.c.b16 %v245, %v244
  %v280 = vpack.c.b16 %v247, %v246
  %v281 = vpack.c.b16 %v249, %v248
  %v282 = vpack.c.b16 %v251, %v250
  %v283 = vpack.c.b16 %v253, %v252
  %v284 = vpack.c.b16 %v255, %v254
  %v285 = vpack.c.b16 %v257, %v256
  %v286 = vpack.c.b16 %v259, %v258
  %v287 = vpack.c.b16 %v261, %v260
  %v288 = vpack.c.b16 %v263, %v262
  %v289 = vpack.c.b16 %v265, %v264
  %v290 = vpack.c.b16 %v267, %v266
  %v291 = vpack.c.b16 %v269, %v268
  %v292 = vpack.c.b16 %v271, %v270
  %v293 = vpack.c.b16 %v273, %v272
  %v294 = vpack.c.b16 %v275, %v274
  %v295 = vpack.c.b16 %v277, %v276
  %vm314 = vcmask 261120
  %v316 = vsel %vm314, %v168, 0
  %v319 = vsel %vm314, %v171, 0
  %v322 = vsel %vm314, %v174, 0
  %v325 = vsel %vm314, %v177, 0
  %v328 = vsel %vm314, %v180, 0
  %v331 = vsel %vm314, %v183, 0
  %v334 = vsel %vm314, %v186, 0
  %v337 = vsel %vm314, %v189, 0
  %339 = vmatprep.subr.bf16.mxu0 0
  %340 = vmatpush1.bf16.msra.mxu0 %v285
  %341 = vmatprep.subr.bf16.mxu0 0
  %342 = vmatpush1.bf16.msra.mxu0 %v284
  %343 = vmatprep.subr.bf16.mxu0 0
  %344 = vmatpush1.bf16.msra.mxu0 %v283
  %345 = vmatprep.subr.bf16.mxu0 0
  %346 = vmatpush1.bf16.msra.mxu0 %v282
  %347 = vmatprep.subr.bf16.mxu0 0
  %348 = vmatpush1.bf16.msra.mxu0 %v281
  %349 = vmatprep.subr.bf16.mxu0 0
  %350 = vmatpush1.bf16.msra.mxu0 %v280
  %351 = vmatprep.subr.bf16.mxu0 0
  %352 = vmatpush1.bf16.msra.mxu0 %v279
  %353 = vmatprep.subr.bf16.mxu0 0
  %354 = vmatpush1.bf16.msra.mxu0 %v278
  %355 = vmatprep.subr.bf16.mxu0 0
  %356 = vmatpush2.bf16.msra.mxu0 %v293
  %357 = vmatprep.subr.bf16.mxu0 0
  %358 = vmatpush2.bf16.msra.mxu0 %v292
  %359 = vmatprep.subr.bf16.mxu0 0
  %360 = vmatpush2.bf16.msra.mxu0 %v291
  %361 = vmatprep.subr.bf16.mxu0 0
  %362 = vmatpush2.bf16.msra.mxu0 %v290
  %363 = vmatprep.subr.bf16.mxu0 0
  %364 = vmatpush2.bf16.msra.mxu0 %v289
  %365 = vmatprep.subr.bf16.mxu0 0
  %366 = vmatpush2.bf16.msra.mxu0 %v288
  %367 = vmatprep.subr.bf16.mxu0 0
  %368 = vmatpush2.bf16.msra.mxu0 %v287
  %369 = vmatprep.subr.bf16.mxu0 0
  %370 = vmatpush2.bf16.msra.mxu0 %v286
  %371 = vmatprep.mubr.bf16.mxu0 %v167
  %372 = vmatmul.mubr.bf16.gmra.mxu0 %v166
  %v373 = vpop.f32.mrf.mxu0
  %v374 = vadd.f32 0.0, %v373
  %v375 = vpop.f32.mrf.mxu0
  %v376 = vpop.f32.mrf.mxu0
  %v377 = vadd.f32 0.0, %v376
  %v378 = vpop.f32.mrf.mxu0
  %379 = vmatprep.mubr.bf16.mxu0 %v170
  %380 = vmatmul.mubr.bf16.gmra.mxu0 %v169
  %v381 = vpop.f32.mrf.mxu0
  %v382 = vadd.f32 0.0, %v381
  %v383 = vpop.f32.mrf.mxu0
  %v384 = vpop.f32.mrf.mxu0
  %v385 = vadd.f32 0.0, %v384
  %v386 = vpop.f32.mrf.mxu0
  %387 = vmatprep.mubr.bf16.mxu0 %v173
  %388 = vmatmul.mubr.bf16.gmra.mxu0 %v172
  %v389 = vpop.f32.mrf.mxu0
  %v390 = vadd.f32 0.0, %v389
  %v391 = vpop.f32.mrf.mxu0
  %v392 = vpop.f32.mrf.mxu0
  %v393 = vadd.f32 0.0, %v392
  %v394 = vpop.f32.mrf.mxu0
  %395 = vmatprep.mubr.bf16.mxu0 %v176
  %396 = vmatmul.mubr.bf16.gmra.mxu0 %v175
  %v397 = vpop.f32.mrf.mxu0
  %v398 = vadd.f32 0.0, %v397
  %v399 = vpop.f32.mrf.mxu0
  %v400 = vpop.f32.mrf.mxu0
  %v401 = vadd.f32 0.0, %v400
  %v402 = vpop.f32.mrf.mxu0
  %403 = vmatprep.mubr.bf16.mxu0 %v179
  %404 = vmatmul.mubr.bf16.gmra.mxu0 %v178
  %v405 = vpop.f32.mrf.mxu0
  %v406 = vadd.f32 0.0, %v405
  %v407 = vpop.f32.mrf.mxu0
  %v408 = vpop.f32.mrf.mxu0
  %v409 = vadd.f32 0.0, %v408
  %v410 = vpop.f32.mrf.mxu0
  %411 = vmatprep.mubr.bf16.mxu0 %v182
  %412 = vmatmul.mubr.bf16.gmra.mxu0 %v181
  %v413 = vpop.f32.mrf.mxu0
  %v414 = vadd.f32 0.0, %v413
  %v415 = vpop.f32.mrf.mxu0
  %v416 = vpop.f32.mrf.mxu0
  %v417 = vadd.f32 0.0, %v416
  %v418 = vpop.f32.mrf.mxu0
  %419 = vmatprep.mubr.bf16.mxu0 %v185
  %420 = vmatmul.mubr.bf16.gmra.mxu0 %v184
  %v421 = vpop.f32.mrf.mxu0
  %v422 = vadd.f32 0.0, %v421
  %v423 = vpop.f32.mrf.mxu0
  %v424 = vpop.f32.mrf.mxu0
  %v425 = vadd.f32 0.0, %v424
  %v426 = vpop.f32.mrf.mxu0
  %427 = vmatprep.mubr.bf16.mxu0 %v188
  %428 = vmatmul.mubr.bf16.gmra.mxu0 %v187
  %v429 = vpop.f32.mrf.mxu0
  %v430 = vadd.f32 0.0, %v429
  %v431 = vpop.f32.mrf.mxu0
  %v432 = vpop.f32.mrf.mxu0
  %v433 = vadd.f32 0.0, %v432
  %v434 = vpop.f32.mrf.mxu0
  %435 = vdwg.mxu0
  %436 = vmatprep.subr.bf16.mxu0 0
  %437 = vmatpush1.bf16.msra.mxu0 0
  %438 = vmatprep.subr.bf16.mxu0 0
  %439 = vmatpush1.bf16.msra.mxu0 0
  %440 = vmatprep.subr.bf16.mxu0 0
  %441 = vmatpush1.bf16.msra.mxu0 0
  %442 = vmatprep.subr.bf16.mxu0 0
  %443 = vmatpush1.bf16.msra.mxu0 0
  %444 = vmatprep.subr.bf16.mxu0 0
  %445 = vmatpush1.bf16.msra.mxu0 0
  %446 = vmatprep.subr.bf16.mxu0 0
  %447 = vmatpush1.bf16.msra.mxu0 0
  %448 = vmatprep.subr.bf16.mxu0 0
  %449 = vmatpush1.bf16.msra.mxu0 %v295
  %450 = vmatprep.subr.bf16.mxu0 0
  %451 = vmatpush1.bf16.msra.mxu0 %v294
  %452 = vmatprep.subr.bf16.mxu0 0
  %453 = vmatpush2.bf16.msra.mxu0 0
  %454 = vmatprep.subr.bf16.mxu0 0
  %455 = vmatpush2.bf16.msra.mxu0 0
  %456 = vmatprep.subr.bf16.mxu0 0
  %457 = vmatpush2.bf16.msra.mxu0 0
  %458 = vmatprep.subr.bf16.mxu0 0
  %459 = vmatpush2.bf16.msra.mxu0 0
  %460 = vmatprep.subr.bf16.mxu0 0
  %461 = vmatpush2.bf16.msra.mxu0 0
  %462 = vmatprep.subr.bf16.mxu0 0
  %463 = vmatpush2.bf16.msra.mxu0 0
  %464 = vmatprep.subr.bf16.mxu0 0
  %465 = vmatpush2.bf16.msra.mxu0 0
  %466 = vmatprep.subr.bf16.mxu0 0
  %467 = vmatpush2.bf16.msra.mxu0 0
  %468 = vmatprep.mubr.bf16.mxu0 0
  %469 = vmatmul.mubr.bf16.gmra.mxu0 %v316
  %v470 = vpop.f32.mrf.mxu0
  %v471 = vadd.f32 %v374, %v470
  %v472 = vpop.f32.mrf.mxu0
  %v473 = vpop.f32.mrf.mxu0
  %v474 = vadd.f32 %v377, %v473
  %v475 = vpop.f32.mrf.mxu0
  %476 = vmatprep.mubr.bf16.mxu0 0
  %477 = vmatmul.mubr.bf16.gmra.mxu0 %v319
  %v478 = vpop.f32.mrf.mxu0
  %v479 = vadd.f32 %v382, %v478
  %v480 = vpop.f32.mrf.mxu0
  %v481 = vpop.f32.mrf.mxu0
  %v482 = vadd.f32 %v385, %v481
  %v483 = vpop.f32.mrf.mxu0
  %484 = vmatprep.mubr.bf16.mxu0 0
  %485 = vmatmul.mubr.bf16.gmra.mxu0 %v322
  %v486 = vpop.f32.mrf.mxu0
  %v487 = vadd.f32 %v390, %v486
  %v488 = vpop.f32.mrf.mxu0
  %v489 = vpop.f32.mrf.mxu0
  %v490 = vadd.f32 %v393, %v489
  %v491 = vpop.f32.mrf.mxu0
  %492 = vmatprep.mubr.bf16.mxu0 0
  %493 = vmatmul.mubr.bf16.gmra.mxu0 %v325
  %v494 = vpop.f32.mrf.mxu0
  %v495 = vadd.f32 %v398, %v494
  %v496 = vpop.f32.mrf.mxu0
  %v497 = vpop.f32.mrf.mxu0
  %v498 = vadd.f32 %v401, %v497
  %v499 = vpop.f32.mrf.mxu0
  %500 = vmatprep.mubr.bf16.mxu0 0
  %501 = vmatmul.mubr.bf16.gmra.mxu0 %v328
  %v502 = vpop.f32.mrf.mxu0
  %v503 = vadd.f32 %v406, %v502
  %v504 = vpop.f32.mrf.mxu0
  %v505 = vpop.f32.mrf.mxu0
  %v506 = vadd.f32 %v409, %v505
  %v507 = vpop.f32.mrf.mxu0
  %508 = vmatprep.mubr.bf16.mxu0 0
  %509 = vmatmul.mubr.bf16.gmra.mxu0 %v331
  %v510 = vpop.f32.mrf.mxu0
  %v511 = vadd.f32 %v414, %v510
  %v512 = vpop.f32.mrf.mxu0
  %v513 = vpop.f32.mrf.mxu0
  %v514 = vadd.f32 %v417, %v513
  %v515 = vpop.f32.mrf.mxu0
  %516 = vmatprep.mubr.bf16.mxu0 0
  %517 = vmatmul.mubr.bf16.gmra.mxu0 %v334
  %v518 = vpop.f32.mrf.mxu0
  %v519 = vadd.f32 %v422, %v518
  %v520 = vpop.f32.mrf.mxu0
  %v521 = vpop.f32.mrf.mxu0
  %v522 = vadd.f32 %v425, %v521
  %v523 = vpop.f32.mrf.mxu0
  %524 = vmatprep.mubr.bf16.mxu0 0
  %525 = vmatmul.mubr.bf16.gmra.mxu0 %v337
  %v526 = vpop.f32.mrf.mxu0
  %v527 = vadd.f32 %v430, %v526
  %v528 = vpop.f32.mrf.mxu0
  %v529 = vpop.f32.mrf.mxu0
  %v530 = vadd.f32 %v433, %v529
  %v531 = vpop.f32.mrf.mxu0
  %532 = vdwg.mxu0
  %v533 = vld [vmem:[%s2] sm:$0xff]
  %v534 = vld [vmem:[%s2 + $0x8] sm:$0xff]
  %v535 = vld [vmem:[%s2 + $0x10] sm:$0xff]
  %v536 = vld [vmem:[%s2 + $0x18] sm:$0xff]
  %v537 = vld [vmem:[%s2 + $0x20] sm:$0xff]
  %v538 = vld [vmem:[%s2 + $0x28] sm:$0xff]
  %v539 = vld [vmem:[%s2 + $0x30] sm:$0xff]
  %v540 = vld [vmem:[%s2 + $0x38] sm:$0xff]
  %v541 = vld [vmem:[%s2 + $0x40] sm:$0xff]
  %v542 = vld [vmem:[%s2 + $0x48] sm:$0xff]
  %v543 = vld [vmem:[%s2 + $0x50] sm:$0xff]
  %v544 = vld [vmem:[%s2 + $0x58] sm:$0xff]
  %v545 = vld [vmem:[%s2 + $0x60] sm:$0xff]
  %v546 = vld [vmem:[%s2 + $0x68] sm:$0xff]
  %v547 = vld [vmem:[%s2 + $0x70] sm:$0xff]
  %v548 = vld [vmem:[%s2 + $0x78] sm:$0xff]
  %550 = vset.pattern.permute.xlu0 0
  %551 = vperm.xlu0 %550, %v533
  %v552 = vpop.permute.xlu0 %551
  %555 = vset.pattern.permute.xlu0 0
  %556 = vperm.xlu0 %555, %v534
  %v557 = vpop.permute.xlu0 %556
  %560 = vset.pattern.permute.xlu0 0
  %561 = vperm.xlu0 %560, %v535
  %v562 = vpop.permute.xlu0 %561
  %565 = vset.pattern.permute.xlu0 0
  %566 = vperm.xlu0 %565, %v536
  %v567 = vpop.permute.xlu0 %566
  %570 = vset.pattern.permute.xlu0 0
  %571 = vperm.xlu0 %570, %v537
  %v572 = vpop.permute.xlu0 %571
  %575 = vset.pattern.permute.xlu0 0
  %576 = vperm.xlu0 %575, %v538
  %v577 = vpop.permute.xlu0 %576
  %580 = vset.pattern.permute.xlu0 0
  %581 = vperm.xlu0 %580, %v539
  %v582 = vpop.permute.xlu0 %581
  %585 = vset.pattern.permute.xlu0 0
  %586 = vperm.xlu0 %585, %v540
  %v587 = vpop.permute.xlu0 %586
  %590 = vset.pattern.permute.xlu0 0
  %591 = vperm.xlu0 %590, %v541
  %v592 = vpop.permute.xlu0 %591
  %595 = vset.pattern.permute.xlu0 0
  %596 = vperm.xlu0 %595, %v542
  %v597 = vpop.permute.xlu0 %596
  %600 = vset.pattern.permute.xlu0 0
  %601 = vperm.xlu0 %600, %v543
  %v602 = vpop.permute.xlu0 %601
  %605 = vset.pattern.permute.xlu0 0
  %606 = vperm.xlu0 %605, %v544
  %v607 = vpop.permute.xlu0 %606
  %610 = vset.pattern.permute.xlu0 0
  %611 = vperm.xlu0 %610, %v545
  %v612 = vpop.permute.xlu0 %611
  %615 = vset.pattern.permute.xlu0 0
  %616 = vperm.xlu0 %615, %v546
  %v617 = vpop.permute.xlu0 %616
  %620 = vset.pattern.permute.xlu0 0
  %621 = vperm.xlu0 %620, %v547
  %v622 = vpop.permute.xlu0 %621
  %625 = vset.pattern.permute.xlu0 0
  %626 = vperm.xlu0 %625, %v548
  %v627 = vpop.permute.xlu0 %626
  %v629 = vmul.f32 %v471, %v552
  %v630 = vmul.f32 %v474, %v557
  %v631 = vmul.f32 %v479, %v562
  %v632 = vmul.f32 %v482, %v567
  %v633 = vmul.f32 %v487, %v572
  %v634 = vmul.f32 %v490, %v577
  %v635 = vmul.f32 %v495, %v582
  %v636 = vmul.f32 %v498, %v587
  %v637 = vmul.f32 %v503, %v592
  %v638 = vmul.f32 %v506, %v597
  %v639 = vmul.f32 %v511, %v602
  %v640 = vmul.f32 %v514, %v607
  %v641 = vmul.f32 %v519, %v612
  %v642 = vmul.f32 %v522, %v617
  %v643 = vmul.f32 %v527, %v622
  %v644 = vmul.f32 %v530, %v627
  %v645 = vld [vmem:[%s3] sm:$0xff]
  %v646 = vld [vmem:[%s3 + $0x8] sm:$0xff]
  %v647 = vld [vmem:[%s3 + $0x10] sm:$0xff]
  %v648 = vld [vmem:[%s3 + $0x18] sm:$0xff]
  %v649 = vld [vmem:[%s3 + $0x20] sm:$0xff]
  %v650 = vld [vmem:[%s3 + $0x28] sm:$0xff]
  %v651 = vld [vmem:[%s3 + $0x30] sm:$0xff]
  %v652 = vld [vmem:[%s3 + $0x38] sm:$0xff]
  %v653 = vld [vmem:[%s3 + $0x40] sm:$0xff]
  %v654 = vld [vmem:[%s3 + $0x48] sm:$0xff]
  %v655 = vld [vmem:[%s3 + $0x50] sm:$0xff]
  %v656 = vld [vmem:[%s3 + $0x58] sm:$0xff]
  %v657 = vld [vmem:[%s3 + $0x60] sm:$0xff]
  %v658 = vld [vmem:[%s3 + $0x68] sm:$0xff]
  %v659 = vld [vmem:[%s3 + $0x70] sm:$0xff]
  %v660 = vld [vmem:[%s3 + $0x78] sm:$0xff]
  %662 = vset.pattern.permute.xlu0 0
  %663 = vperm.xlu0 %662, %v645
  %v664 = vpop.permute.xlu0 %663
  %667 = vset.pattern.permute.xlu0 0
  %668 = vperm.xlu0 %667, %v646
  %v669 = vpop.permute.xlu0 %668
  %672 = vset.pattern.permute.xlu0 0
  %673 = vperm.xlu0 %672, %v647
  %v674 = vpop.permute.xlu0 %673
  %677 = vset.pattern.permute.xlu0 0
  %678 = vperm.xlu0 %677, %v648
  %v679 = vpop.permute.xlu0 %678
  %682 = vset.pattern.permute.xlu0 0
  %683 = vperm.xlu0 %682, %v649
  %v684 = vpop.permute.xlu0 %683
  %687 = vset.pattern.permute.xlu0 0
  %688 = vperm.xlu0 %687, %v650
  %v689 = vpop.permute.xlu0 %688
  %692 = vset.pattern.permute.xlu0 0
  %693 = vperm.xlu0 %692, %v651
  %v694 = vpop.permute.xlu0 %693
  %697 = vset.pattern.permute.xlu0 0
  %698 = vperm.xlu0 %697, %v652
  %v699 = vpop.permute.xlu0 %698
  %702 = vset.pattern.permute.xlu0 0
  %703 = vperm.xlu0 %702, %v653
  %v704 = vpop.permute.xlu0 %703
  %707 = vset.pattern.permute.xlu0 0
  %708 = vperm.xlu0 %707, %v654
  %v709 = vpop.permute.xlu0 %708
  %712 = vset.pattern.permute.xlu0 0
  %713 = vperm.xlu0 %712, %v655
  %v714 = vpop.permute.xlu0 %713
  %717 = vset.pattern.permute.xlu0 0
  %718 = vperm.xlu0 %717, %v656
  %v719 = vpop.permute.xlu0 %718
  %722 = vset.pattern.permute.xlu0 0
  %723 = vperm.xlu0 %722, %v657
  %v724 = vpop.permute.xlu0 %723
  %727 = vset.pattern.permute.xlu0 0
  %728 = vperm.xlu0 %727, %v658
  %v729 = vpop.permute.xlu0 %728
  %732 = vset.pattern.permute.xlu0 0
  %733 = vperm.xlu0 %732, %v659
  %v734 = vpop.permute.xlu0 %733
  %737 = vset.pattern.permute.xlu0 0
  %738 = vperm.xlu0 %737, %v660
  %v739 = vpop.permute.xlu0 %738
  %v741 = vadd.f32 %v629, %v664
  %v742 = vadd.f32 %v630, %v669
  %v743 = vadd.f32 %v631, %v674
  %v744 = vadd.f32 %v632, %v679
  %v745 = vadd.f32 %v633, %v684
  %v746 = vadd.f32 %v634, %v689
  %v747 = vadd.f32 %v635, %v694
  %v748 = vadd.f32 %v636, %v699
  %v749 = vadd.f32 %v637, %v704
  %v750 = vadd.f32 %v638, %v709
  %v751 = vadd.f32 %v639, %v714
  %v752 = vadd.f32 %v640, %v719
  %v753 = vadd.f32 %v641, %v724
  %v754 = vadd.f32 %v642, %v729
  %v755 = vadd.f32 %v643, %v734
  %v756 = vadd.f32 %v644, %v739
  %v757 = vlaneseq
  %v758 = vshrl.u32 %v757, 7
  %v759 = vadd.s32 %v758, 8
  %v760 = vadd.s32 %v758, 16
  %v761 = vadd.s32 %v758, 24
  %v762 = vadd.s32 %v758, 32
  %v763 = vadd.s32 %v758, 40
  %v764 = vadd.s32 %v758, 48
  %v765 = vadd.s32 %v758, 56
  %v766 = vadd.s32 %v758, 64
  %v767 = vadd.s32 %v758, 72
  %v768 = vadd.s32 %v758, 80
  %v769 = vadd.s32 %v758, 88
  %v770 = vadd.s32 %v758, 96
  %v771 = vadd.s32 %v758, 104
  %v772 = vadd.s32 %v758, 112
  %v773 = vadd.s32 %v758, 120
  %vm774 = vcmp.lt.s32.totalorder %v758, 64
  %vm775 = vcmp.lt.s32.totalorder %v759, 64
  %vm776 = vcmp.lt.s32.totalorder %v760, 64
  %vm777 = vcmp.lt.s32.totalorder %v761, 64
  %vm778 = vcmp.lt.s32.totalorder %v762, 64
  %vm779 = vcmp.lt.s32.totalorder %v763, 64
  %vm780 = vcmp.lt.s32.totalorder %v764, 64
  %vm781 = vcmp.lt.s32.totalorder %v765, 64
  %vm782 = vcmp.lt.s32.totalorder %v766, 64
  %vm783 = vcmp.lt.s32.totalorder %v767, 64
  %vm784 = vcmp.lt.s32.totalorder %v768, 64
  %vm785 = vcmp.lt.s32.totalorder %v769, 64
  %vm786 = vcmp.lt.s32.totalorder %v770, 64
  %vm787 = vcmp.lt.s32.totalorder %v771, 64
  %vm788 = vcmp.lt.s32.totalorder %v772, 64
  %vm789 = vcmp.lt.s32.totalorder %v773, 64
  %vm790 = vcmp.lt.f32.partialorder %v741, 0.0
  %vm791 = vcmp.lt.f32.partialorder %v742, 0.0
  %vm792 = vcmp.lt.f32.partialorder %v743, 0.0
  %vm793 = vcmp.lt.f32.partialorder %v744, 0.0
  %vm794 = vcmp.lt.f32.partialorder %v745, 0.0
  %vm795 = vcmp.lt.f32.partialorder %v746, 0.0
  %vm796 = vcmp.lt.f32.partialorder %v747, 0.0
  %vm797 = vcmp.lt.f32.partialorder %v748, 0.0
  %vm798 = vcmp.lt.f32.partialorder %v749, 0.0
  %vm799 = vcmp.lt.f32.partialorder %v750, 0.0
  %vm800 = vcmp.lt.f32.partialorder %v751, 0.0
  %vm801 = vcmp.lt.f32.partialorder %v752, 0.0
  %vm802 = vcmp.lt.f32.partialorder %v753, 0.0
  %vm803 = vcmp.lt.f32.partialorder %v754, 0.0
  %vm804 = vcmp.lt.f32.partialorder %v755, 0.0
  %vm805 = vcmp.lt.f32.partialorder %v756, 0.0
  %vm806 = vmand %vm774, %vm790
  %vm807 = vmand %vm775, %vm791
  %vm808 = vmand %vm776, %vm792
  %vm809 = vmand %vm777, %vm793
  %vm810 = vmand %vm778, %vm794
  %vm811 = vmand %vm779, %vm795
  %vm812 = vmand %vm780, %vm796
  %vm813 = vmand %vm781, %vm797
  %vm814 = vmand %vm782, %vm798
  %vm815 = vmand %vm783, %vm799
  %vm816 = vmand %vm784, %vm800
  %vm817 = vmand %vm785, %vm801
  %vm818 = vmand %vm786, %vm802
  %vm819 = vmand %vm787, %vm803
  %vm820 = vmand %vm788, %vm804
  %vm821 = vmand %vm789, %vm805
  %v822 = vmul.f32 %v741, 0.01
  %v823 = vmul.f32 %v742, 0.01
  %v824 = vmul.f32 %v743, 0.01
  %v825 = vmul.f32 %v744, 0.01
  %v826 = vmul.f32 %v745, 0.01
  %v827 = vmul.f32 %v746, 0.01
  %v828 = vmul.f32 %v747, 0.01
  %v829 = vmul.f32 %v748, 0.01
  %v830 = vmul.f32 %v749, 0.01
  %v831 = vmul.f32 %v750, 0.01
  %v832 = vmul.f32 %v751, 0.01
  %v833 = vmul.f32 %v752, 0.01
  %v834 = vmul.f32 %v753, 0.01
  %v835 = vmul.f32 %v754, 0.01
  %v836 = vmul.f32 %v755, 0.01
  %v837 = vmul.f32 %v756, 0.01
  %v838 = vsel %vm806, %v822, %v741
  %v839 = vsel %vm807, %v823, %v742
  %v840 = vsel %vm808, %v824, %v743
  %v841 = vsel %vm809, %v825, %v744
  %v842 = vsel %vm810, %v826, %v745
  %v843 = vsel %vm811, %v827, %v746
  %v844 = vsel %vm812, %v828, %v747
  %v845 = vsel %vm813, %v829, %v748
  %v846 = vsel %vm814, %v830, %v749
  %v847 = vsel %vm815, %v831, %v750
  %v848 = vsel %vm816, %v832, %v751
  %v849 = vsel %vm817, %v833, %v752
  %v850 = vsel %vm818, %v834, %v753
  %v851 = vsel %vm819, %v835, %v754
  %v852 = vsel %vm820, %v836, %v755
  %v853 = vsel %vm821, %v837, %v756
  %854 = vst [vmem:[%s4] sm:$0xff] %v838
  %855 = vst [vmem:[%s4 + $0x8] sm:$0xff] %v839
  %856 = vst [vmem:[%s4 + $0x10] sm:$0xff] %v840
  %857 = vst [vmem:[%s4 + $0x18] sm:$0xff] %v841
  %858 = vst [vmem:[%s4 + $0x20] sm:$0xff] %v842
  %859 = vst [vmem:[%s4 + $0x28] sm:$0xff] %v843
  %860 = vst [vmem:[%s4 + $0x30] sm:$0xff] %v844
  %861 = vst [vmem:[%s4 + $0x38] sm:$0xff] %v845
  %862 = vst [vmem:[%s4 + $0x40] sm:$0xff] %v846
  %863 = vst [vmem:[%s4 + $0x48] sm:$0xff] %v847
  %864 = vst [vmem:[%s4 + $0x50] sm:$0xff] %v848
  %865 = vst [vmem:[%s4 + $0x58] sm:$0xff] %v849
  %866 = vst [vmem:[%s4 + $0x60] sm:$0xff] %v850
  %867 = vst [vmem:[%s4 + $0x68] sm:$0xff] %v851
  %868 = vst [vmem:[%s4 + $0x70] sm:$0xff] %v852
  %869 = vst [vmem:[%s4 + $0x78] sm:$0xff] %v853
  // Predicated region
  $region18: #{breast_cnn_forward.26} parent=0 // pred_check
    _
  $region19: #{breast_cnn_forward.26} parent=0 // pred_check_branch
    %871 = sbr.rel (0) target = $region21
  $region20: #{breast_cnn_forward.26} parent=0 // pred_region
    _
  $region21: #{breast_cnn_forward.26} parent=0 // pred_fallthru
    _
  // Predicated region
  $region22: #{breast_cnn_forward.26} parent=0 // pred_check
    _
  $region23: #{breast_cnn_forward.26} parent=0 // pred_check_branch
    %873 = sbr.rel (0) target = $region25
  $region24: #{breast_cnn_forward.26} parent=0 // pred_region
    _
  $region25: #{breast_cnn_forward.26} parent=0 // pred_fallthru
    _

// kernel: breast_cnn_forward.27
$region0: #{breast_cnn_forward.27}
  #allocation0 [shape = 'u32[]', space=smem, size = 0x4, offset = 0x4, fixed_abs, tag = 'smem constant byte address 0x4 - core index']
  #allocation1 [shape = 'u32[144,128]{1,0:T(1,128)}', space=vmem, size = 0x12000, scoped, tag = 'internal scratch']
  %s0 = inlined_call_operand.vmem [shape: bf16[64,576], index: 0, kind: input, shape index: {}]
  %s1 = inlined_call_operand.vmem [shape: bf16[576,128], index: 1, kind: input, shape index: {}]
  %s2 = inlined_call_operand.vmem [shape: f32[64,1], index: 2, kind: input, shape index: {}]
  %s3 = inlined_call_operand.vmem [shape: f32[64,1], index: 3, kind: input, shape index: {}]
  %s4 = inlined_call_operand.vmem [shape: f32[64,128], index: 4, kind: input, shape index: {}]
  %s5 = inlined_call_operand.vmem [shape: bf16[64,128], index: 5, kind: output, shape index: {}]
  %s6 = sld [smem:[#allocation0]]
  $region30: #{breast_cnn_forward.27} parent=0
    _
  %s8 = ssub.s32 1, %s6
  %s9 = scalar_select 0, %s8, %s6
  // Predicated region
  $region2: #{breast_cnn_forward.27} parent=0 // pred_check
    _
  $region3: #{breast_cnn_forward.27} parent=0 // pred_check_branch
    %11 = sbr.rel (0) target = $region5
  $region4: #{breast_cnn_forward.27} parent=0 // pred_region
    _
  $region5: #{breast_cnn_forward.27} parent=0 // pred_fallthru
    _
  // Predicated region
  $region6: #{breast_cnn_forward.27} parent=0 // pred_check
    _
  $region7: #{breast_cnn_forward.27} parent=0 // pred_check_branch
    %13 = sbr.rel (0) target = $region9
  $region8: #{breast_cnn_forward.27} parent=0 // pred_region
    _
  $region9: #{breast_cnn_forward.27} parent=0 // pred_fallthru
    _
  // Predicated region
  $region10: #{breast_cnn_forward.27} parent=0 // pred_check
    _
  $region11: #{breast_cnn_forward.27} parent=0 // pred_check_branch
    %15 = sbr.rel (0) target = $region13
  $region12: #{breast_cnn_forward.27} parent=0 // pred_region
    _
  $region13: #{breast_cnn_forward.27} parent=0 // pred_fallthru
    _
  // Predicated region
  $region14: #{breast_cnn_forward.27} parent=0 // pred_check
    _
  $region15: #{breast_cnn_forward.27} parent=0 // pred_check_branch
    %17 = sbr.rel (0) target = $region17
  $region16: #{breast_cnn_forward.27} parent=0 // pred_region
    _
  $region17: #{breast_cnn_forward.27} parent=0 // pred_fallthru
    _
  // Predicated region
  $region18: #{breast_cnn_forward.27} parent=0 // pred_check
    _
  $region19: #{breast_cnn_forward.27} parent=0 // pred_check_branch
    %19 = sbr.rel (0) target = $region21
  $region20: #{breast_cnn_forward.27} parent=0 // pred_region
    _
  $region21: #{breast_cnn_forward.27} parent=0 // pred_fallthru
    _
  %v21 = vld [vmem:[%s0] sm:$0xff]
  %v22 = vld [vmem:[%s0 + $0x8] sm:$0xff]
  %v23 = vld [vmem:[%s0 + $0x10] sm:$0xf]
  %v24 = vld [vmem:[%s0 + $0x14] sm:$0xff]
  %v25 = vld [vmem:[%s0 + $0x1c] sm:$0xff]
  %v26 = vld [vmem:[%s0 + $0x24] sm:$0xf]
  %v27 = vld [vmem:[%s0 + $0x28] sm:$0xff]
  %v28 = vld [vmem:[%s0 + $0x30] sm:$0xff]
  %v29 = vld [vmem:[%s0 + $0x38] sm:$0xf]
  %v30 = vld [vmem:[%s0 + $0x3c] sm:$0xff]
  %v31 = vld [vmem:[%s0 + $0x44] sm:$0xff]
  %v32 = vld [vmem:[%s0 + $0x4c] sm:$0xf]
  %v33 = vld [vmem:[%s0 + $0x50] sm:$0xff]
  %v34 = vld [vmem:[%s0 + $0x58] sm:$0xff]
  %v35 = vld [vmem:[%s0 + $0x60] sm:$0xf]
  %v36 = vld [vmem:[%s0 + $0x64] sm:$0xff]
  %v37 = vld [vmem:[%s0 + $0x6c] sm:$0xff]
  %v38 = vld [vmem:[%s0 + $0x74] sm:$0xf]
  %v39 = vld [vmem:[%s0 + $0x78] sm:$0xff]
  %v40 = vld [vmem:[%s0 + $0x80] sm:$0xff]
  %v41 = vld [vmem:[%s0 + $0x88] sm:$0xf]
  %v42 = vld [vmem:[%s0 + $0x8c] sm:$0xff]
  %v43 = vld [vmem:[%s0 + $0x94] sm:$0xff]
  %v44 = vld [vmem:[%s0 + $0x9c] sm:$0xf]
  %v45 = vld [vmem:[%s1] sm:$0xf]
  %v46 = vld [vmem:[%s1 + $0x4] sm:$0xf]
  %v47 = vld [vmem:[%s1 + $0x8] sm:$0xf]
  %v48 = vld [vmem:[%s1 + $0xc] sm:$0xf]
  %v49 = vld [vmem:[%s1 + $0x10] sm:$0xf]
  %v50 = vld [vmem:[%s1 + $0x14] sm:$0xf]
  %v51 = vld [vmem:[%s1 + $0x18] sm:$0xf]
  %v52 = vld [vmem:[%s1 + $0x1c] sm:$0xf]
  %v53 = vld [vmem:[%s1 + $0x20] sm:$0xf]
  %v54 = vld [vmem:[%s1 + $0x24] sm:$0xf]
  %v55 = vld [vmem:[%s1 + $0x28] sm:$0xf]
  %v56 = vld [vmem:[%s1 + $0x2c] sm:$0xf]
  %v57 = vld [vmem:[%s1 + $0x30] sm:$0xf]
  %v58 = vld [vmem:[%s1 + $0x34] sm:$0xf]
  %v59 = vld [vmem:[%s1 + $0x38] sm:$0xf]
  %v60 = vld [vmem:[%s1 + $0x3c] sm:$0xf]
  %v61 = vld [vmem:[%s1 + $0x40] sm:$0xf]
  %v62 = vld [vmem:[%s1 + $0x44] sm:$0xf]
  %v63 = vld [vmem:[%s1 + $0x48] sm:$0xf]
  %v64 = vld [vmem:[%s1 + $0x4c] sm:$0xf]
  %v65 = vld [vmem:[%s1 + $0x50] sm:$0xf]
  %v66 = vld [vmem:[%s1 + $0x54] sm:$0xf]
  %v67 = vld [vmem:[%s1 + $0x58] sm:$0xf]
  %v68 = vld [vmem:[%s1 + $0x5c] sm:$0xf]
  %v69 = vld [vmem:[%s1 + $0x60] sm:$0xf]
  %v70 = vld [vmem:[%s1 + $0x64] sm:$0xf]
  %v71 = vld [vmem:[%s1 + $0x68] sm:$0xf]
  %v72 = vld [vmem:[%s1 + $0x6c] sm:$0xf]
  %v73 = vld [vmem:[%s1 + $0x70] sm:$0xf]
  %v74 = vld [vmem:[%s1 + $0x74] sm:$0xf]
  %v75 = vld [vmem:[%s1 + $0x78] sm:$0xf]
  %v76 = vld [vmem:[%s1 + $0x7c] sm:$0xf]
  %v77 = vld [vmem:[%s1 + $0x80] sm:$0xf]
  %v78 = vld [vmem:[%s1 + $0x84] sm:$0xf]
  %v79 = vld [vmem:[%s1 + $0x88] sm:$0xf]
  %v80 = vld [vmem:[%s1 + $0x8c] sm:$0xf]
  %v81 = vld [vmem:[%s1 + $0x90] sm:$0xf]
  %v82 = vld [vmem:[%s1 + $0x94] sm:$0xf]
  %v83 = vld [vmem:[%s1 + $0x98] sm:$0xf]
  %v84 = vld [vmem:[%s1 + $0x9c] sm:$0xf]
  %v85 = vld [vmem:[%s1 + $0xa0] sm:$0xf]
  %v86 = vld [vmem:[%s1 + $0xa4] sm:$0xf]
  %v87 = vld [vmem:[%s1 + $0xa8] sm:$0xf]
  %v88 = vld [vmem:[%s1 + $0xac] sm:$0xf]
  %v89 = vld [vmem:[%s1 + $0xb0] sm:$0xf]
  %v90 = vld [vmem:[%s1 + $0xb4] sm:$0xf]
  %v91 = vld [vmem:[%s1 + $0xb8] sm:$0xf]
  %v92 = vld [vmem:[%s1 + $0xbc] sm:$0xf]
  %v93 = vld [vmem:[%s1 + $0xc0] sm:$0xf]
  %v94 = vld [vmem:[%s1 + $0xc4] sm:$0xf]
  %v95 = vld [vmem:[%s1 + $0xc8] sm:$0xf]
  %v96 = vld [vmem:[%s1 + $0xcc] sm:$0xf]
  %v97 = vld [vmem:[%s1 + $0xd0] sm:$0xf]
  %v98 = vld [vmem:[%s1 + $0xd4] sm:$0xf]
  %v99 = vld [vmem:[%s1 + $0xd8] sm:$0xf]
  %v100 = vld [vmem:[%s1 + $0xdc] sm:$0xf]
  %v101 = vld [vmem:[%s1 + $0xe0] sm:$0xf]
  %v102 = vld [vmem:[%s1 + $0xe4] sm:$0xf]
  %v103 = vld [vmem:[%s1 + $0xe8] sm:$0xf]
  %v104 = vld [vmem:[%s1 + $0xec] sm:$0xf]
  %v105 = vld [vmem:[%s1 + $0xf0] sm:$0xf]
  %v106 = vld [vmem:[%s1 + $0xf4] sm:$0xf]
  %v107 = vld [vmem:[%s1 + $0xf8] sm:$0xf]
  %v108 = vld [vmem:[%s1 + $0xfc] sm:$0xf]
  %v109 = vld [vmem:[%s1 + $0x100] sm:$0xf]
  %v110 = vld [vmem:[%s1 + $0x104] sm:$0xf]
  %v111 = vld [vmem:[%s1 + $0x108] sm:$0xf]
  %v112 = vld [vmem:[%s1 + $0x10c] sm:$0xf]
  %v113 = vld [vmem:[%s1 + $0x110] sm:$0xf]
  %v114 = vld [vmem:[%s1 + $0x114] sm:$0xf]
  %v115 = vld [vmem:[%s1 + $0x118] sm:$0xf]
  %v116 = vld [vmem:[%s1 + $0x11c] sm:$0xf]
  %v117 = vld [vmem:[%s4] sm:$0xff]
  %v118 = vld [vmem:[%s4 + $0x8] sm:$0xff]
  %v119 = vld [vmem:[%s4 + $0x10] sm:$0xff]
  %v120 = vld [vmem:[%s4 + $0x18] sm:$0xff]
  %v121 = vld [vmem:[%s4 + $0x20] sm:$0xff]
  %v122 = vld [vmem:[%s4 + $0x28] sm:$0xff]
  %v123 = vld [vmem:[%s4 + $0x30] sm:$0xff]
  %v124 = vld [vmem:[%s4 + $0x38] sm:$0xff]
  %v149 = vunpack.c.l.b16 %v21
  %v150 = vunpack.c.h.b16 %v21
  %v151 = vunpack.c.l.b16 %v22
  %v152 = vunpack.c.h.b16 %v22
  %v153 = vunpack.c.l.b16 %v23
  %v154 = vunpack.c.l.b16 %v24
  %v155 = vunpack.c.h.b16 %v24
  %v156 = vunpack.c.l.b16 %v25
  %v157 = vunpack.c.h.b16 %v25
  %v158 = vunpack.c.l.b16 %v26
  %v159 = vunpack.c.l.b16 %v27
  %v160 = vunpack.c.h.b16 %v27
  %v161 = vunpack.c.l.b16 %v28
  %v162 = vunpack.c.h.b16 %v28
  %v163 = vunpack.c.l.b16 %v29
  %v164 = vunpack.c.l.b16 %v30
  %v165 = vunpack.c.h.b16 %v30
  %v166 = vunpack.c.l.b16 %v31
  %v167 = vunpack.c.h.b16 %v31
  %v168 = vunpack.c.l.b16 %v32
  %v169 = vunpack.c.l.b16 %v33
  %v170 = vunpack.c.h.b16 %v33
  %v171 = vunpack.c.l.b16 %v34
  %v172 = vunpack.c.h.b16 %v34
  %v173 = vunpack.c.l.b16 %v35
  %v174 = vunpack.c.l.b16 %v36
  %v175 = vunpack.c.h.b16 %v36
  %v176 = vunpack.c.l.b16 %v37
  %v177 = vunpack.c.h.b16 %v37
  %v178 = vunpack.c.l.b16 %v38
  %v179 = vunpack.c.l.b16 %v39
  %v180 = vunpack.c.h.b16 %v39
  %v181 = vunpack.c.l.b16 %v40
  %v182 = vunpack.c.h.b16 %v40
  %v183 = vunpack.c.l.b16 %v41
  %v184 = vunpack.c.l.b16 %v42
  %v185 = vunpack.c.h.b16 %v42
  %v186 = vunpack.c.l.b16 %v43
  %v187 = vunpack.c.h.b16 %v43
  %v188 = vunpack.c.l.b16 %v44
  %v189 = vpack.c.b16 %v154, %v149
  %v190 = vpack.c.b16 %v155, %v150
  %v191 = vpack.c.b16 %v156, %v151
  %v192 = vpack.c.b16 %v157, %v152
  %v193 = vpack.c.b16 %v158, %v153
  %v194 = vpack.c.b16 %v164, %v159
  %v195 = vpack.c.b16 %v165, %v160
  %v196 = vpack.c.b16 %v166, %v161
  %v197 = vpack.c.b16 %v167, %v162
  %v198 = vpack.c.b16 %v168, %v163
  %v199 = vpack.c.b16 %v174, %v169
  %v200 = vpack.c.b16 %v175, %v170
  %v201 = vpack.c.b16 %v176, %v171
  %v202 = vpack.c.b16 %v177, %v172
  %v203 = vpack.c.b16 %v178, %v173
  %v204 = vpack.c.b16 %v184, %v179
  %v205 = vpack.c.b16 %v185, %v180
  %v206 = vpack.c.b16 %v186, %v181
  %v207 = vpack.c.b16 %v187, %v182
  %v208 = vpack.c.b16 %v188, %v183
  %v297 = vunpack.c.l.b16 %v45
  %v298 = vunpack.c.l.b16 %v46
  %v299 = vunpack.c.l.b16 %v47
  %v300 = vunpack.c.l.b16 %v48
  %v301 = vunpack.c.l.b16 %v49
  %v302 = vunpack.c.l.b16 %v50
  %v303 = vunpack.c.l.b16 %v51
  %v304 = vunpack.c.l.b16 %v52
  %v305 = vunpack.c.l.b16 %v53
  %v306 = vunpack.c.l.b16 %v54
  %v307 = vunpack.c.l.b16 %v55
  %v308 = vunpack.c.l.b16 %v56
  %v309 = vunpack.c.l.b16 %v57
  %v310 = vunpack.c.l.b16 %v58
  %v311 = vunpack.c.l.b16 %v59
  %v312 = vunpack.c.l.b16 %v60
  %v313 = vunpack.c.l.b16 %v61
  %v314 = vunpack.c.l.b16 %v62
  %v315 = vunpack.c.l.b16 %v63
  %v316 = vunpack.c.l.b16 %v64
  %v317 = vunpack.c.l.b16 %v65
  %v318 = vunpack.c.l.b16 %v66
  %v319 = vunpack.c.l.b16 %v67
  %v320 = vunpack.c.l.b16 %v68
  %v321 = vunpack.c.l.b16 %v69
  %v322 = vunpack.c.l.b16 %v70
  %v323 = vunpack.c.l.b16 %v71
  %v324 = vunpack.c.l.b16 %v72
  %v325 = vunpack.c.l.b16 %v73
  %v326 = vunpack.c.l.b16 %v74
  %v327 = vunpack.c.l.b16 %v75
  %v328 = vunpack.c.l.b16 %v76
  %v329 = vunpack.c.l.b16 %v77
  %v330 = vunpack.c.l.b16 %v78
  %v331 = vunpack.c.l.b16 %v79
  %v332 = vunpack.c.l.b16 %v80
  %v333 = vunpack.c.l.b16 %v81
  %v334 = vunpack.c.l.b16 %v82
  %v335 = vunpack.c.l.b16 %v83
  %v336 = vunpack.c.l.b16 %v84
  %v337 = vunpack.c.l.b16 %v85
  %v338 = vunpack.c.l.b16 %v86
  %v339 = vunpack.c.l.b16 %v87
  %v340 = vunpack.c.l.b16 %v88
  %v341 = vunpack.c.l.b16 %v89
  %v342 = vunpack.c.l.b16 %v90
  %v343 = vunpack.c.l.b16 %v91
  %v344 = vunpack.c.l.b16 %v92
  %v345 = vunpack.c.l.b16 %v93
  %v346 = vunpack.c.l.b16 %v94
  %v347 = vunpack.c.l.b16 %v95
  %v348 = vunpack.c.l.b16 %v96
  %v349 = vunpack.c.l.b16 %v97
  %v350 = vunpack.c.l.b16 %v98
  %v351 = vunpack.c.l.b16 %v99
  %v352 = vunpack.c.l.b16 %v100
  %v353 = vunpack.c.l.b16 %v101
  %v354 = vunpack.c.l.b16 %v102
  %v355 = vunpack.c.l.b16 %v103
  %v356 = vunpack.c.l.b16 %v104
  %v357 = vunpack.c.l.b16 %v105
  %v358 = vunpack.c.l.b16 %v106
  %v359 = vunpack.c.l.b16 %v107
  %v360 = vunpack.c.l.b16 %v108
  %v361 = vunpack.c.l.b16 %v109
  %v362 = vunpack.c.l.b16 %v110
  %v363 = vunpack.c.l.b16 %v111
  %v364 = vunpack.c.l.b16 %v112
  %v365 = vunpack.c.l.b16 %v113
  %v366 = vunpack.c.l.b16 %v114
  %v367 = vunpack.c.l.b16 %v115
  %v368 = vunpack.c.l.b16 %v116
  %v369 = vpack.c.b16 %v298, %v297
  %v370 = vpack.c.b16 %v300, %v299
  %v371 = vpack.c.b16 %v302, %v301
  %v372 = vpack.c.b16 %v304, %v303
  %v373 = vpack.c.b16 %v306, %v305
  %v374 = vpack.c.b16 %v308, %v307
  %v375 = vpack.c.b16 %v310, %v309
  %v376 = vpack.c.b16 %v312, %v311
  %v377 = vpack.c.b16 %v314, %v313
  %v378 = vpack.c.b16 %v316, %v315
  %v379 = vpack.c.b16 %v318, %v317
  %v380 = vpack.c.b16 %v320, %v319
  %v381 = vpack.c.b16 %v322, %v321
  %v382 = vpack.c.b16 %v324, %v323
  %v383 = vpack.c.b16 %v326, %v325
  %v384 = vpack.c.b16 %v328, %v327
  %v385 = vpack.c.b16 %v330, %v329
  %v386 = vpack.c.b16 %v332, %v331
  %v387 = vpack.c.b16 %v334, %v333
  %v388 = vpack.c.b16 %v336, %v335
  %v389 = vpack.c.b16 %v338, %v337
  %v390 = vpack.c.b16 %v340, %v339
  %v391 = vpack.c.b16 %v342, %v341
  %v392 = vpack.c.b16 %v344, %v343
  %v393 = vpack.c.b16 %v346, %v345
  %v394 = vpack.c.b16 %v348, %v347
  %v395 = vpack.c.b16 %v350, %v349
  %v396 = vpack.c.b16 %v352, %v351
  %v397 = vpack.c.b16 %v354, %v353
  %v398 = vpack.c.b16 %v356, %v355
  %v399 = vpack.c.b16 %v358, %v357
  %v400 = vpack.c.b16 %v360, %v359
  %v401 = vpack.c.b16 %v362, %v361
  %v402 = vpack.c.b16 %v364, %v363
  %v403 = vpack.c.b16 %v366, %v365
  %v404 = vpack.c.b16 %v368, %v367
  %vm441 = vcmask 523264
  %v443 = vsel %vm441, %v193, 0
  %v446 = vsel %vm441, %v198, 0
  %v449 = vsel %vm441, %v203, 0
  %v452 = vsel %vm441, %v208, 0
  %454 = vmatprep.subr.bf16.mxu0 0
  %455 = vmatpush1.bf16.msra.mxu0 %v376
  %456 = vmatprep.subr.bf16.mxu0 0
  %457 = vmatpush1.bf16.msra.mxu0 %v375
  %458 = vmatprep.subr.bf16.mxu0 0
  %459 = vmatpush1.bf16.msra.mxu0 %v374
  %460 = vmatprep.subr.bf16.mxu0 0
  %461 = vmatpush1.bf16.msra.mxu0 %v373
  %462 = vmatprep.subr.bf16.mxu0 0
  %463 = vmatpush1.bf16.msra.mxu0 %v372
  %464 = vmatprep.subr.bf16.mxu0 0
  %465 = vmatpush1.bf16.msra.mxu0 %v371
  %466 = vmatprep.subr.bf16.mxu0 0
  %467 = vmatpush1.bf16.msra.mxu0 %v370
  %468 = vmatprep.subr.bf16.mxu0 0
  %469 = vmatpush1.bf16.msra.mxu0 %v369
  %470 = vmatprep.subr.bf16.mxu0 0
  %471 = vmatpush2.bf16.msra.mxu0 %v384
  %472 = vmatprep.subr.bf16.mxu0 0
  %473 = vmatpush2.bf16.msra.mxu0 %v383
  %474 = vmatprep.subr.bf16.mxu0 0
  %475 = vmatpush2.bf16.msra.mxu0 %v382
  %476 = vmatprep.subr.bf16.mxu0 0
  %477 = vmatpush2.bf16.msra.mxu0 %v381
  %478 = vmatprep.subr.bf16.mxu0 0
  %479 = vmatpush2.bf16.msra.mxu0 %v380
  %480 = vmatprep.subr.bf16.mxu0 0
  %481 = vmatpush2.bf16.msra.mxu0 %v379
  %482 = vmatprep.subr.bf16.mxu0 0
  %483 = vmatpush2.bf16.msra.mxu0 %v378
  %484 = vmatprep.subr.bf16.mxu0 0
  %485 = vmatpush2.bf16.msra.mxu0 %v377
  %486 = vmatprep.mubr.bf16.mxu0 %v190
  %487 = vmatmul.mubr.bf16.gmra.mxu0 %v189
  %v488 = vpop.f32.mrf.mxu0
  %v489 = vadd.f32 %v117, %v488
  %v490 = vpop.f32.mrf.mxu0
  %v491 = vpop.f32.mrf.mxu0
  %v492 = vadd.f32 %v118, %v491
  %v493 = vpop.f32.mrf.mxu0
  %494 = vmatprep.mubr.bf16.mxu0 %v195
  %495 = vmatmul.mubr.bf16.gmra.mxu0 %v194
  %v496 = vpop.f32.mrf.mxu0
  %v497 = vadd.f32 %v119, %v496
  %v498 = vpop.f32.mrf.mxu0
  %v499 = vpop.f32.mrf.mxu0
  %v500 = vadd.f32 %v120, %v499
  %v501 = vpop.f32.mrf.mxu0
  %502 = vmatprep.mubr.bf16.mxu0 %v200
  %503 = vmatmul.mubr.bf16.gmra.mxu0 %v199
  %v504 = vpop.f32.mrf.mxu0
  %v505 = vadd.f32 %v121, %v504
  %v506 = vpop.f32.mrf.mxu0
  %v507 = vpop.f32.mrf.mxu0
  %v508 = vadd.f32 %v122, %v507
  %v509 = vpop.f32.mrf.mxu0
  %510 = vmatprep.mubr.bf16.mxu0 %v205
  %511 = vmatmul.mubr.bf16.gmra.mxu0 %v204
  %v512 = vpop.f32.mrf.mxu0
  %v513 = vadd.f32 %v123, %v512
  %v514 = vpop.f32.mrf.mxu0
  %v515 = vpop.f32.mrf.mxu0
  %v516 = vadd.f32 %v124, %v515
  %v517 = vpop.f32.mrf.mxu0
  %518 = vdwg.mxu0
  %519 = vmatprep.subr.bf16.mxu0 0
  %520 = vmatpush1.bf16.msra.mxu0 %v392
  %521 = vmatprep.subr.bf16.mxu0 0
  %522 = vmatpush1.bf16.msra.mxu0 %v391
  %523 = vmatprep.subr.bf16.mxu0 0
  %524 = vmatpush1.bf16.msra.mxu0 %v390
  %525 = vmatprep.subr.bf16.mxu0 0
  %526 = vmatpush1.bf16.msra.mxu0 %v389
  %527 = vmatprep.subr.bf16.mxu0 0
  %528 = vmatpush1.bf16.msra.mxu0 %v388
  %529 = vmatprep.subr.bf16.mxu0 0
  %530 = vmatpush1.bf16.msra.mxu0 %v387
  %531 = vmatprep.subr.bf16.mxu0 0
  %532 = vmatpush1.bf16.msra.mxu0 %v386
  %533 = vmatprep.subr.bf16.mxu0 0
  %534 = vmatpush1.bf16.msra.mxu0 %v385
  %535 = vmatprep.subr.bf16.mxu0 0
  %536 = vmatpush2.bf16.msra.mxu0 %v400
  %537 = vmatprep.subr.bf16.mxu0 0
  %538 = vmatpush2.bf16.msra.mxu0 %v399
  %539 = vmatprep.subr.bf16.mxu0 0
  %540 = vmatpush2.bf16.msra.mxu0 %v398
  %541 = vmatprep.subr.bf16.mxu0 0
  %542 = vmatpush2.bf16.msra.mxu0 %v397
  %543 = vmatprep.subr.bf16.mxu0 0
  %544 = vmatpush2.bf16.msra.mxu0 %v396
  %545 = vmatprep.subr.bf16.mxu0 0
  %546 = vmatpush2.bf16.msra.mxu0 %v395
  %547 = vmatprep.subr.bf16.mxu0 0
  %548 = vmatpush2.bf16.msra.mxu0 %v394
  %549 = vmatprep.subr.bf16.mxu0 0
  %550 = vmatpush2.bf16.msra.mxu0 %v393
  %551 = vmatprep.mubr.bf16.mxu0 %v192
  %552 = vmatmul.mubr.bf16.gmra.mxu0 %v191
  %v553 = vpop.f32.mrf.mxu0
  %v554 = vadd.f32 %v489, %v553
  %v555 = vpop.f32.mrf.mxu0
  %v556 = vpop.f32.mrf.mxu0
  %v557 = vadd.f32 %v492, %v556
  %v558 = vpop.f32.mrf.mxu0
  %559 = vmatprep.mubr.bf16.mxu0 %v197
  %560 = vmatmul.mubr.bf16.gmra.mxu0 %v196
  %v561 = vpop.f32.mrf.mxu0
  %v562 = vadd.f32 %v497, %v561
  %v563 = vpop.f32.mrf.mxu0
  %v564 = vpop.f32.mrf.mxu0
  %v565 = vadd.f32 %v500, %v564
  %v566 = vpop.f32.mrf.mxu0
  %567 = vmatprep.mubr.bf16.mxu0 %v202
  %568 = vmatmul.mubr.bf16.gmra.mxu0 %v201
  %v569 = vpop.f32.mrf.mxu0
  %v570 = vadd.f32 %v505, %v569
  %v571 = vpop.f32.mrf.mxu0
  %v572 = vpop.f32.mrf.mxu0
  %v573 = vadd.f32 %v508, %v572
  %v574 = vpop.f32.mrf.mxu0
  %575 = vmatprep.mubr.bf16.mxu0 %v207
  %576 = vmatmul.mubr.bf16.gmra.mxu0 %v206
  %v577 = vpop.f32.mrf.mxu0
  %v578 = vadd.f32 %v513, %v577
  %v579 = vpop.f32.mrf.mxu0
  %v580 = vpop.f32.mrf.mxu0
  %v581 = vadd.f32 %v516, %v580
  %v582 = vpop.f32.mrf.mxu0
  %583 = vdwg.mxu0
  %584 = vmatprep.subr.bf16.mxu0 0
  %585 = vmatpush1.bf16.msra.mxu0 0
  %586 = vmatprep.subr.bf16.mxu0 0
  %587 = vmatpush1.bf16.msra.mxu0 0
  %588 = vmatprep.subr.bf16.mxu0 0
  %589 = vmatpush1.bf16.msra.mxu0 0
  %590 = vmatprep.subr.bf16.mxu0 0
  %591 = vmatpush1.bf16.msra.mxu0 0
  %592 = vmatprep.subr.bf16.mxu0 0
  %593 = vmatpush1.bf16.msra.mxu0 %v404
  %594 = vmatprep.subr.bf16.mxu0 0
  %595 = vmatpush1.bf16.msra.mxu0 %v403
  %596 = vmatprep.subr.bf16.mxu0 0
  %597 = vmatpush1.bf16.msra.mxu0 %v402
  %598 = vmatprep.subr.bf16.mxu0 0
  %599 = vmatpush1.bf16.msra.mxu0 %v401
  %600 = vmatprep.subr.bf16.mxu0 0
  %601 = vmatpush2.bf16.msra.mxu0 0
  %602 = vmatprep.subr.bf16.mxu0 0
  %603 = vmatpush2.bf16.msra.mxu0 0
  %604 = vmatprep.subr.bf16.mxu0 0
  %605 = vmatpush2.bf16.msra.mxu0 0
  %606 = vmatprep.subr.bf16.mxu0 0
  %607 = vmatpush2.bf16.msra.mxu0 0
  %608 = vmatprep.subr.bf16.mxu0 0
  %609 = vmatpush2.bf16.msra.mxu0 0
  %610 = vmatprep.subr.bf16.mxu0 0
  %611 = vmatpush2.bf16.msra.mxu0 0
  %612 = vmatprep.subr.bf16.mxu0 0
  %613 = vmatpush2.bf16.msra.mxu0 0
  %614 = vmatprep.subr.bf16.mxu0 0
  %615 = vmatpush2.bf16.msra.mxu0 0
  %616 = vmatprep.mubr.bf16.mxu0 0
  %617 = vmatmul.mubr.bf16.gmra.mxu0 %v443
  %v618 = vpop.f32.mrf.mxu0
  %v619 = vadd.f32 %v554, %v618
  %v620 = vpop.f32.mrf.mxu0
  %v621 = vpop.f32.mrf.mxu0
  %v622 = vadd.f32 %v557, %v621
  %v623 = vpop.f32.mrf.mxu0
  %624 = vmatprep.mubr.bf16.mxu0 0
  %625 = vmatmul.mubr.bf16.gmra.mxu0 %v446
  %v626 = vpop.f32.mrf.mxu0
  %v627 = vadd.f32 %v562, %v626
  %v628 = vpop.f32.mrf.mxu0
  %v629 = vpop.f32.mrf.mxu0
  %v630 = vadd.f32 %v565, %v629
  %v631 = vpop.f32.mrf.mxu0
  %632 = vmatprep.mubr.bf16.mxu0 0
  %633 = vmatmul.mubr.bf16.gmra.mxu0 %v449
  %v634 = vpop.f32.mrf.mxu0
  %v635 = vadd.f32 %v570, %v634
  %v636 = vpop.f32.mrf.mxu0
  %v637 = vpop.f32.mrf.mxu0
  %v638 = vadd.f32 %v573, %v637
  %v639 = vpop.f32.mrf.mxu0
  %640 = vmatprep.mubr.bf16.mxu0 0
  %641 = vmatmul.mubr.bf16.gmra.mxu0 %v452
  %v642 = vpop.f32.mrf.mxu0
  %v643 = vadd.f32 %v578, %v642
  %v644 = vpop.f32.mrf.mxu0
  %v645 = vpop.f32.mrf.mxu0
  %v646 = vadd.f32 %v581, %v645
  %v647 = vpop.f32.mrf.mxu0
  %648 = vdwg.mxu0
  %v649 = vld [vmem:[%s2] sm:$0xff]
  %v650 = vld [vmem:[%s2 + $0x8] sm:$0xff]
  %v651 = vld [vmem:[%s2 + $0x10] sm:$0xff]
  %v652 = vld [vmem:[%s2 + $0x18] sm:$0xff]
  %v653 = vld [vmem:[%s2 + $0x20] sm:$0xff]
  %v654 = vld [vmem:[%s2 + $0x28] sm:$0xff]
  %v655 = vld [vmem:[%s2 + $0x30] sm:$0xff]
  %v656 = vld [vmem:[%s2 + $0x38] sm:$0xff]
  %658 = vset.pattern.permute.xlu0 0
  %659 = vperm.xlu0 %658, %v649
  %v660 = vpop.permute.xlu0 %659
  %663 = vset.pattern.permute.xlu0 0
  %664 = vperm.xlu0 %663, %v650
  %v665 = vpop.permute.xlu0 %664
  %668 = vset.pattern.permute.xlu0 0
  %669 = vperm.xlu0 %668, %v651
  %v670 = vpop.permute.xlu0 %669
  %673 = vset.pattern.permute.xlu0 0
  %674 = vperm.xlu0 %673, %v652
  %v675 = vpop.permute.xlu0 %674
  %678 = vset.pattern.permute.xlu0 0
  %679 = vperm.xlu0 %678, %v653
  %v680 = vpop.permute.xlu0 %679
  %683 = vset.pattern.permute.xlu0 0
  %684 = vperm.xlu0 %683, %v654
  %v685 = vpop.permute.xlu0 %684
  %688 = vset.pattern.permute.xlu0 0
  %689 = vperm.xlu0 %688, %v655
  %v690 = vpop.permute.xlu0 %689
  %693 = vset.pattern.permute.xlu0 0
  %694 = vperm.xlu0 %693, %v656
  %v695 = vpop.permute.xlu0 %694
  %v697 = vmul.f32 %v619, %v660
  %v698 = vmul.f32 %v622, %v665
  %v699 = vmul.f32 %v627, %v670
  %v700 = vmul.f32 %v630, %v675
  %v701 = vmul.f32 %v635, %v680
  %v702 = vmul.f32 %v638, %v685
  %v703 = vmul.f32 %v643, %v690
  %v704 = vmul.f32 %v646, %v695
  %v705 = vld [vmem:[%s3] sm:$0xff]
  %v706 = vld [vmem:[%s3 + $0x8] sm:$0xff]
  %v707 = vld [vmem:[%s3 + $0x10] sm:$0xff]
  %v708 = vld [vmem:[%s3 + $0x18] sm:$0xff]
  %v709 = vld [vmem:[%s3 + $0x20] sm:$0xff]
  %v710 = vld [vmem:[%s3 + $0x28] sm:$0xff]
  %v711 = vld [vmem:[%s3 + $0x30] sm:$0xff]
  %v712 = vld [vmem:[%s3 + $0x38] sm:$0xff]
  %714 = vset.pattern.permute.xlu0 0
  %715 = vperm.xlu0 %714, %v705
  %v716 = vpop.permute.xlu0 %715
  %719 = vset.pattern.permute.xlu0 0
  %720 = vperm.xlu0 %719, %v706
  %v721 = vpop.permute.xlu0 %720
  %724 = vset.pattern.permute.xlu0 0
  %725 = vperm.xlu0 %724, %v707
  %v726 = vpop.permute.xlu0 %725
  %729 = vset.pattern.permute.xlu0 0
  %730 = vperm.xlu0 %729, %v708
  %v731 = vpop.permute.xlu0 %730
  %734 = vset.pattern.permute.xlu0 0
  %735 = vperm.xlu0 %734, %v709
  %v736 = vpop.permute.xlu0 %735
  %739 = vset.pattern.permute.xlu0 0
  %740 = vperm.xlu0 %739, %v710
  %v741 = vpop.permute.xlu0 %740
  %744 = vset.pattern.permute.xlu0 0
  %745 = vperm.xlu0 %744, %v711
  %v746 = vpop.permute.xlu0 %745
  %749 = vset.pattern.permute.xlu0 0
  %750 = vperm.xlu0 %749, %v712
  %v751 = vpop.permute.xlu0 %750
  %v753 = vadd.f32 %v697, %v716
  %v754 = vadd.f32 %v698, %v721
  %v755 = vadd.f32 %v699, %v726
  %v756 = vadd.f32 %v700, %v731
  %v757 = vadd.f32 %v701, %v736
  %v758 = vadd.f32 %v702, %v741
  %v759 = vadd.f32 %v703, %v746
  %v760 = vadd.f32 %v704, %v751
  %vm761 = vcmp.gt.f32.partialorder %v753, 0.0
  %vm762 = vcmp.gt.f32.partialorder %v754, 0.0
  %vm763 = vcmp.gt.f32.partialorder %v755, 0.0
  %vm764 = vcmp.gt.f32.partialorder %v756, 0.0
  %vm765 = vcmp.gt.f32.partialorder %v757, 0.0
  %vm766 = vcmp.gt.f32.partialorder %v758, 0.0
  %vm767 = vcmp.gt.f32.partialorder %v759, 0.0
  %vm768 = vcmp.gt.f32.partialorder %v760, 0.0
  %v769 = vmul.f32 %v753, 0.01
  %v770 = vmul.f32 %v754, 0.01
  %v771 = vmul.f32 %v755, 0.01
  %v772 = vmul.f32 %v756, 0.01
  %v773 = vmul.f32 %v757, 0.01
  %v774 = vmul.f32 %v758, 0.01
  %v775 = vmul.f32 %v759, 0.01
  %v776 = vmul.f32 %v760, 0.01
  %v777 = vsel %vm761, %v753, %v769
  %v778 = vsel %vm762, %v754, %v770
  %v779 = vsel %vm763, %v755, %v771
  %v780 = vsel %vm764, %v756, %v772
  %v781 = vsel %vm765, %v757, %v773
  %v782 = vsel %vm766, %v758, %v774
  %v783 = vsel %vm767, %v759, %v775
  %v784 = vsel %vm768, %v760, %v776
  %v785 = vpack.c.bf16 %v778, %v777
  %v786 = vpack.c.bf16 %v780, %v779
  %v787 = vpack.c.bf16 %v782, %v781
  %v788 = vpack.c.bf16 %v784, %v783
  %v793 = vunpack.c.l.b16 %v785
  %v794 = vunpack.c.h.b16 %v785
  %v795 = vunpack.c.l.b16 %v786
  %v796 = vunpack.c.h.b16 %v786
  %v797 = vunpack.c.l.b16 %v787
  %v798 = vunpack.c.h.b16 %v787
  %v799 = vunpack.c.l.b16 %v788
  %v800 = vunpack.c.h.b16 %v788
  %v801 = vpack.c.b16 %v793, %v793
  %v802 = vpack.c.b16 %v794, %v794
  %v803 = vpack.c.b16 %v795, %v795
  %v804 = vpack.c.b16 %v796, %v796
  %v805 = vpack.c.b16 %v797, %v797
  %v806 = vpack.c.b16 %v798, %v798
  %v807 = vpack.c.b16 %v799, %v799
  %v808 = vpack.c.b16 %v800, %v800
  %817 = vst [vmem:[%s5] sm:$0xf] %v801
  %818 = vst [vmem:[%s5 + $0x4] sm:$0xf] %v802
  %819 = vst [vmem:[%s5 + $0x8] sm:$0xf] %v803
  %820 = vst [vmem:[%s5 + $0xc] sm:$0xf] %v804
  %821 = vst [vmem:[%s5 + $0x10] sm:$0xf] %v805
  %822 = vst [vmem:[%s5 + $0x14] sm:$0xf] %v806
  %823 = vst [vmem:[%s5 + $0x18] sm:$0xf] %v807
  %824 = vst [vmem:[%s5 + $0x1c] sm:$0xf] %v808
  // Predicated region
  $region22: #{breast_cnn_forward.27} parent=0 // pred_check
    _
  $region23: #{breast_cnn_forward.27} parent=0 // pred_check_branch
    %826 = sbr.rel (0) target = $region25
  $region24: #{breast_cnn_forward.27} parent=0 // pred_region
    _
  $region25: #{breast_cnn_forward.27} parent=0 // pred_fallthru
    _
  // Predicated region
  $region26: #{breast_cnn_forward.27} parent=0 // pred_check
    _
  $region27: #{breast_cnn_forward.27} parent=0 // pred_check_branch
    %828 = sbr.rel (0) target = $region29
  $region28: #{breast_cnn_forward.27} parent=0 // pred_region
    _
  $region29: #{breast_cnn_forward.27} parent=0 // pred_fallthru
    _

// kernel: breast_cnn_forward.28
$region0: #{breast_cnn_forward.28}
  #allocation0 [shape = 'u32[]', space=smem, size = 0x4, offset = 0x4, fixed_abs, tag = 'smem constant byte address 0x4 - core index']
  #allocation1 [shape = 'u32[144,128]{1,0:T(1,128)}', space=vmem, size = 0x12000, scoped, tag = 'internal scratch']
  %s0 = inlined_call_operand.vmem [shape: bf16[64,576], index: 0, kind: input, shape index: {}]
  %s1 = inlined_call_operand.vmem [shape: bf16[576,128], index: 1, kind: input, shape index: {}]
  %s2 = inlined_call_operand.vmem [shape: f32[64,1], index: 2, kind: input, shape index: {}]
  %s3 = inlined_call_operand.vmem [shape: f32[64,1], index: 3, kind: input, shape index: {}]
  %s4 = inlined_call_operand.vmem [shape: f32[64,1], index: 4, kind: input, shape index: {}]
  %s5 = inlined_call_operand.vmem [shape: bf16[64,128], index: 5, kind: output, shape index: {0}]
  %s6 = inlined_call_operand.vmem [shape: f32[64,128], index: 6, kind: output, shape index: {1}]
  %7 = xla_tuple %s5, %s6
  %s8 = sld [smem:[#allocation0]]
  $region38: #{breast_cnn_forward.28} parent=0
    _
  %s10 = ssub.s32 1, %s8
  %s11 = scalar_select 0, %s10, %s8
  // Predicated region
  $region2: #{breast_cnn_forward.28} parent=0 // pred_check
    _
  $region3: #{breast_cnn_forward.28} parent=0 // pred_check_branch
    %13 = sbr.rel (0) target = $region5
  $region4: #{breast_cnn_forward.28} parent=0 // pred_region
    _
  $region5: #{breast_cnn_forward.28} parent=0 // pred_fallthru
    _
  // Predicated region
  $region6: #{breast_cnn_forward.28} parent=0 // pred_check
    _
  $region7: #{breast_cnn_forward.28} parent=0 // pred_check_branch
    %15 = sbr.rel (0) target = $region9
  $region8: #{breast_cnn_forward.28} parent=0 // pred_region
    _
  $region9: #{breast_cnn_forward.28} parent=0 // pred_fallthru
    _
  // Predicated region
  $region10: #{breast_cnn_forward.28} parent=0 // pred_check
    _
  $region11: #{breast_cnn_forward.28} parent=0 // pred_check_branch
    %17 = sbr.rel (0) target = $region13
  $region12: #{breast_cnn_forward.28} parent=0 // pred_region
    _
  $region13: #{breast_cnn_forward.28} parent=0 // pred_fallthru
    _
  // Predicated region
  $region14: #{breast_cnn_forward.28} parent=0 // pred_check
    _
  $region15: #{breast_cnn_forward.28} parent=0 // pred_check_branch
    %19 = sbr.rel (0) target = $region17
  $region16: #{breast_cnn_forward.28} parent=0 // pred_region
    _
  $region17: #{breast_cnn_forward.28} parent=0 // pred_fallthru
    _
  // Predicated region
  $region18: #{breast_cnn_forward.28} parent=0 // pred_check
    _
  $region19: #{breast_cnn_forward.28} parent=0 // pred_check_branch
    %21 = sbr.rel (0) target = $region21
  $region20: #{breast_cnn_forward.28} parent=0 // pred_region
    _
  $region21: #{breast_cnn_forward.28} parent=0 // pred_fallthru
    _
  %v23 = vld [vmem:[%s0] sm:$0xff]
  %v24 = vld [vmem:[%s0 + $0x8] sm:$0xff]
  %v25 = vld [vmem:[%s0 + $0x10] sm:$0xf]
  %v26 = vld [vmem:[%s0 + $0x14] sm:$0xff]
  %v27 = vld [vmem:[%s0 + $0x1c] sm:$0xff]
  %v28 = vld [vmem:[%s0 + $0x24] sm:$0xf]
  %v29 = vld [vmem:[%s0 + $0x28] sm:$0xff]
  %v30 = vld [vmem:[%s0 + $0x30] sm:$0xff]
  %v31 = vld [vmem:[%s0 + $0x38] sm:$0xf]
  %v32 = vld [vmem:[%s0 + $0x3c] sm:$0xff]
  %v33 = vld [vmem:[%s0 + $0x44] sm:$0xff]
  %v34 = vld [vmem:[%s0 + $0x4c] sm:$0xf]
  %v35 = vld [vmem:[%s0 + $0x50] sm:$0xff]
  %v36 = vld [vmem:[%s0 + $0x58] sm:$0xff]
  %v37 = vld [vmem:[%s0 + $0x60] sm:$0xf]
  %v38 = vld [vmem:[%s0 + $0x64] sm:$0xff]
  %v39 = vld [vmem:[%s0 + $0x6c] sm:$0xff]
  %v40 = vld [vmem:[%s0 + $0x74] sm:$0xf]
  %v41 = vld [vmem:[%s0 + $0x78] sm:$0xff]
  %v42 = vld [vmem:[%s0 + $0x80] sm:$0xff]
  %v43 = vld [vmem:[%s0 + $0x88] sm:$0xf]
  %v44 = vld [vmem:[%s0 + $0x8c] sm:$0xff]
  %v45 = vld [vmem:[%s0 + $0x94] sm:$0xff]
  %v46 = vld [vmem:[%s0 + $0x9c] sm:$0xf]
  %v47 = vld [vmem:[%s1] sm:$0xf]
  %v48 = vld [vmem:[%s1 + $0x4] sm:$0xf]
  %v49 = vld [vmem:[%s1 + $0x8] sm:$0xf]
  %v50 = vld [vmem:[%s1 + $0xc] sm:$0xf]
  %v51 = vld [vmem:[%s1 + $0x10] sm:$0xf]
  %v52 = vld [vmem:[%s1 + $0x14] sm:$0xf]
  %v53 = vld [vmem:[%s1 + $0x18] sm:$0xf]
  %v54 = vld [vmem:[%s1 + $0x1c] sm:$0xf]
  %v55 = vld [vmem:[%s1 + $0x20] sm:$0xf]
  %v56 = vld [vmem:[%s1 + $0x24] sm:$0xf]
  %v57 = vld [vmem:[%s1 + $0x28] sm:$0xf]
  %v58 = vld [vmem:[%s1 + $0x2c] sm:$0xf]
  %v59 = vld [vmem:[%s1 + $0x30] sm:$0xf]
  %v60 = vld [vmem:[%s1 + $0x34] sm:$0xf]
  %v61 = vld [vmem:[%s1 + $0x38] sm:$0xf]
  %v62 = vld [vmem:[%s1 + $0x3c] sm:$0xf]
  %v63 = vld [vmem:[%s1 + $0x40] sm:$0xf]
  %v64 = vld [vmem:[%s1 + $0x44] sm:$0xf]
  %v65 = vld [vmem:[%s1 + $0x48] sm:$0xf]
  %v66 = vld [vmem:[%s1 + $0x4c] sm:$0xf]
  %v67 = vld [vmem:[%s1 + $0x50] sm:$0xf]
  %v68 = vld [vmem:[%s1 + $0x54] sm:$0xf]
  %v69 = vld [vmem:[%s1 + $0x58] sm:$0xf]
  %v70 = vld [vmem:[%s1 + $0x5c] sm:$0xf]
  %v71 = vld [vmem:[%s1 + $0x60] sm:$0xf]
  %v72 = vld [vmem:[%s1 + $0x64] sm:$0xf]
  %v73 = vld [vmem:[%s1 + $0x68] sm:$0xf]
  %v74 = vld [vmem:[%s1 + $0x6c] sm:$0xf]
  %v75 = vld [vmem:[%s1 + $0x70] sm:$0xf]
  %v76 = vld [vmem:[%s1 + $0x74] sm:$0xf]
  %v77 = vld [vmem:[%s1 + $0x78] sm:$0xf]
  %v78 = vld [vmem:[%s1 + $0x7c] sm:$0xf]
  %v79 = vld [vmem:[%s1 + $0x80] sm:$0xf]
  %v80 = vld [vmem:[%s1 + $0x84] sm:$0xf]
  %v81 = vld [vmem:[%s1 + $0x88] sm:$0xf]
  %v82 = vld [vmem:[%s1 + $0x8c] sm:$0xf]
  %v83 = vld [vmem:[%s1 + $0x90] sm:$0xf]
  %v84 = vld [vmem:[%s1 + $0x94] sm:$0xf]
  %v85 = vld [vmem:[%s1 + $0x98] sm:$0xf]
  %v86 = vld [vmem:[%s1 + $0x9c] sm:$0xf]
  %v87 = vld [vmem:[%s1 + $0xa0] sm:$0xf]
  %v88 = vld [vmem:[%s1 + $0xa4] sm:$0xf]
  %v89 = vld [vmem:[%s1 + $0xa8] sm:$0xf]
  %v90 = vld [vmem:[%s1 + $0xac] sm:$0xf]
  %v91 = vld [vmem:[%s1 + $0xb0] sm:$0xf]
  %v92 = vld [vmem:[%s1 + $0xb4] sm:$0xf]
  %v93 = vld [vmem:[%s1 + $0xb8] sm:$0xf]
  %v94 = vld [vmem:[%s1 + $0xbc] sm:$0xf]
  %v95 = vld [vmem:[%s1 + $0xc0] sm:$0xf]
  %v96 = vld [vmem:[%s1 + $0xc4] sm:$0xf]
  %v97 = vld [vmem:[%s1 + $0xc8] sm:$0xf]
  %v98 = vld [vmem:[%s1 + $0xcc] sm:$0xf]
  %v99 = vld [vmem:[%s1 + $0xd0] sm:$0xf]
  %v100 = vld [vmem:[%s1 + $0xd4] sm:$0xf]
  %v101 = vld [vmem:[%s1 + $0xd8] sm:$0xf]
  %v102 = vld [vmem:[%s1 + $0xdc] sm:$0xf]
  %v103 = vld [vmem:[%s1 + $0xe0] sm:$0xf]
  %v104 = vld [vmem:[%s1 + $0xe4] sm:$0xf]
  %v105 = vld [vmem:[%s1 + $0xe8] sm:$0xf]
  %v106 = vld [vmem:[%s1 + $0xec] sm:$0xf]
  %v107 = vld [vmem:[%s1 + $0xf0] sm:$0xf]
  %v108 = vld [vmem:[%s1 + $0xf4] sm:$0xf]
  %v109 = vld [vmem:[%s1 + $0xf8] sm:$0xf]
  %v110 = vld [vmem:[%s1 + $0xfc] sm:$0xf]
  %v111 = vld [vmem:[%s1 + $0x100] sm:$0xf]
  %v112 = vld [vmem:[%s1 + $0x104] sm:$0xf]
  %v113 = vld [vmem:[%s1 + $0x108] sm:$0xf]
  %v114 = vld [vmem:[%s1 + $0x10c] sm:$0xf]
  %v115 = vld [vmem:[%s1 + $0x110] sm:$0xf]
  %v116 = vld [vmem:[%s1 + $0x114] sm:$0xf]
  %v117 = vld [vmem:[%s1 + $0x118] sm:$0xf]
  %v118 = vld [vmem:[%s1 + $0x11c] sm:$0xf]
  %v143 = vunpack.c.l.b16 %v23
  %v144 = vunpack.c.h.b16 %v23
  %v145 = vunpack.c.l.b16 %v24
  %v146 = vunpack.c.h.b16 %v24
  %v147 = vunpack.c.l.b16 %v25
  %v148 = vunpack.c.l.b16 %v26
  %v149 = vunpack.c.h.b16 %v26
  %v150 = vunpack.c.l.b16 %v27
  %v151 = vunpack.c.h.b16 %v27
  %v152 = vunpack.c.l.b16 %v28
  %v153 = vunpack.c.l.b16 %v29
  %v154 = vunpack.c.h.b16 %v29
  %v155 = vunpack.c.l.b16 %v30
  %v156 = vunpack.c.h.b16 %v30
  %v157 = vunpack.c.l.b16 %v31
  %v158 = vunpack.c.l.b16 %v32
  %v159 = vunpack.c.h.b16 %v32
  %v160 = vunpack.c.l.b16 %v33
  %v161 = vunpack.c.h.b16 %v33
  %v162 = vunpack.c.l.b16 %v34
  %v163 = vunpack.c.l.b16 %v35
  %v164 = vunpack.c.h.b16 %v35
  %v165 = vunpack.c.l.b16 %v36
  %v166 = vunpack.c.h.b16 %v36
  %v167 = vunpack.c.l.b16 %v37
  %v168 = vunpack.c.l.b16 %v38
  %v169 = vunpack.c.h.b16 %v38
  %v170 = vunpack.c.l.b16 %v39
  %v171 = vunpack.c.h.b16 %v39
  %v172 = vunpack.c.l.b16 %v40
  %v173 = vunpack.c.l.b16 %v41
  %v174 = vunpack.c.h.b16 %v41
  %v175 = vunpack.c.l.b16 %v42
  %v176 = vunpack.c.h.b16 %v42
  %v177 = vunpack.c.l.b16 %v43
  %v178 = vunpack.c.l.b16 %v44
  %v179 = vunpack.c.h.b16 %v44
  %v180 = vunpack.c.l.b16 %v45
  %v181 = vunpack.c.h.b16 %v45
  %v182 = vunpack.c.l.b16 %v46
  %v183 = vpack.c.b16 %v148, %v143
  %v184 = vpack.c.b16 %v149, %v144
  %v185 = vpack.c.b16 %v150, %v145
  %v186 = vpack.c.b16 %v151, %v146
  %v187 = vpack.c.b16 %v152, %v147
  %v188 = vpack.c.b16 %v158, %v153
  %v189 = vpack.c.b16 %v159, %v154
  %v190 = vpack.c.b16 %v160, %v155
  %v191 = vpack.c.b16 %v161, %v156
  %v192 = vpack.c.b16 %v162, %v157
  %v193 = vpack.c.b16 %v168, %v163
  %v194 = vpack.c.b16 %v169, %v164
  %v195 = vpack.c.b16 %v170, %v165
  %v196 = vpack.c.b16 %v171, %v166
  %v197 = vpack.c.b16 %v172, %v167
  %v198 = vpack.c.b16 %v178, %v173
  %v199 = vpack.c.b16 %v179, %v174
  %v200 = vpack.c.b16 %v180, %v175
  %v201 = vpack.c.b16 %v181, %v176
  %v202 = vpack.c.b16 %v182, %v177
  %v291 = vunpack.c.l.b16 %v47
  %v292 = vunpack.c.l.b16 %v48
  %v293 = vunpack.c.l.b16 %v49
  %v294 = vunpack.c.l.b16 %v50
  %v295 = vunpack.c.l.b16 %v51
  %v296 = vunpack.c.l.b16 %v52
  %v297 = vunpack.c.l.b16 %v53
  %v298 = vunpack.c.l.b16 %v54
  %v299 = vunpack.c.l.b16 %v55
  %v300 = vunpack.c.l.b16 %v56
  %v301 = vunpack.c.l.b16 %v57
  %v302 = vunpack.c.l.b16 %v58
  %v303 = vunpack.c.l.b16 %v59
  %v304 = vunpack.c.l.b16 %v60
  %v305 = vunpack.c.l.b16 %v61
  %v306 = vunpack.c.l.b16 %v62
  %v307 = vunpack.c.l.b16 %v63
  %v308 = vunpack.c.l.b16 %v64
  %v309 = vunpack.c.l.b16 %v65
  %v310 = vunpack.c.l.b16 %v66
  %v311 = vunpack.c.l.b16 %v67
  %v312 = vunpack.c.l.b16 %v68
  %v313 = vunpack.c.l.b16 %v69
  %v314 = vunpack.c.l.b16 %v70
  %v315 = vunpack.c.l.b16 %v71
  %v316 = vunpack.c.l.b16 %v72
  %v317 = vunpack.c.l.b16 %v73
  %v318 = vunpack.c.l.b16 %v74
  %v319 = vunpack.c.l.b16 %v75
  %v320 = vunpack.c.l.b16 %v76
  %v321 = vunpack.c.l.b16 %v77
  %v322 = vunpack.c.l.b16 %v78
  %v323 = vunpack.c.l.b16 %v79
  %v324 = vunpack.c.l.b16 %v80
  %v325 = vunpack.c.l.b16 %v81
  %v326 = vunpack.c.l.b16 %v82
  %v327 = vunpack.c.l.b16 %v83
  %v328 = vunpack.c.l.b16 %v84
  %v329 = vunpack.c.l.b16 %v85
  %v330 = vunpack.c.l.b16 %v86
  %v331 = vunpack.c.l.b16 %v87
  %v332 = vunpack.c.l.b16 %v88
  %v333 = vunpack.c.l.b16 %v89
  %v334 = vunpack.c.l.b16 %v90
  %v335 = vunpack.c.l.b16 %v91
  %v336 = vunpack.c.l.b16 %v92
  %v337 = vunpack.c.l.b16 %v93
  %v338 = vunpack.c.l.b16 %v94
  %v339 = vunpack.c.l.b16 %v95
  %v340 = vunpack.c.l.b16 %v96
  %v341 = vunpack.c.l.b16 %v97
  %v342 = vunpack.c.l.b16 %v98
  %v343 = vunpack.c.l.b16 %v99
  %v344 = vunpack.c.l.b16 %v100
  %v345 = vunpack.c.l.b16 %v101
  %v346 = vunpack.c.l.b16 %v102
  %v347 = vunpack.c.l.b16 %v103
  %v348 = vunpack.c.l.b16 %v104
  %v349 = vunpack.c.l.b16 %v105
  %v350 = vunpack.c.l.b16 %v106
  %v351 = vunpack.c.l.b16 %v107
  %v352 = vunpack.c.l.b16 %v108
  %v353 = vunpack.c.l.b16 %v109
  %v354 = vunpack.c.l.b16 %v110
  %v355 = vunpack.c.l.b16 %v111
  %v356 = vunpack.c.l.b16 %v112
  %v357 = vunpack.c.l.b16 %v113
  %v358 = vunpack.c.l.b16 %v114
  %v359 = vunpack.c.l.b16 %v115
  %v360 = vunpack.c.l.b16 %v116
  %v361 = vunpack.c.l.b16 %v117
  %v362 = vunpack.c.l.b16 %v118
  %v363 = vpack.c.b16 %v292, %v291
  %v364 = vpack.c.b16 %v294, %v293
  %v365 = vpack.c.b16 %v296, %v295
  %v366 = vpack.c.b16 %v298, %v297
  %v367 = vpack.c.b16 %v300, %v299
  %v368 = vpack.c.b16 %v302, %v301
  %v369 = vpack.c.b16 %v304, %v303
  %v370 = vpack.c.b16 %v306, %v305
  %v371 = vpack.c.b16 %v308, %v307
  %v372 = vpack.c.b16 %v310, %v309
  %v373 = vpack.c.b16 %v312, %v311
  %v374 = vpack.c.b16 %v314, %v313
  %v375 = vpack.c.b16 %v316, %v315
  %v376 = vpack.c.b16 %v318, %v317
  %v377 = vpack.c.b16 %v320, %v319
  %v378 = vpack.c.b16 %v322, %v321
  %v379 = vpack.c.b16 %v324, %v323
  %v380 = vpack.c.b16 %v326, %v325
  %v381 = vpack.c.b16 %v328, %v327
  %v382 = vpack.c.b16 %v330, %v329
  %v383 = vpack.c.b16 %v332, %v331
  %v384 = vpack.c.b16 %v334, %v333
  %v385 = vpack.c.b16 %v336, %v335
  %v386 = vpack.c.b16 %v338, %v337
  %v387 = vpack.c.b16 %v340, %v339
  %v388 = vpack.c.b16 %v342, %v341
  %v389 = vpack.c.b16 %v344, %v343
  %v390 = vpack.c.b16 %v346, %v345
  %v391 = vpack.c.b16 %v348, %v347
  %v392 = vpack.c.b16 %v350, %v349
  %v393 = vpack.c.b16 %v352, %v351
  %v394 = vpack.c.b16 %v354, %v353
  %v395 = vpack.c.b16 %v356, %v355
  %v396 = vpack.c.b16 %v358, %v357
  %v397 = vpack.c.b16 %v360, %v359
  %v398 = vpack.c.b16 %v362, %v361
  %vm435 = vcmask 523264
  %v437 = vsel %vm435, %v187, 0
  %v440 = vsel %vm435, %v192, 0
  %v443 = vsel %vm435, %v197, 0
  %v446 = vsel %vm435, %v202, 0
  %448 = vmatprep.subr.bf16.mxu0 0
  %449 = vmatpush1.bf16.msra.mxu0 %v370
  %450 = vmatprep.subr.bf16.mxu0 0
  %451 = vmatpush1.bf16.msra.mxu0 %v369
  %452 = vmatprep.subr.bf16.mxu0 0
  %453 = vmatpush1.bf16.msra.mxu0 %v368
  %454 = vmatprep.subr.bf16.mxu0 0
  %455 = vmatpush1.bf16.msra.mxu0 %v367
  %456 = vmatprep.subr.bf16.mxu0 0
  %457 = vmatpush1.bf16.msra.mxu0 %v366
  %458 = vmatprep.subr.bf16.mxu0 0
  %459 = vmatpush1.bf16.msra.mxu0 %v365
  %460 = vmatprep.subr.bf16.mxu0 0
  %461 = vmatpush1.bf16.msra.mxu0 %v364
  %462 = vmatprep.subr.bf16.mxu0 0
  %463 = vmatpush1.bf16.msra.mxu0 %v363
  %464 = vmatprep.subr.bf16.mxu0 0
  %465 = vmatpush2.bf16.msra.mxu0 %v378
  %466 = vmatprep.subr.bf16.mxu0 0
  %467 = vmatpush2.bf16.msra.mxu0 %v377
  %468 = vmatprep.subr.bf16.mxu0 0
  %469 = vmatpush2.bf16.msra.mxu0 %v376
  %470 = vmatprep.subr.bf16.mxu0 0
  %471 = vmatpush2.bf16.msra.mxu0 %v375
  %472 = vmatprep.subr.bf16.mxu0 0
  %473 = vmatpush2.bf16.msra.mxu0 %v374
  %474 = vmatprep.subr.bf16.mxu0 0
  %475 = vmatpush2.bf16.msra.mxu0 %v373
  %476 = vmatprep.subr.bf16.mxu0 0
  %477 = vmatpush2.bf16.msra.mxu0 %v372
  %478 = vmatprep.subr.bf16.mxu0 0
  %479 = vmatpush2.bf16.msra.mxu0 %v371
  %480 = vmatprep.mubr.bf16.mxu0 %v184
  %481 = vmatmul.mubr.bf16.gmra.mxu0 %v183
  %v482 = vpop.f32.mrf.mxu0
  %v483 = vadd.f32 0.0, %v482
  %v484 = vpop.f32.mrf.mxu0
  %v485 = vpop.f32.mrf.mxu0
  %v486 = vadd.f32 0.0, %v485
  %v487 = vpop.f32.mrf.mxu0
  %488 = vmatprep.mubr.bf16.mxu0 %v189
  %489 = vmatmul.mubr.bf16.gmra.mxu0 %v188
  %v490 = vpop.f32.mrf.mxu0
  %v491 = vadd.f32 0.0, %v490
  %v492 = vpop.f32.mrf.mxu0
  %v493 = vpop.f32.mrf.mxu0
  %v494 = vadd.f32 0.0, %v493
  %v495 = vpop.f32.mrf.mxu0
  %496 = vmatprep.mubr.bf16.mxu0 %v194
  %497 = vmatmul.mubr.bf16.gmra.mxu0 %v193
  %v498 = vpop.f32.mrf.mxu0
  %v499 = vadd.f32 0.0, %v498
  %v500 = vpop.f32.mrf.mxu0
  %v501 = vpop.f32.mrf.mxu0
  %v502 = vadd.f32 0.0, %v501
  %v503 = vpop.f32.mrf.mxu0
  %504 = vmatprep.mubr.bf16.mxu0 %v199
  %505 = vmatmul.mubr.bf16.gmra.mxu0 %v198
  %v506 = vpop.f32.mrf.mxu0
  %v507 = vadd.f32 0.0, %v506
  %v508 = vpop.f32.mrf.mxu0
  %v509 = vpop.f32.mrf.mxu0
  %v510 = vadd.f32 0.0, %v509
  %v511 = vpop.f32.mrf.mxu0
  %512 = vdwg.mxu0
  %513 = vmatprep.subr.bf16.mxu0 0
  %514 = vmatpush1.bf16.msra.mxu0 %v386
  %515 = vmatprep.subr.bf16.mxu0 0
  %516 = vmatpush1.bf16.msra.mxu0 %v385
  %517 = vmatprep.subr.bf16.mxu0 0
  %518 = vmatpush1.bf16.msra.mxu0 %v384
  %519 = vmatprep.subr.bf16.mxu0 0
  %520 = vmatpush1.bf16.msra.mxu0 %v383
  %521 = vmatprep.subr.bf16.mxu0 0
  %522 = vmatpush1.bf16.msra.mxu0 %v382
  %523 = vmatprep.subr.bf16.mxu0 0
  %524 = vmatpush1.bf16.msra.mxu0 %v381
  %525 = vmatprep.subr.bf16.mxu0 0
  %526 = vmatpush1.bf16.msra.mxu0 %v380
  %527 = vmatprep.subr.bf16.mxu0 0
  %528 = vmatpush1.bf16.msra.mxu0 %v379
  %529 = vmatprep.subr.bf16.mxu0 0
  %530 = vmatpush2.bf16.msra.mxu0 %v394
  %531 = vmatprep.subr.bf16.mxu0 0
  %532 = vmatpush2.bf16.msra.mxu0 %v393
  %533 = vmatprep.subr.bf16.mxu0 0
  %534 = vmatpush2.bf16.msra.mxu0 %v392
  %535 = vmatprep.subr.bf16.mxu0 0
  %536 = vmatpush2.bf16.msra.mxu0 %v391
  %537 = vmatprep.subr.bf16.mxu0 0
  %538 = vmatpush2.bf16.msra.mxu0 %v390
  %539 = vmatprep.subr.bf16.mxu0 0
  %540 = vmatpush2.bf16.msra.mxu0 %v389
  %541 = vmatprep.subr.bf16.mxu0 0
  %542 = vmatpush2.bf16.msra.mxu0 %v388
  %543 = vmatprep.subr.bf16.mxu0 0
  %544 = vmatpush2.bf16.msra.mxu0 %v387
  %545 = vmatprep.mubr.bf16.mxu0 %v186
  %546 = vmatmul.mubr.bf16.gmra.mxu0 %v185
  %v547 = vpop.f32.mrf.mxu0
  %v548 = vadd.f32 %v483, %v547
  %v549 = vpop.f32.mrf.mxu0
  %v550 = vpop.f32.mrf.mxu0
  %v551 = vadd.f32 %v486, %v550
  %v552 = vpop.f32.mrf.mxu0
  %553 = vmatprep.mubr.bf16.mxu0 %v191
  %554 = vmatmul.mubr.bf16.gmra.mxu0 %v190
  %v555 = vpop.f32.mrf.mxu0
  %v556 = vadd.f32 %v491, %v555
  %v557 = vpop.f32.mrf.mxu0
  %v558 = vpop.f32.mrf.mxu0
  %v559 = vadd.f32 %v494, %v558
  %v560 = vpop.f32.mrf.mxu0
  %561 = vmatprep.mubr.bf16.mxu0 %v196
  %562 = vmatmul.mubr.bf16.gmra.mxu0 %v195
  %v563 = vpop.f32.mrf.mxu0
  %v564 = vadd.f32 %v499, %v563
  %v565 = vpop.f32.mrf.mxu0
  %v566 = vpop.f32.mrf.mxu0
  %v567 = vadd.f32 %v502, %v566
  %v568 = vpop.f32.mrf.mxu0
  %569 = vmatprep.mubr.bf16.mxu0 %v201
  %570 = vmatmul.mubr.bf16.gmra.mxu0 %v200
  %v571 = vpop.f32.mrf.mxu0
  %v572 = vadd.f32 %v507, %v571
  %v573 = vpop.f32.mrf.mxu0
  %v574 = vpop.f32.mrf.mxu0
  %v575 = vadd.f32 %v510, %v574
  %v576 = vpop.f32.mrf.mxu0
  %577 = vdwg.mxu0
  %578 = vmatprep.subr.bf16.mxu0 0
  %579 = vmatpush1.bf16.msra.mxu0 0
  %580 = vmatprep.subr.bf16.mxu0 0
  %581 = vmatpush1.bf16.msra.mxu0 0
  %582 = vmatprep.subr.bf16.mxu0 0
  %583 = vmatpush1.bf16.msra.mxu0 0
  %584 = vmatprep.subr.bf16.mxu0 0
  %585 = vmatpush1.bf16.msra.mxu0 0
  %586 = vmatprep.subr.bf16.mxu0 0
  %587 = vmatpush1.bf16.msra.mxu0 %v398
  %588 = vmatprep.subr.bf16.mxu0 0
  %589 = vmatpush1.bf16.msra.mxu0 %v397
  %590 = vmatprep.subr.bf16.mxu0 0
  %591 = vmatpush1.bf16.msra.mxu0 %v396
  %592 = vmatprep.subr.bf16.mxu0 0
  %593 = vmatpush1.bf16.msra.mxu0 %v395
  %594 = vmatprep.subr.bf16.mxu0 0
  %595 = vmatpush2.bf16.msra.mxu0 0
  %596 = vmatprep.subr.bf16.mxu0 0
  %597 = vmatpush2.bf16.msra.mxu0 0
  %598 = vmatprep.subr.bf16.mxu0 0
  %599 = vmatpush2.bf16.msra.mxu0 0
  %600 = vmatprep.subr.bf16.mxu0 0
  %601 = vmatpush2.bf16.msra.mxu0 0
  %602 = vmatprep.subr.bf16.mxu0 0
  %603 = vmatpush2.bf16.msra.mxu0 0
  %604 = vmatprep.subr.bf16.mxu0 0
  %605 = vmatpush2.bf16.msra.mxu0 0
  %606 = vmatprep.subr.bf16.mxu0 0
  %607 = vmatpush2.bf16.msra.mxu0 0
  %608 = vmatprep.subr.bf16.mxu0 0
  %609 = vmatpush2.bf16.msra.mxu0 0
  %610 = vmatprep.mubr.bf16.mxu0 0
  %611 = vmatmul.mubr.bf16.gmra.mxu0 %v437
  %v612 = vpop.f32.mrf.mxu0
  %v613 = vadd.f32 %v548, %v612
  %v614 = vpop.f32.mrf.mxu0
  %v615 = vpop.f32.mrf.mxu0
  %v616 = vadd.f32 %v551, %v615
  %v617 = vpop.f32.mrf.mxu0
  %618 = vmatprep.mubr.bf16.mxu0 0
  %619 = vmatmul.mubr.bf16.gmra.mxu0 %v440
  %v620 = vpop.f32.mrf.mxu0
  %v621 = vadd.f32 %v556, %v620
  %v622 = vpop.f32.mrf.mxu0
  %v623 = vpop.f32.mrf.mxu0
  %v624 = vadd.f32 %v559, %v623
  %v625 = vpop.f32.mrf.mxu0
  %626 = vmatprep.mubr.bf16.mxu0 0
  %627 = vmatmul.mubr.bf16.gmra.mxu0 %v443
  %v628 = vpop.f32.mrf.mxu0
  %v629 = vadd.f32 %v564, %v628
  %v630 = vpop.f32.mrf.mxu0
  %v631 = vpop.f32.mrf.mxu0
  %v632 = vadd.f32 %v567, %v631
  %v633 = vpop.f32.mrf.mxu0
  %634 = vmatprep.mubr.bf16.mxu0 0
  %635 = vmatmul.mubr.bf16.gmra.mxu0 %v446
  %v636 = vpop.f32.mrf.mxu0
  %v637 = vadd.f32 %v572, %v636
  %v638 = vpop.f32.mrf.mxu0
  %v639 = vpop.f32.mrf.mxu0
  %v640 = vadd.f32 %v575, %v639
  %v641 = vpop.f32.mrf.mxu0
  %642 = vdwg.mxu0
  %v643 = vld [vmem:[%s4] sm:$0xff]
  %v644 = vld [vmem:[%s4 + $0x8] sm:$0xff]
  %v645 = vld [vmem:[%s4 + $0x10] sm:$0xff]
  %v646 = vld [vmem:[%s4 + $0x18] sm:$0xff]
  %v647 = vld [vmem:[%s4 + $0x20] sm:$0xff]
  %v648 = vld [vmem:[%s4 + $0x28] sm:$0xff]
  %v649 = vld [vmem:[%s4 + $0x30] sm:$0xff]
  %v650 = vld [vmem:[%s4 + $0x38] sm:$0xff]
  %652 = vset.pattern.permute.xlu0 0
  %653 = vperm.xlu0 %652, %v643
  %v654 = vpop.permute.xlu0 %653
  %657 = vset.pattern.permute.xlu0 0
  %658 = vperm.xlu0 %657, %v644
  %v659 = vpop.permute.xlu0 %658
  %662 = vset.pattern.permute.xlu0 0
  %663 = vperm.xlu0 %662, %v645
  %v664 = vpop.permute.xlu0 %663
  %667 = vset.pattern.permute.xlu0 0
  %668 = vperm.xlu0 %667, %v646
  %v669 = vpop.permute.xlu0 %668
  %672 = vset.pattern.permute.xlu0 0
  %673 = vperm.xlu0 %672, %v647
  %v674 = vpop.permute.xlu0 %673
  %677 = vset.pattern.permute.xlu0 0
  %678 = vperm.xlu0 %677, %v648
  %v679 = vpop.permute.xlu0 %678
  %682 = vset.pattern.permute.xlu0 0
  %683 = vperm.xlu0 %682, %v649
  %v684 = vpop.permute.xlu0 %683
  %687 = vset.pattern.permute.xlu0 0
  %688 = vperm.xlu0 %687, %v650
  %v689 = vpop.permute.xlu0 %688
  %v691 = vadd.f32 %v613, %v654
  %v692 = vadd.f32 %v616, %v659
  %v693 = vadd.f32 %v621, %v664
  %v694 = vadd.f32 %v624, %v669
  %v695 = vadd.f32 %v629, %v674
  %v696 = vadd.f32 %v632, %v679
  %v697 = vadd.f32 %v637, %v684
  %v698 = vadd.f32 %v640, %v689
  %699 = vst [vmem:[%s6] sm:$0xff] %v691
  %700 = vst [vmem:[%s6 + $0x8] sm:$0xff] %v692
  %701 = vst [vmem:[%s6 + $0x10] sm:$0xff] %v693
  %702 = vst [vmem:[%s6 + $0x18] sm:$0xff] %v694
  %703 = vst [vmem:[%s6 + $0x20] sm:$0xff] %v695
  %704 = vst [vmem:[%s6 + $0x28] sm:$0xff] %v696
  %705 = vst [vmem:[%s6 + $0x30] sm:$0xff] %v697
  %706 = vst [vmem:[%s6 + $0x38] sm:$0xff] %v698
  %v707 = vld [vmem:[%s2] sm:$0xff]
  %v708 = vld [vmem:[%s2 + $0x8] sm:$0xff]
  %v709 = vld [vmem:[%s2 + $0x10] sm:$0xff]
  %v710 = vld [vmem:[%s2 + $0x18] sm:$0xff]
  %v711 = vld [vmem:[%s2 + $0x20] sm:$0xff]
  %v712 = vld [vmem:[%s2 + $0x28] sm:$0xff]
  %v713 = vld [vmem:[%s2 + $0x30] sm:$0xff]
  %v714 = vld [vmem:[%s2 + $0x38] sm:$0xff]
  %716 = vset.pattern.permute.xlu0 0
  %717 = vperm.xlu0 %716, %v707
  %v718 = vpop.permute.xlu0 %717
  %721 = vset.pattern.permute.xlu0 0
  %722 = vperm.xlu0 %721, %v708
  %v723 = vpop.permute.xlu0 %722
  %726 = vset.pattern.permute.xlu0 0
  %727 = vperm.xlu0 %726, %v709
  %v728 = vpop.permute.xlu0 %727
  %731 = vset.pattern.permute.xlu0 0
  %732 = vperm.xlu0 %731, %v710
  %v733 = vpop.permute.xlu0 %732
  %736 = vset.pattern.permute.xlu0 0
  %737 = vperm.xlu0 %736, %v711
  %v738 = vpop.permute.xlu0 %737
  %741 = vset.pattern.permute.xlu0 0
  %742 = vperm.xlu0 %741, %v712
  %v743 = vpop.permute.xlu0 %742
  %746 = vset.pattern.permute.xlu0 0
  %747 = vperm.xlu0 %746, %v713
  %v748 = vpop.permute.xlu0 %747
  %751 = vset.pattern.permute.xlu0 0
  %752 = vperm.xlu0 %751, %v714
  %v753 = vpop.permute.xlu0 %752
  %v755 = vmul.f32 %v613, %v718
  %v756 = vmul.f32 %v616, %v723
  %v757 = vmul.f32 %v621, %v728
  %v758 = vmul.f32 %v624, %v733
  %v759 = vmul.f32 %v629, %v738
  %v760 = vmul.f32 %v632, %v743
  %v761 = vmul.f32 %v637, %v748
  %v762 = vmul.f32 %v640, %v753
  %v763 = vld [vmem:[%s3] sm:$0xff]
  %v764 = vld [vmem:[%s3 + $0x8] sm:$0xff]
  %v765 = vld [vmem:[%s3 + $0x10] sm:$0xff]
  %v766 = vld [vmem:[%s3 + $0x18] sm:$0xff]
  %v767 = vld [vmem:[%s3 + $0x20] sm:$0xff]
  %v768 = vld [vmem:[%s3 + $0x28] sm:$0xff]
  %v769 = vld [vmem:[%s3 + $0x30] sm:$0xff]
  %v770 = vld [vmem:[%s3 + $0x38] sm:$0xff]
  %772 = vset.pattern.permute.xlu0 0
  %773 = vperm.xlu0 %772, %v763
  %v774 = vpop.permute.xlu0 %773
  %777 = vset.pattern.permute.xlu0 0
  %778 = vperm.xlu0 %777, %v764
  %v779 = vpop.permute.xlu0 %778
  %782 = vset.pattern.permute.xlu0 0
  %783 = vperm.xlu0 %782, %v765
  %v784 = vpop.permute.xlu0 %783
  %787 = vset.pattern.permute.xlu0 0
  %788 = vperm.xlu0 %787, %v766
  %v789 = vpop.permute.xlu0 %788
  %792 = vset.pattern.permute.xlu0 0
  %793 = vperm.xlu0 %792, %v767
  %v794 = vpop.permute.xlu0 %793
  %797 = vset.pattern.permute.xlu0 0
  %798 = vperm.xlu0 %797, %v768
  %v799 = vpop.permute.xlu0 %798
  %802 = vset.pattern.permute.xlu0 0
  %803 = vperm.xlu0 %802, %v769
  %v804 = vpop.permute.xlu0 %803
  %807 = vset.pattern.permute.xlu0 0
  %808 = vperm.xlu0 %807, %v770
  %v809 = vpop.permute.xlu0 %808
  %v811 = vadd.f32 %v755, %v774
  %v812 = vadd.f32 %v756, %v779
  %v813 = vadd.f32 %v757, %v784
  %v814 = vadd.f32 %v758, %v789
  %v815 = vadd.f32 %v759, %v794
  %v816 = vadd.f32 %v760, %v799
  %v817 = vadd.f32 %v761, %v804
  %v818 = vadd.f32 %v762, %v809
  %vm819 = vcmp.gt.f32.partialorder %v811, 0.0
  %vm820 = vcmp.gt.f32.partialorder %v812, 0.0
  %vm821 = vcmp.gt.f32.partialorder %v813, 0.0
  %vm822 = vcmp.gt.f32.partialorder %v814, 0.0
  %vm823 = vcmp.gt.f32.partialorder %v815, 0.0
  %vm824 = vcmp.gt.f32.partialorder %v816, 0.0
  %vm825 = vcmp.gt.f32.partialorder %v817, 0.0
  %vm826 = vcmp.gt.f32.partialorder %v818, 0.0
  %v827 = vmul.f32 %v811, 0.01
  %v828 = vmul.f32 %v812, 0.01
  %v829 = vmul.f32 %v813, 0.01
  %v830 = vmul.f32 %v814, 0.01
  %v831 = vmul.f32 %v815, 0.01
  %v832 = vmul.f32 %v816, 0.01
  %v833 = vmul.f32 %v817, 0.01
  %v834 = vmul.f32 %v818, 0.01
  %v835 = vsel %vm819, %v811, %v827
  %v836 = vsel %vm820, %v812, %v828
  %v837 = vsel %vm821, %v813, %v829
  %v838 = vsel %vm822, %v814, %v830
  %v839 = vsel %vm823, %v815, %v831
  %v840 = vsel %vm824, %v816, %v832
  %v841 = vsel %vm825, %v817, %v833
  %v842 = vsel %vm826, %v818, %v834
  %v843 = vpack.c.bf16 %v836, %v835
  %v844 = vpack.c.bf16 %v838, %v837
  %v845 = vpack.c.bf16 %v840, %v839
  %v846 = vpack.c.bf16 %v842, %v841
  %v851 = vunpack.c.l.b16 %v843
  %v852 = vunpack.c.h.b16 %v843
  %v853 = vunpack.c.l.b16 %v844
  %v854 = vunpack.c.h.b16 %v844
  %v855 = vunpack.c.l.b16 %v845
  %v856 = vunpack.c.h.b16 %v845
  %v857 = vunpack.c.l.b16 %v846
  %v858 = vunpack.c.h.b16 %v846
  %v859 = vpack.c.b16 %v851, %v851
  %v860 = vpack.c.b16 %v852, %v852
  %v861 = vpack.c.b16 %v853, %v853
  %v862 = vpack.c.b16 %v854, %v854
  %v863 = vpack.c.b16 %v855, %v855
  %v864 = vpack.c.b16 %v856, %v856
  %v865 = vpack.c.b16 %v857, %v857
  %v866 = vpack.c.b16 %v858, %v858
  %875 = vst [vmem:[%s5] sm:$0xf] %v859
  %876 = vst [vmem:[%s5 + $0x4] sm:$0xf] %v860
  %877 = vst [vmem:[%s5 + $0x8] sm:$0xf] %v861
  %878 = vst [vmem:[%s5 + $0xc] sm:$0xf] %v862
  %879 = vst [vmem:[%s5 + $0x10] sm:$0xf] %v863
  %880 = vst [vmem:[%s5 + $0x14] sm:$0xf] %v864
  %881 = vst [vmem:[%s5 + $0x18] sm:$0xf] %v865
  %882 = vst [vmem:[%s5 + $0x1c] sm:$0xf] %v866
  // Predicated region
  $region22: #{breast_cnn_forward.28} parent=0 // pred_check
    _
  $region23: #{breast_cnn_forward.28} parent=0 // pred_check_branch
    %884 = sbr.rel (0) target = $region25
  $region24: #{breast_cnn_forward.28} parent=0 // pred_region
    _
  $region25: #{breast_cnn_forward.28} parent=0 // pred_fallthru
    _
  // Predicated region
  $region26: #{breast_cnn_forward.28} parent=0 // pred_check
    _
  $region27: #{breast_cnn_forward.28} parent=0 // pred_check_branch
    %886 = sbr.rel (0) target = $region29
  $region28: #{breast_cnn_forward.28} parent=0 // pred_region
    _
  $region29: #{breast_cnn_forward.28} parent=0 // pred_fallthru
    _
  // Predicated region
  $region30: #{breast_cnn_forward.28} parent=0 // pred_check
    _
  $region31: #{breast_cnn_forward.28} parent=0 // pred_check_branch
    %888 = sbr.rel (0) target = $region33
  $region32: #{breast_cnn_forward.28} parent=0 // pred_region
    _
  $region33: #{breast_cnn_forward.28} parent=0 // pred_fallthru
    _
  // Predicated region
  $region34: #{breast_cnn_forward.28} parent=0 // pred_check
    _
  $region35: #{breast_cnn_forward.28} parent=0 // pred_check_branch
    %890 = sbr.rel (0) target = $region37
  $region36: #{breast_cnn_forward.28} parent=0 // pred_region
    _
  $region37: #{breast_cnn_forward.28} parent=0 // pred_fallthru
    _

</llo_original>
